<compile_context>
chip_gen: v7x
topology: tpu7x:2x2x1
jax: 0.10.0
libtpu: 0.0.40
codegen_flags: <defaults>
</compile_context>

<pallas_src>
import functools

import numpy as np
import jax
import jax.numpy as jnp
from jax.experimental import pallas as pl
from jax.experimental.pallas import tpu as pltpu


# ----------------------------------------------------------------------------
# align_corners=True bilinear interpolation helpers (host-side, static).
# ----------------------------------------------------------------------------
def bilinear_coeffs(out_size, in_size):
    """Per-output-index (i0, i1, frac) for 1-D align_corners=True interp."""
    if out_size == 1 or in_size == 1:
        return [(0, 0, 0.0)] * out_size
    scale = (in_size - 1) / (out_size - 1)
    coeffs = []
    for o in range(out_size):
        src = o * scale
        i0 = min(int(np.floor(src)), in_size - 1)
        i1 = min(i0 + 1, in_size - 1)
        coeffs.append((i0, i1, float(src - i0)))
    return coeffs


def bilinear_matrix(out_size, in_size):
    """Interpolation matrix matching F.interpolate(mode='bilinear',
    align_corners=True) along one axis."""
    a = np.zeros((out_size, in_size), np.float32)
    for o, (i0, i1, f) in enumerate(bilinear_coeffs(out_size, in_size)):
        a[o, i0] += 1.0 - f
        a[o, i1] += f
    return a


# ----------------------------------------------------------------------------
# Fused per-level Pallas kernel.
# ----------------------------------------------------------------------------
def _pconv_level_kernel(*refs, H, W, Cin, Cout, has_prev, has_next,
                        Hn, Wn, w_coeffs, compute_dtype):
    """conv1 + [stride-2 conv2] + [bilinear(conv0)] + biases + sum + ReLU.
    One grid step per batch sample."""
    refs = list(refs)
    o_ref = refs.pop(-1)
    x_self_ref, w1_ref, b1_ref = refs[0], refs[1], refs[2]
    pos = 3
    if has_prev:
        x_prev_ref, w2_ref, b2_ref = refs[pos], refs[pos + 1], refs[pos + 2]
        pos += 3
    if has_next:
        x_next_ref, w0_ref, b0_ref, ar_ref = (refs[pos], refs[pos + 1],
                                              refs[pos + 2], refs[pos + 3])

    def mxu(patches, w_ref, b_ref):
        # One big matmul per conv branch (K = 9*Cin), f32 accumulation.
        return (jnp.dot(patches.astype(compute_dtype),
                        w_ref[...].astype(compute_dtype),
                        preferred_element_type=jnp.float32)
                + b_ref[...])

    def conv3x3_s1(x_ref, Ho, Wo, w_ref, b_ref):
        x = x_ref[0]                                     # (Ho+2, Wo+2, Cin)
        taps = [x[ky:ky + Ho, kx:kx + Wo, :]
                for ky in range(3) for kx in range(3)]
        patches = jnp.concatenate(taps, axis=-1).reshape(Ho * Wo, 9 * Cin)
        return mxu(patches, w_ref, b_ref)                # (Ho*Wo, Cout)

    # --- Branch 1: conv1(x[l]), stride 1. ---
    acc = conv3x3_s1(x_self_ref, H, W, w1_ref, b1_ref).reshape(H, W, Cout)

    # --- Branch 2: conv2(x[l-1]), stride 2, on the parity-packed padded
    # input (H+1, 2, W+1, 2*Cin): tap (ky,kx) of output pixel (y,x) lives at
    # packed[y + ky//2, ky%2, x + kx//2, (kx%2)*Cin + c] -> static slices. ---
    if has_prev:
        xp = x_prev_ref[0]                               # (H+1, 2, W+1, 2Cin)
        taps = [xp[ky // 2:ky // 2 + H, ky % 2,
                   kx // 2:kx // 2 + W,
                   (kx % 2) * Cin:(kx % 2) * Cin + Cin]
                for ky in range(3) for kx in range(3)]
        patches = jnp.concatenate(taps, axis=-1).reshape(H * W, 9 * Cin)
        acc = acc + mxu(patches, w2_ref, b2_ref).reshape(H, W, Cout)

    # --- Branch 3: bilinear_up(conv0(x[l+1])), align_corners=True. ---
    if has_next:
        u = conv3x3_s1(x_next_ref, Hn, Wn,
                       w0_ref, b0_ref).reshape(Hn, Wn, Cout)
        # W interpolation: statically unrolled gather + lerp on the VPU.
        cols = []
        for (i0, i1, f) in w_coeffs:
            c0 = u[:, i0, :]
            col = c0 if f == 0.0 else (1.0 - f) * c0 + f * u[:, i1, :]
            cols.append(col[:, None, :])
        uw = jnp.concatenate(cols, axis=1)               # (Hn, W, Cout)
        # H interpolation: single (H, Hn) x (Hn, W, Cout) contraction.
        up = jax.lax.dot_general(ar_ref[...], uw, (((1,), (0,)), ((), ())),
                                 preferred_element_type=jnp.float32)
        acc = acc + up                                   # (H, W, Cout)

    o_ref[0] = jnp.maximum(acc, 0.0).astype(o_ref.dtype)


# ----------------------------------------------------------------------------
# Module wrapper (public NCHW interface like the PyTorch module).
# ----------------------------------------------------------------------------
class PConvModulePallas:
    """PConvModule with ibn=False, part_deform=False (the defaults)."""

    def __init__(self, in_channels, out_channels, key,
                 compute_dtype=jnp.float32):
        # compute_dtype=jnp.bfloat16 halves matmul-operand traffic and runs
        # the MXU at its bf16 rate (accumulation stays f32); f32 kept here so
        # the numeric check below stays tight.
        keys = jax.random.split(key, 3)
        self.cin = in_channels
        self.cout = out_channels
        self.compute_dtype = compute_dtype
        self.weights_oihw = []     # PyTorch layout (for the reference check)
        self.weights_mat = []      # (9*Cin, Cout) im2col layout for the MXU
        self.biases = []
        self.biases_row = []
        for k in keys:
            w = 0.01 * jax.random.normal(
                k, (out_channels, in_channels, 3, 3), jnp.float32)
            self.weights_oihw.append(w)
            w_hwio = jnp.transpose(w, (2, 3, 1, 0))       # (3, 3, Cin, Cout)
            self.weights_mat.append(
                w_hwio.reshape(9 * in_channels, out_channels))
            b = jnp.zeros((out_channels,), jnp.float32)
            self.biases.append(b)
            self.biases_row.append(b.reshape(1, out_channels))
        # Interp tables cached per (out_size, in_size): host loops run once
        # per shape pair, not once per forward call.
        self._row_mat_cache = {}
        self._col_coeff_cache = {}

    def _row_matrix(self, out_size, in_size):
        key = (out_size, in_size)
        if key not in self._row_mat_cache:
            self._row_mat_cache[key] = jnp.asarray(
                bilinear_matrix(out_size, in_size))
        return self._row_mat_cache[key]

    def _col_coeffs(self, out_size, in_size):
        key = (out_size, in_size)
        if key not in self._col_coeff_cache:
            self._col_coeff_cache[key] = tuple(
                bilinear_coeffs(out_size, in_size))
        return self._col_coeff_cache[key]

    def __call__(self, x_levels_nchw):
        xs = [jnp.transpose(x, (0, 2, 3, 1)) for x in x_levels_nchw]  # NHWC
        # Pad every level exactly once; the stride-1 view and the stride-2
        # parity-packed view are free reshapes of the same padded buffer.
        pads = [jnp.pad(x, ((0, 0), (1, 1), (1, 1), (0, 0))) for x in xs]
        n_lv = len(xs)
        cout = self.cout
        outs = []
        for l in range(n_lv):
            n, h, w, cin = xs[l].shape
            has_prev = l > 0
            has_next = l < n_lv - 1

            inputs = [pads[l], self.weights_mat[1], self.biases_row[1]]
            in_specs = [
                pl.BlockSpec((1, h + 2, w + 2, cin), lambda i: (i, 0, 0, 0)),
                pl.BlockSpec((9 * cin, cout), lambda i: (0, 0)),
                pl.BlockSpec((1, cout), lambda i: (0, 0)),
            ]

            if has_prev:
                hp, wp = xs[l - 1].shape[1], xs[l - 1].shape[2]
                assert (hp - 1) // 2 + 1 == h and (wp - 1) // 2 + 1 == w, (
                    "stride-2 branch output size must match this level")
                if hp == 2 * h and wp == 2 * w:
                    prev_pad = pads[l - 1]
                else:   # odd previous size: one extra zero row/col at the end
                    prev_pad = jnp.pad(
                        xs[l - 1],
                        ((0, 0), (1, 2 * h + 1 - hp), (1, 2 * w + 1 - wp),
                         (0, 0)))
                prev_packed = prev_pad.reshape(n, h + 1, 2, w + 1, 2 * cin)
                inputs += [prev_packed, self.weights_mat[2],
                           self.biases_row[2]]
                in_specs += [
                    pl.BlockSpec((1, h + 1, 2, w + 1, 2 * cin),
                                 lambda i: (i, 0, 0, 0, 0)),
                    pl.BlockSpec((9 * cin, cout), lambda i: (0, 0)),
                    pl.BlockSpec((1, cout), lambda i: (0, 0)),
                ]

            hn = wn = 0
            w_coeffs = ()
            if has_next:
                hn, wn = xs[l + 1].shape[1], xs[l + 1].shape[2]
                ar = self._row_matrix(h, hn)
                w_coeffs = self._col_coeffs(w, wn)
                inputs += [pads[l + 1], self.weights_mat[0],
                           self.biases_row[0], ar]
                in_specs += [
                    pl.BlockSpec((1, hn + 2, wn + 2, cin),
                                 lambda i: (i, 0, 0, 0)),
                    pl.BlockSpec((9 * cin, cout), lambda i: (0, 0)),
                    pl.BlockSpec((1, cout), lambda i: (0, 0)),
                    pl.BlockSpec((h, hn), lambda i: (0, 0)),
                ]

            kernel = functools.partial(
                _pconv_level_kernel, H=h, W=w, Cin=cin, Cout=cout,
                has_prev=has_prev, has_next=has_next, Hn=hn, Wn=wn,
                w_coeffs=w_coeffs, compute_dtype=self.compute_dtype)

            out = pl.pallas_call(
                kernel,
                out_shape=jax.ShapeDtypeStruct((n, h, w, cout), xs[l].dtype),
                grid=(n,),
                in_specs=in_specs,
                out_specs=pl.BlockSpec((1, h, w, cout),
                                       lambda i: (i, 0, 0, 0)),
                compiler_params=pltpu.CompilerParams(
                    dimension_semantics=("parallel",),
                    vmem_limit_bytes=64 * 1024 * 1024),
            )(*inputs)
            outs.append(out)
        return [jnp.transpose(o, (0, 3, 1, 2)) for o in outs]      # NCHW


# ----------------------------------------------------------------------------
# Plain-JAX reference (for verification only).
# ----------------------------------------------------------------------------
def ref_forward(x_levels, ws_oihw, bs):
    hp = jax.lax.Precision.HIGHEST

    def conv(inp, w, b, stride):
        y = jax.lax.conv_general_dilated(
            inp, w, window_strides=(stride, stride), padding=((1, 1), (1, 1)),
            dimension_numbers=("NCHW", "OIHW", "NCHW"), precision=hp)
        return y + b[None, :, None, None]

    n_lv = len(x_levels)
    outs = []
    for level in range(n_lv):
        t = conv(x_levels[level], ws_oihw[1], bs[1], 1)
        if level > 0:
            t = t + conv(x_levels[level - 1], ws_oihw[2], bs[2], 2)
        if level < n_lv - 1:
            u = conv(x_levels[level + 1], ws_oihw[0], bs[0], 1)
            ar = jnp.asarray(bilinear_matrix(t.shape[2], u.shape[2]))
            ac = jnp.asarray(bilinear_matrix(t.shape[3], u.shape[3]))
            t = t + jnp.einsum("oh,pw,nchw->ncop", ar, ac, u, precision=hp)
        outs.append(jax.nn.relu(t))
    return outs


if __name__ == "__main__":
    key = jax.random.PRNGKey(0)
    k_inp, k_w = jax.random.split(key)

    # Small demo shapes: 3 FPN levels, halving resolution. C=128 keeps the
    # channel (lane) dimension dense on TPU.
    N, C = 2, 128
    spatials = [16, 8, 4]
    x_keys = jax.random.split(k_inp, len(spatials))
    x = [jax.random.normal(k, (N, C, s, s), jnp.float32)
         for k, s in zip(x_keys, spatials)]

    module = PConvModulePallas(in_channels=C, out_channels=C, key=k_w)

    out = module(x)
    out = [jax.block_until_ready(o) for o in out]

    ref = ref_forward(x, module.weights_oihw, module.biases)
    for o, r in zip(out, ref):
        assert o.shape == r.shape, (o.shape, r.shape)
        np.testing.assert_allclose(np.asarray(o), np.asarray(r),
                                   atol=2e-4, rtol=2e-4)

    print("KERNEL_OK")
</pallas_src>

<mosaic_0001>
module attributes {stable_mosaic.version = 11 : i64} {
  func.func @_pconv_level_kernel(%arg0: i32, %arg1: memref<1x18x18x128xf32, #tpu.memory_space<vmem>>, %arg2: memref<1152x128xf32, #tpu.memory_space<vmem>>, %arg3: memref<1x128xf32, #tpu.memory_space<vmem>>, %arg4: memref<1x10x10x128xf32, #tpu.memory_space<vmem>>, %arg5: memref<1152x128xf32, #tpu.memory_space<vmem>>, %arg6: memref<1x128xf32, #tpu.memory_space<vmem>>, %arg7: memref<16x8xf32, #tpu.memory_space<vmem>>, %arg8: memref<1x16x16x128xf32, #tpu.memory_space<vmem>>) attributes {dimension_semantics = [#tpu.dimension_semantics<parallel>], iteration_bounds = array<i64: 2>, scalar_prefetch = 0 : i64, scratch_operands = 0 : i64, tpu.core_type = #tpu.core_type<tc>, window_params = [{transform_indices = @transform_0, window_bounds = array<i64: 1, 18, 18, 128>}, {pipeline_mode = #tpu.pipeline_mode<synchronous>, transform_indices = @transform_1, window_bounds = array<i64: 1152, 128>}, {pipeline_mode = #tpu.pipeline_mode<synchronous>, transform_indices = @transform_2, window_bounds = array<i64: 1, 128>}, {transform_indices = @transform_3, window_bounds = array<i64: 1, 10, 10, 128>}, {pipeline_mode = #tpu.pipeline_mode<synchronous>, transform_indices = @transform_4, window_bounds = array<i64: 1152, 128>}, {pipeline_mode = #tpu.pipeline_mode<synchronous>, transform_indices = @transform_5, window_bounds = array<i64: 1, 128>}, {pipeline_mode = #tpu.pipeline_mode<synchronous>, transform_indices = @transform_6, window_bounds = array<i64: 16, 8>}, {transform_indices = @transform_7, window_bounds = array<i64: 1, 16, 16, 128>}]} {
    %c0 = arith.constant 0 : index
    %c0_0 = arith.constant 0 : index
    %c0_1 = arith.constant 0 : index
    %c0_2 = arith.constant 0 : index
    %0 = vector.load %arg1[%c0, %c0_0, %c0_1, %c0_2] : memref<1x18x18x128xf32, #tpu.memory_space<vmem>>, vector<1x18x18x128xf32>
    %1 = vector.shape_cast %0 : vector<1x18x18x128xf32> to vector<18x18x128xf32>
    %2 = vector.extract_strided_slice %1 {offsets = [0, 0, 0], sizes = [16, 16, 128], strides = [1, 1, 1]} : vector<18x18x128xf32> to vector<16x16x128xf32>
    %3 = vector.extract_strided_slice %1 {offsets = [0, 1, 0], sizes = [16, 16, 128], strides = [1, 1, 1]} : vector<18x18x128xf32> to vector<16x16x128xf32>
    %4 = vector.extract_strided_slice %1 {offsets = [0, 2, 0], sizes = [16, 16, 128], strides = [1, 1, 1]} : vector<18x18x128xf32> to vector<16x16x128xf32>
    %5 = vector.extract_strided_slice %1 {offsets = [1, 0, 0], sizes = [16, 16, 128], strides = [1, 1, 1]} : vector<18x18x128xf32> to vector<16x16x128xf32>
    %6 = vector.extract_strided_slice %1 {offsets = [1, 1, 0], sizes = [16, 16, 128], strides = [1, 1, 1]} : vector<18x18x128xf32> to vector<16x16x128xf32>
    %7 = vector.extract_strided_slice %1 {offsets = [1, 2, 0], sizes = [16, 16, 128], strides = [1, 1, 1]} : vector<18x18x128xf32> to vector<16x16x128xf32>
    %8 = vector.extract_strided_slice %1 {offsets = [2, 0, 0], sizes = [16, 16, 128], strides = [1, 1, 1]} : vector<18x18x128xf32> to vector<16x16x128xf32>
    %9 = vector.extract_strided_slice %1 {offsets = [2, 1, 0], sizes = [16, 16, 128], strides = [1, 1, 1]} : vector<18x18x128xf32> to vector<16x16x128xf32>
    %10 = vector.extract_strided_slice %1 {offsets = [2, 2, 0], sizes = [16, 16, 128], strides = [1, 1, 1]} : vector<18x18x128xf32> to vector<16x16x128xf32>
    %11 = tpu.concatenate %2, %3, %4, %5, %6, %7, %8, %9, %10 in 2 : vector<16x16x128xf32>, vector<16x16x128xf32>, vector<16x16x128xf32>, vector<16x16x128xf32>, vector<16x16x128xf32>, vector<16x16x128xf32>, vector<16x16x128xf32>, vector<16x16x128xf32>, vector<16x16x128xf32> -> vector<16x16x1152xf32>
    %12 = vector.shape_cast %11 : vector<16x16x1152xf32> to vector<256x1152xf32>
    %c0_3 = arith.constant 0 : index
    %c0_4 = arith.constant 0 : index
    %13 = vector.load %arg2[%c0_3, %c0_4] : memref<1152x128xf32, #tpu.memory_space<vmem>>, vector<1152x128xf32>
    %cst = arith.constant dense<0.000000e+00> : vector<256x128xf32>
    %14 = tpu.matmul %12, %13, %cst {dimension_numbers = #tpu.dot_dimension_numbers<[1], [0], [0], [1], [0, 0, 1, 1], [], []>} : vector<256x1152xf32>, vector<1152x128xf32>, vector<256x128xf32> -> vector<256x128xf32>
    %c0_5 = arith.constant 0 : index
    %c0_6 = arith.constant 0 : index
    %15 = vector.load %arg3[%c0_5, %c0_6] : memref<1x128xf32, #tpu.memory_space<vmem>>, vector<1x128xf32>
    %16 = vector.broadcast %15 : vector<1x128xf32> to vector<256x128xf32>
    %17 = arith.addf %14, %16 : vector<256x128xf32>
    %18 = vector.shape_cast %17 : vector<256x128xf32> to vector<16x16x128xf32>
    %c0_7 = arith.constant 0 : index
    %c0_8 = arith.constant 0 : index
    %c0_9 = arith.constant 0 : index
    %c0_10 = arith.constant 0 : index
    %19 = vector.load %arg4[%c0_7, %c0_8, %c0_9, %c0_10] : memref<1x10x10x128xf32, #tpu.memory_space<vmem>>, vector<1x10x10x128xf32>
    %20 = vector.shape_cast %19 : vector<1x10x10x128xf32> to vector<10x10x128xf32>
    %21 = vector.extract_strided_slice %20 {offsets = [0, 0, 0], sizes = [8, 8, 128], strides = [1, 1, 1]} : vector<10x10x128xf32> to vector<8x8x128xf32>
    %22 = vector.extract_strided_slice %20 {offsets = [0, 1, 0], sizes = [8, 8, 128], strides = [1, 1, 1]} : vector<10x10x128xf32> to vector<8x8x128xf32>
    %23 = vector.extract_strided_slice %20 {offsets = [0, 2, 0], sizes = [8, 8, 128], strides = [1, 1, 1]} : vector<10x10x128xf32> to vector<8x8x128xf32>
    %24 = vector.extract_strided_slice %20 {offsets = [1, 0, 0], sizes = [8, 8, 128], strides = [1, 1, 1]} : vector<10x10x128xf32> to vector<8x8x128xf32>
    %25 = vector.extract_strided_slice %20 {offsets = [1, 1, 0], sizes = [8, 8, 128], strides = [1, 1, 1]} : vector<10x10x128xf32> to vector<8x8x128xf32>
    %26 = vector.extract_strided_slice %20 {offsets = [1, 2, 0], sizes = [8, 8, 128], strides = [1, 1, 1]} : vector<10x10x128xf32> to vector<8x8x128xf32>
    %27 = vector.extract_strided_slice %20 {offsets = [2, 0, 0], sizes = [8, 8, 128], strides = [1, 1, 1]} : vector<10x10x128xf32> to vector<8x8x128xf32>
    %28 = vector.extract_strided_slice %20 {offsets = [2, 1, 0], sizes = [8, 8, 128], strides = [1, 1, 1]} : vector<10x10x128xf32> to vector<8x8x128xf32>
    %29 = vector.extract_strided_slice %20 {offsets = [2, 2, 0], sizes = [8, 8, 128], strides = [1, 1, 1]} : vector<10x10x128xf32> to vector<8x8x128xf32>
    %30 = tpu.concatenate %21, %22, %23, %24, %25, %26, %27, %28, %29 in 2 : vector<8x8x128xf32>, vector<8x8x128xf32>, vector<8x8x128xf32>, vector<8x8x128xf32>, vector<8x8x128xf32>, vector<8x8x128xf32>, vector<8x8x128xf32>, vector<8x8x128xf32>, vector<8x8x128xf32> -> vector<8x8x1152xf32>
    %31 = vector.shape_cast %30 : vector<8x8x1152xf32> to vector<64x1152xf32>
    %c0_11 = arith.constant 0 : index
    %c0_12 = arith.constant 0 : index
    %32 = vector.load %arg5[%c0_11, %c0_12] : memref<1152x128xf32, #tpu.memory_space<vmem>>, vector<1152x128xf32>
    %cst_13 = arith.constant dense<0.000000e+00> : vector<64x128xf32>
    %33 = tpu.matmul %31, %32, %cst_13 {dimension_numbers = #tpu.dot_dimension_numbers<[1], [0], [0], [1], [0, 0, 1, 1], [], []>} : vector<64x1152xf32>, vector<1152x128xf32>, vector<64x128xf32> -> vector<64x128xf32>
    %c0_14 = arith.constant 0 : index
    %c0_15 = arith.constant 0 : index
    %34 = vector.load %arg6[%c0_14, %c0_15] : memref<1x128xf32, #tpu.memory_space<vmem>>, vector<1x128xf32>
    %35 = vector.broadcast %34 : vector<1x128xf32> to vector<64x128xf32>
    %36 = arith.addf %33, %35 : vector<64x128xf32>
    %37 = vector.shape_cast %36 : vector<64x128xf32> to vector<8x8x128xf32>
    %38 = vector.extract_strided_slice %37 {offsets = [0, 0, 0], sizes = [8, 1, 128], strides = [1, 1, 1]} : vector<8x8x128xf32> to vector<8x1x128xf32>
    %39 = vector.shape_cast %38 : vector<8x1x128xf32> to vector<8x128xf32>
    %40 = vector.shape_cast %39 : vector<8x128xf32> to vector<8x1x128xf32>
    %41 = vector.extract_strided_slice %37 {offsets = [0, 0, 0], sizes = [8, 1, 128], strides = [1, 1, 1]} : vector<8x8x128xf32> to vector<8x1x128xf32>
    %42 = vector.shape_cast %41 : vector<8x1x128xf32> to vector<8x128xf32>
    %cst_16 = arith.constant 0.533333361 : f32
    %43 = vector.broadcast %cst_16 : f32 to vector<8x128xf32>
    %44 = arith.mulf %43, %42 : vector<8x128xf32>
    %45 = vector.extract_strided_slice %37 {offsets = [0, 1, 0], sizes = [8, 1, 128], strides = [1, 1, 1]} : vector<8x8x128xf32> to vector<8x1x128xf32>
    %46 = vector.shape_cast %45 : vector<8x1x128xf32> to vector<8x128xf32>
    %cst_17 = arith.constant 0.466666669 : f32
    %47 = vector.broadcast %cst_17 : f32 to vector<8x128xf32>
    %48 = arith.mulf %47, %46 : vector<8x128xf32>
    %49 = arith.addf %44, %48 : vector<8x128xf32>
    %50 = vector.shape_cast %49 : vector<8x128xf32> to vector<8x1x128xf32>
    %51 = vector.extract_strided_slice %37 {offsets = [0, 0, 0], sizes = [8, 1, 128], strides = [1, 1, 1]} : vector<8x8x128xf32> to vector<8x1x128xf32>
    %52 = vector.shape_cast %51 : vector<8x1x128xf32> to vector<8x128xf32>
    %cst_18 = arith.constant 0.0666666701 : f32
    %53 = vector.broadcast %cst_18 : f32 to vector<8x128xf32>
    %54 = arith.mulf %53, %52 : vector<8x128xf32>
    %55 = vector.extract_strided_slice %37 {offsets = [0, 1, 0], sizes = [8, 1, 128], strides = [1, 1, 1]} : vector<8x8x128xf32> to vector<8x1x128xf32>
    %56 = vector.shape_cast %55 : vector<8x1x128xf32> to vector<8x128xf32>
    %cst_19 = arith.constant 0.933333337 : f32
    %57 = vector.broadcast %cst_19 : f32 to vector<8x128xf32>
    %58 = arith.mulf %57, %56 : vector<8x128xf32>
    %59 = arith.addf %54, %58 : vector<8x128xf32>
    %60 = vector.shape_cast %59 : vector<8x128xf32> to vector<8x1x128xf32>
    %61 = vector.extract_strided_slice %37 {offsets = [0, 1, 0], sizes = [8, 1, 128], strides = [1, 1, 1]} : vector<8x8x128xf32> to vector<8x1x128xf32>
    %62 = vector.shape_cast %61 : vector<8x1x128xf32> to vector<8x128xf32>
    %cst_20 = arith.constant 6.000000e-01 : f32
    %63 = vector.broadcast %cst_20 : f32 to vector<8x128xf32>
    %64 = arith.mulf %63, %62 : vector<8x128xf32>
    %65 = vector.extract_strided_slice %37 {offsets = [0, 2, 0], sizes = [8, 1, 128], strides = [1, 1, 1]} : vector<8x8x128xf32> to vector<8x1x128xf32>
    %66 = vector.shape_cast %65 : vector<8x1x128xf32> to vector<8x128xf32>
    %cst_21 = arith.constant 4.000000e-01 : f32
    %67 = vector.broadcast %cst_21 : f32 to vector<8x128xf32>
    %68 = arith.mulf %67, %66 : vector<8x128xf32>
    %69 = arith.addf %64, %68 : vector<8x128xf32>
    %70 = vector.shape_cast %69 : vector<8x128xf32> to vector<8x1x128xf32>
    %71 = vector.extract_strided_slice %37 {offsets = [0, 1, 0], sizes = [8, 1, 128], strides = [1, 1, 1]} : vector<8x8x128xf32> to vector<8x1x128xf32>
    %72 = vector.shape_cast %71 : vector<8x1x128xf32> to vector<8x128xf32>
    %cst_22 = arith.constant 0.13333334 : f32
    %73 = vector.broadcast %cst_22 : f32 to vector<8x128xf32>
    %74 = arith.mulf %73, %72 : vector<8x128xf32>
    %75 = vector.extract_strided_slice %37 {offsets = [0, 2, 0], sizes = [8, 1, 128], strides = [1, 1, 1]} : vector<8x8x128xf32> to vector<8x1x128xf32>
    %76 = vector.shape_cast %75 : vector<8x1x128xf32> to vector<8x128xf32>
    %cst_23 = arith.constant 0.866666674 : f32
    %77 = vector.broadcast %cst_23 : f32 to vector<8x128xf32>
    %78 = arith.mulf %77, %76 : vector<8x128xf32>
    %79 = arith.addf %74, %78 : vector<8x128xf32>
    %80 = vector.shape_cast %79 : vector<8x128xf32> to vector<8x1x128xf32>
    %81 = vector.extract_strided_slice %37 {offsets = [0, 2, 0], sizes = [8, 1, 128], strides = [1, 1, 1]} : vector<8x8x128xf32> to vector<8x1x128xf32>
    %82 = vector.shape_cast %81 : vector<8x1x128xf32> to vector<8x128xf32>
    %cst_24 = arith.constant 0.666666686 : f32
    %83 = vector.broadcast %cst_24 : f32 to vector<8x128xf32>
    %84 = arith.mulf %83, %82 : vector<8x128xf32>
    %85 = vector.extract_strided_slice %37 {offsets = [0, 3, 0], sizes = [8, 1, 128], strides = [1, 1, 1]} : vector<8x8x128xf32> to vector<8x1x128xf32>
    %86 = vector.shape_cast %85 : vector<8x1x128xf32> to vector<8x128xf32>
    %cst_25 = arith.constant 0.333333343 : f32
    %87 = vector.broadcast %cst_25 : f32 to vector<8x128xf32>
    %88 = arith.mulf %87, %86 : vector<8x128xf32>
    %89 = arith.addf %84, %88 : vector<8x128xf32>
    %90 = vector.shape_cast %89 : vector<8x128xf32> to vector<8x1x128xf32>
    %91 = vector.extract_strided_slice %37 {offsets = [0, 2, 0], sizes = [8, 1, 128], strides = [1, 1, 1]} : vector<8x8x128xf32> to vector<8x1x128xf32>
    %92 = vector.shape_cast %91 : vector<8x1x128xf32> to vector<8x128xf32>
    %cst_26 = arith.constant 2.000000e-01 : f32
    %93 = vector.broadcast %cst_26 : f32 to vector<8x128xf32>
    %94 = arith.mulf %93, %92 : vector<8x128xf32>
    %95 = vector.extract_strided_slice %37 {offsets = [0, 3, 0], sizes = [8, 1, 128], strides = [1, 1, 1]} : vector<8x8x128xf32> to vector<8x1x128xf32>
    %96 = vector.shape_cast %95 : vector<8x1x128xf32> to vector<8x128xf32>
    %cst_27 = arith.constant 8.000000e-01 : f32
    %97 = vector.broadcast %cst_27 : f32 to vector<8x128xf32>
    %98 = arith.mulf %97, %96 : vector<8x128xf32>
    %99 = arith.addf %94, %98 : vector<8x128xf32>
    %100 = vector.shape_cast %99 : vector<8x128xf32> to vector<8x1x128xf32>
    %101 = vector.extract_strided_slice %37 {offsets = [0, 3, 0], sizes = [8, 1, 128], strides = [1, 1, 1]} : vector<8x8x128xf32> to vector<8x1x128xf32>
    %102 = vector.shape_cast %101 : vector<8x1x128xf32> to vector<8x128xf32>
    %cst_28 = arith.constant 0.733333349 : f32
    %103 = vector.broadcast %cst_28 : f32 to vector<8x128xf32>
    %104 = arith.mulf %103, %102 : vector<8x128xf32>
    %105 = vector.extract_strided_slice %37 {offsets = [0, 4, 0], sizes = [8, 1, 128], strides = [1, 1, 1]} : vector<8x8x128xf32> to vector<8x1x128xf32>
    %106 = vector.shape_cast %105 : vector<8x1x128xf32> to vector<8x128xf32>
    %cst_29 = arith.constant 0.266666681 : f32
    %107 = vector.broadcast %cst_29 : f32 to vector<8x128xf32>
    %108 = arith.mulf %107, %106 : vector<8x128xf32>
    %109 = arith.addf %104, %108 : vector<8x128xf32>
    %110 = vector.shape_cast %109 : vector<8x128xf32> to vector<8x1x128xf32>
    %111 = vector.extract_strided_slice %37 {offsets = [0, 3, 0], sizes = [8, 1, 128], strides = [1, 1, 1]} : vector<8x8x128xf32> to vector<8x1x128xf32>
    %112 = vector.shape_cast %111 : vector<8x1x128xf32> to vector<8x128xf32>
    %cst_30 = arith.constant 0.266666681 : f32
    %113 = vector.broadcast %cst_30 : f32 to vector<8x128xf32>
    %114 = arith.mulf %113, %112 : vector<8x128xf32>
    %115 = vector.extract_strided_slice %37 {offsets = [0, 4, 0], sizes = [8, 1, 128], strides = [1, 1, 1]} : vector<8x8x128xf32> to vector<8x1x128xf32>
    %116 = vector.shape_cast %115 : vector<8x1x128xf32> to vector<8x128xf32>
    %cst_31 = arith.constant 0.733333349 : f32
    %117 = vector.broadcast %cst_31 : f32 to vector<8x128xf32>
    %118 = arith.mulf %117, %116 : vector<8x128xf32>
    %119 = arith.addf %114, %118 : vector<8x128xf32>
    %120 = vector.shape_cast %119 : vector<8x128xf32> to vector<8x1x128xf32>
    %121 = vector.extract_strided_slice %37 {offsets = [0, 4, 0], sizes = [8, 1, 128], strides = [1, 1, 1]} : vector<8x8x128xf32> to vector<8x1x128xf32>
    %122 = vector.shape_cast %121 : vector<8x1x128xf32> to vector<8x128xf32>
    %cst_32 = arith.constant 8.000000e-01 : f32
    %123 = vector.broadcast %cst_32 : f32 to vector<8x128xf32>
    %124 = arith.mulf %123, %122 : vector<8x128xf32>
    %125 = vector.extract_strided_slice %37 {offsets = [0, 5, 0], sizes = [8, 1, 128], strides = [1, 1, 1]} : vector<8x8x128xf32> to vector<8x1x128xf32>
    %126 = vector.shape_cast %125 : vector<8x1x128xf32> to vector<8x128xf32>
    %cst_33 = arith.constant 2.000000e-01 : f32
    %127 = vector.broadcast %cst_33 : f32 to vector<8x128xf32>
    %128 = arith.mulf %127, %126 : vector<8x128xf32>
    %129 = arith.addf %124, %128 : vector<8x128xf32>
    %130 = vector.shape_cast %129 : vector<8x128xf32> to vector<8x1x128xf32>
    %131 = vector.extract_strided_slice %37 {offsets = [0, 4, 0], sizes = [8, 1, 128], strides = [1, 1, 1]} : vector<8x8x128xf32> to vector<8x1x128xf32>
    %132 = vector.shape_cast %131 : vector<8x1x128xf32> to vector<8x128xf32>
    %cst_34 = arith.constant 0.333333343 : f32
    %133 = vector.broadcast %cst_34 : f32 to vector<8x128xf32>
    %134 = arith.mulf %133, %132 : vector<8x128xf32>
    %135 = vector.extract_strided_slice %37 {offsets = [0, 5, 0], sizes = [8, 1, 128], strides = [1, 1, 1]} : vector<8x8x128xf32> to vector<8x1x128xf32>
    %136 = vector.shape_cast %135 : vector<8x1x128xf32> to vector<8x128xf32>
    %cst_35 = arith.constant 0.666666686 : f32
    %137 = vector.broadcast %cst_35 : f32 to vector<8x128xf32>
    %138 = arith.mulf %137, %136 : vector<8x128xf32>
    %139 = arith.addf %134, %138 : vector<8x128xf32>
    %140 = vector.shape_cast %139 : vector<8x128xf32> to vector<8x1x128xf32>
    %141 = vector.extract_strided_slice %37 {offsets = [0, 5, 0], sizes = [8, 1, 128], strides = [1, 1, 1]} : vector<8x8x128xf32> to vector<8x1x128xf32>
    %142 = vector.shape_cast %141 : vector<8x1x128xf32> to vector<8x128xf32>
    %cst_36 = arith.constant 0.866666674 : f32
    %143 = vector.broadcast %cst_36 : f32 to vector<8x128xf32>
    %144 = arith.mulf %143, %142 : vector<8x128xf32>
    %145 = vector.extract_strided_slice %37 {offsets = [0, 6, 0], sizes = [8, 1, 128], strides = [1, 1, 1]} : vector<8x8x128xf32> to vector<8x1x128xf32>
    %146 = vector.shape_cast %145 : vector<8x1x128xf32> to vector<8x128xf32>
    %cst_37 = arith.constant 0.13333334 : f32
    %147 = vector.broadcast %cst_37 : f32 to vector<8x128xf32>
    %148 = arith.mulf %147, %146 : vector<8x128xf32>
    %149 = arith.addf %144, %148 : vector<8x128xf32>
    %150 = vector.shape_cast %149 : vector<8x128xf32> to vector<8x1x128xf32>
    %151 = vector.extract_strided_slice %37 {offsets = [0, 5, 0], sizes = [8, 1, 128], strides = [1, 1, 1]} : vector<8x8x128xf32> to vector<8x1x128xf32>
    %152 = vector.shape_cast %151 : vector<8x1x128xf32> to vector<8x128xf32>
    %cst_38 = arith.constant 4.000000e-01 : f32
    %153 = vector.broadcast %cst_38 : f32 to vector<8x128xf32>
    %154 = arith.mulf %153, %152 : vector<8x128xf32>
    %155 = vector.extract_strided_slice %37 {offsets = [0, 6, 0], sizes = [8, 1, 128], strides = [1, 1, 1]} : vector<8x8x128xf32> to vector<8x1x128xf32>
    %156 = vector.shape_cast %155 : vector<8x1x128xf32> to vector<8x128xf32>
    %cst_39 = arith.constant 6.000000e-01 : f32
    %157 = vector.broadcast %cst_39 : f32 to vector<8x128xf32>
    %158 = arith.mulf %157, %156 : vector<8x128xf32>
    %159 = arith.addf %154, %158 : vector<8x128xf32>
    %160 = vector.shape_cast %159 : vector<8x128xf32> to vector<8x1x128xf32>
    %161 = vector.extract_strided_slice %37 {offsets = [0, 6, 0], sizes = [8, 1, 128], strides = [1, 1, 1]} : vector<8x8x128xf32> to vector<8x1x128xf32>
    %162 = vector.shape_cast %161 : vector<8x1x128xf32> to vector<8x128xf32>
    %cst_40 = arith.constant 0.933333337 : f32
    %163 = vector.broadcast %cst_40 : f32 to vector<8x128xf32>
    %164 = arith.mulf %163, %162 : vector<8x128xf32>
    %165 = vector.extract_strided_slice %37 {offsets = [0, 7, 0], sizes = [8, 1, 128], strides = [1, 1, 1]} : vector<8x8x128xf32> to vector<8x1x128xf32>
    %166 = vector.shape_cast %165 : vector<8x1x128xf32> to vector<8x128xf32>
    %cst_41 = arith.constant 0.0666666701 : f32
    %167 = vector.broadcast %cst_41 : f32 to vector<8x128xf32>
    %168 = arith.mulf %167, %166 : vector<8x128xf32>
    %169 = arith.addf %164, %168 : vector<8x128xf32>
    %170 = vector.shape_cast %169 : vector<8x128xf32> to vector<8x1x128xf32>
    %171 = vector.extract_strided_slice %37 {offsets = [0, 6, 0], sizes = [8, 1, 128], strides = [1, 1, 1]} : vector<8x8x128xf32> to vector<8x1x128xf32>
    %172 = vector.shape_cast %171 : vector<8x1x128xf32> to vector<8x128xf32>
    %cst_42 = arith.constant 0.466666669 : f32
    %173 = vector.broadcast %cst_42 : f32 to vector<8x128xf32>
    %174 = arith.mulf %173, %172 : vector<8x128xf32>
    %175 = vector.extract_strided_slice %37 {offsets = [0, 7, 0], sizes = [8, 1, 128], strides = [1, 1, 1]} : vector<8x8x128xf32> to vector<8x1x128xf32>
    %176 = vector.shape_cast %175 : vector<8x1x128xf32> to vector<8x128xf32>
    %cst_43 = arith.constant 0.533333361 : f32
    %177 = vector.broadcast %cst_43 : f32 to vector<8x128xf32>
    %178 = arith.mulf %177, %176 : vector<8x128xf32>
    %179 = arith.addf %174, %178 : vector<8x128xf32>
    %180 = vector.shape_cast %179 : vector<8x128xf32> to vector<8x1x128xf32>
    %181 = vector.extract_strided_slice %37 {offsets = [0, 7, 0], sizes = [8, 1, 128], strides = [1, 1, 1]} : vector<8x8x128xf32> to vector<8x1x128xf32>
    %182 = vector.shape_cast %181 : vector<8x1x128xf32> to vector<8x128xf32>
    %183 = vector.shape_cast %182 : vector<8x128xf32> to vector<8x1x128xf32>
    %184 = tpu.concatenate %40, %50, %60, %70, %80, %90, %100, %110, %120, %130, %140, %150, %160, %170, %180, %183 in 1 : vector<8x1x128xf32>, vector<8x1x128xf32>, vector<8x1x128xf32>, vector<8x1x128xf32>, vector<8x1x128xf32>, vector<8x1x128xf32>, vector<8x1x128xf32>, vector<8x1x128xf32>, vector<8x1x128xf32>, vector<8x1x128xf32>, vector<8x1x128xf32>, vector<8x1x128xf32>, vector<8x1x128xf32>, vector<8x1x128xf32>, vector<8x1x128xf32>, vector<8x1x128xf32> -> vector<8x16x128xf32>
    %c0_44 = arith.constant 0 : index
    %c0_45 = arith.constant 0 : index
    %185 = vector.load %arg7[%c0_44, %c0_45] : memref<16x8xf32, #tpu.memory_space<vmem>>, vector<16x8xf32>
    %cst_46 = arith.constant dense<0.000000e+00> : vector<16x16x128xf32>
    %186 = tpu.matmul %185, %184, %cst_46 {dimension_numbers = #tpu.dot_dimension_numbers<[1], [0], [0], [1, 2], [0, 0, 1, 1, 1, 2], [], []>} : vector<16x8xf32>, vector<8x16x128xf32>, vector<16x16x128xf32> -> vector<16x16x128xf32>
    %187 = arith.addf %18, %186 : vector<16x16x128xf32>
    %cst_47 = arith.constant 0.000000e+00 : f32
    %188 = vector.broadcast %cst_47 : f32 to vector<16x16x128xf32>
    %189 = arith.maximumf %187, %188 : vector<16x16x128xf32>
    %c0_48 = arith.constant 0 : index
    %c0_49 = arith.constant 0 : index
    %c0_50 = arith.constant 0 : index
    %c0_51 = arith.constant 0 : index
    %190 = vector.load %arg8[%c0_48, %c0_49, %c0_50, %c0_51] : memref<1x16x16x128xf32, #tpu.memory_space<vmem>>, vector<1x16x16x128xf32>
    %191 = vector.shape_cast %190 : vector<1x16x16x128xf32> to vector<16x16x128xf32>
    %192 = vector.shape_cast %189 : vector<16x16x128xf32> to vector<1x16x16x128xf32>
    tpu.vector_store %arg8[%c0_48, %c0_49, %c0_50, %c0_51], %192 {strides = array<i32>} : memref<1x16x16x128xf32, #tpu.memory_space<vmem>>, vector<1x16x16x128xf32>,
    return
  }
  func.func @transform_0(%arg0: i32) -> (i32, i32, i32, i32) {
    %c0_i32 = arith.constant 0 : i32
    %c0_i32_0 = arith.constant 0 : i32
    %c0_i32_1 = arith.constant 0 : i32
    %c0_i32_2 = arith.constant 0 : i32
    return %arg0, %c0_i32, %c0_i32_0, %c0_i32_1 : i32, i32, i32, i32
  }
  func.func @transform_1(%arg0: i32) -> (i32, i32) {
    %c0_i32 = arith.constant 0 : i32
    %c0_i32_0 = arith.constant 0 : i32
    %c0_i32_1 = arith.constant 0 : i32
    return %c0_i32, %c0_i32_0 : i32, i32
  }
  func.func @transform_2(%arg0: i32) -> (i32, i32) {
    %c0_i32 = arith.constant 0 : i32
    %c0_i32_0 = arith.constant 0 : i32
    %c0_i32_1 = arith.constant 0 : i32
    return %c0_i32, %c0_i32_0 : i32, i32
  }
  func.func @transform_3(%arg0: i32) -> (i32, i32, i32, i32) {
    %c0_i32 = arith.constant 0 : i32
    %c0_i32_0 = arith.constant 0 : i32
    %c0_i32_1 = arith.constant 0 : i32
    %c0_i32_2 = arith.constant 0 : i32
    return %arg0, %c0_i32, %c0_i32_0, %c0_i32_1 : i32, i32, i32, i32
  }
  func.func @transform_4(%arg0: i32) -> (i32, i32) {
    %c0_i32 = arith.constant 0 : i32
    %c0_i32_0 = arith.constant 0 : i32
    %c0_i32_1 = arith.constant 0 : i32
    return %c0_i32, %c0_i32_0 : i32, i32
  }
  func.func @transform_5(%arg0: i32) -> (i32, i32) {
    %c0_i32 = arith.constant 0 : i32
    %c0_i32_0 = arith.constant 0 : i32
    %c0_i32_1 = arith.constant 0 : i32
    return %c0_i32, %c0_i32_0 : i32, i32
  }
  func.func @transform_6(%arg0: i32) -> (i32, i32) {
    %c0_i32 = arith.constant 0 : i32
    %c0_i32_0 = arith.constant 0 : i32
    %c0_i32_1 = arith.constant 0 : i32
    return %c0_i32, %c0_i32_0 : i32, i32
  }
  func.func @transform_7(%arg0: i32) -> (i32, i32, i32, i32) {
    %c0_i32 = arith.constant 0 : i32
    %c0_i32_0 = arith.constant 0 : i32
    %c0_i32_1 = arith.constant 0 : i32
    %c0_i32_2 = arith.constant 0 : i32
    return %arg0, %c0_i32, %c0_i32_0, %c0_i32_1 : i32, i32, i32, i32
  }
}

</mosaic_0001>

<llo_original>
// kernel: tpu_custom_call.1
$region0: #{tpu_custom_call.1}
  #allocation0 [shape = 'u32[]', space=smem, size = 0x4, offset = 0x4, fixed_abs, tag = 'smem constant byte address 0x4 - core index']
  #allocation1 [shape = 'u32[144,128]{1,0:T(1,128)}', space=vmem, size = 0x12000, scoped, tag = 'internal scratch']
  %s0 = inlined_call_operand.hbm [shape: f32[2,18,18,128], index: 0, kind: input, shape index: {}]
  %s1 = inlined_call_operand.hbm [shape: f32[1152,128], index: 1, kind: input, shape index: {}]
  %s2 = inlined_call_operand.hbm [shape: f32[1,128], index: 2, kind: input, shape index: {}]
  %s3 = inlined_call_operand.hbm [shape: f32[2,10,10,128], index: 3, kind: input, shape index: {}]
  %s4 = inlined_call_operand.hbm [shape: f32[1152,128], index: 4, kind: input, shape index: {}]
  %s5 = inlined_call_operand.hbm [shape: f32[1,128], index: 5, kind: input, shape index: {}]
  %s6 = inlined_call_operand.hbm [shape: f32[16,8], index: 6, kind: input, shape index: {}]
  %s7 = inlined_call_operand.hbm [shape: f32[2,16,16,128], index: 7, kind: output, shape index: {}]
  %s8 = sld [smem:[#allocation0]]
  $region89: #{tpu_custom_call.1} parent=0
    _
  %s10 = ssub.s32 1, %s8
  %s11 = scalar_select 0, %s10, %s8
  $region1: #{tpu_custom_call.1} parent=0
    #allocation2 [shape = 'u8[442368]{0}', space=vmem, size = 0x6c000, scoped, tag = 'input window, operand 0']
    #allocation3 [shape = 's32[2]{0}', space=sflag, size = 0x8, scoped, tag = 'scoped memory for tpu_custom_call.1']
    #allocation4 [shape = 's32[2]{0}', space=sflag, size = 0x8, scoped, tag = 'scoped memory for tpu_custom_call.1']
    #allocation5 [shape = 'u8[589824]{0}', space=vmem, size = 0x90000, scoped, tag = 'input window, operand 1, single buffered']
    #allocation6 [shape = 's32[1]{0}', space=sflag, size = 0x4, scoped, tag = 'scoped memory for tpu_custom_call.1']
    #allocation7 [shape = 'u8[512]{0}', space=vmem, size = 0x400, scoped, tag = 'input window, operand 2, single buffered']
    #allocation8 [shape = 'u8[163840]{0}', space=vmem, size = 0x28000, scoped, tag = 'input window, operand 3']
    #allocation9 [shape = 's32[2]{0}', space=sflag, size = 0x8, scoped, tag = 'scoped memory for tpu_custom_call.1']
    #allocation10 [shape = 'u8[589824]{0}', space=vmem, size = 0x90000, scoped, tag = 'input window, operand 4, single buffered']
    #allocation11 [shape = 'u8[512]{0}', space=vmem, size = 0x400, scoped, tag = 'input window, operand 5, single buffered']
    #allocation12 [shape = 's32[1]{0}', space=sflag, size = 0x4, scoped, tag = 'scoped memory for tpu_custom_call.1']
    #allocation13 [shape = 'u8[8192]{0}', space=vmem, size = 0x2000, scoped, tag = 'input window, operand 6, single buffered']
    #allocation14 [shape = 'u8[262144]{0}', space=vmem, size = 0x40000, scoped, tag = 'output window, operand 0']
    %12 = vsyncpa [#allocation3], 0
    %s13 = scalar_lea.sflag [#allocation3], 1
    %14 = vsyncpa %s13, 0
    %15 = vsyncpa [#allocation6], 0
    %16 = vsyncpa [#allocation9], 0
    %s17 = scalar_lea.sflag [#allocation9], 1
    %18 = vsyncpa %s17, 0
    %19 = vsyncpa [#allocation12], 0
    %20 = vsyncpa [#allocation4], 0
    %s21 = scalar_lea.sflag [#allocation4], 1
    %22 = vsyncpa %s21, 0
    loop: start=0, step=1, limit=4
    $region2: #{tpu_custom_call.1} parent=1 // loop_pre_header
      _
    $region3: #{tpu_custom_call.1} parent=1 // loop_header
      %s24 = sphi 0, %s28
      %p25 = scmp.ge.s32.totalorder %s24, 4
      %s34 = sphi 0, %s36
      %s37 = sphi 0, %s34
      %s38 = sphi 0, %s37
      %s54 = sphi 0, %s38
      %s58 = sphi 0, %s58
      %s60 = sphi 0, %s58
      %s61 = sphi 0, %s60
      %s75 = sphi 0, %s61
      %s79 = sphi 0, %s79
      %s81 = sphi 0, %s79
      %s82 = sphi 0, %s81
      %s96 = sphi 0, %s82
      %s102 = sphi 0, %s104
      %s105 = sphi 0, %s102
      %s106 = sphi 0, %s105
      %s122 = sphi 0, %s106
      %s126 = sphi 0, %s126
      %s128 = sphi 0, %s126
      %s129 = sphi 0, %s128
      %s143 = sphi 0, %s129
      %s147 = sphi 0, %s147
      %s149 = sphi 0, %s147
      %s150 = sphi 0, %s149
      %s164 = sphi 0, %s150
      %s168 = sphi 0, %s168
      %s170 = sphi 0, %s168
      %s171 = sphi 0, %s170
      %s185 = sphi 0, %s171
      %s191 = sphi 0, %s193
      %s194 = sphi 0, %s191
      %s195 = sphi 0, %s194
      %s211 = sphi 0, %s195
    $region4: #{tpu_custom_call.1} parent=1 // loop_header_branch
      %27 = sbr.rel (%p25) target = $region8
    $region5: #{tpu_custom_call.1} parent=1 // loop_body
      %s29 = ssub.s32 %s24, 1
      %s30 = ssub.s32 %s24, 2
      %s31 = sadd.s32 %s24, 1
      %s32 = ssub.s32 %s24, %s31
      %p33 = scmp.eq.s32.totalorder %s32, 0
      %s35 = sadd.s32 %s34, 1
      %s36 = scalar_select %p33, %s34, %s35
      %p39 = pneg %p33
      %p40 = scmp.eq.s32.totalorder %s24, 1
      %p41 = por %p39, %p40
      %p42 = scmp.ne.s32.totalorder %s34, %s37
      %p43 = scmp.eq.s32.totalorder %s24, 0
      %p44 = por %p42, %p43
      %p45 = scmp.ne.s32.totalorder %s34, %s37
      %p46 = scmp.eq.s32.totalorder %s29, 1
      %p47 = por %p45, %p46
      %p48 = scmp.ne.s32.totalorder %s37, %s38
      %p49 = scmp.eq.s32.totalorder %s29, 0
      %p50 = por %p48, %p49
      %p51 = scmp.ne.s32.totalorder %s37, %s38
      %p52 = scmp.eq.s32.totalorder %s30, 1
      %p53 = por %p51, %p52
      %p55 = scmp.ne.s32.totalorder %s38, %s54
      %p56 = scmp.eq.s32.totalorder %s30, 0
      %p57 = por %p55, %p56
      %s59 = sadd.s32 %s58, 1
      %p62 = scmp.eq.s32.totalorder %s24, 1
      %p63 = scmp.ne.s32.totalorder %s58, %s60
      %p64 = scmp.eq.s32.totalorder %s24, 0
      %p65 = por %p63, %p64
      %p66 = scmp.ne.s32.totalorder %s58, %s60
      %p67 = scmp.eq.s32.totalorder %s29, 1
      %p68 = por %p66, %p67
      %p69 = scmp.ne.s32.totalorder %s60, %s61
      %p70 = scmp.eq.s32.totalorder %s29, 0
      %p71 = por %p69, %p70
      %p72 = scmp.ne.s32.totalorder %s60, %s61
      %p73 = scmp.eq.s32.totalorder %s30, 1
      %p74 = por %p72, %p73
      %p76 = scmp.ne.s32.totalorder %s61, %s75
      %p77 = scmp.eq.s32.totalorder %s30, 0
      %p78 = por %p76, %p77
      %s80 = sadd.s32 %s79, 1
      %p83 = scmp.eq.s32.totalorder %s24, 1
      %p84 = scmp.ne.s32.totalorder %s79, %s81
      %p85 = scmp.eq.s32.totalorder %s24, 0
      %p86 = por %p84, %p85
      %p87 = scmp.ne.s32.totalorder %s79, %s81
      %p88 = scmp.eq.s32.totalorder %s29, 1
      %p89 = por %p87, %p88
      %p90 = scmp.ne.s32.totalorder %s81, %s82
      %p91 = scmp.eq.s32.totalorder %s29, 0
      %p92 = por %p90, %p91
      %p93 = scmp.ne.s32.totalorder %s81, %s82
      %p94 = scmp.eq.s32.totalorder %s30, 1
      %p95 = por %p93, %p94
      %p97 = scmp.ne.s32.totalorder %s82, %s96
      %p98 = scmp.eq.s32.totalorder %s30, 0
      %p99 = por %p97, %p98
      %s100 = ssub.s32 %s24, %s31
      %p101 = scmp.eq.s32.totalorder %s100, 0
      %s103 = sadd.s32 %s102, 1
      %s104 = scalar_select %p101, %s102, %s103
      %p107 = pneg %p101
      %p108 = scmp.eq.s32.totalorder %s24, 1
      %p109 = por %p107, %p108
      %p110 = scmp.ne.s32.totalorder %s102, %s105
      %p111 = scmp.eq.s32.totalorder %s24, 0
      %p112 = por %p110, %p111
      %p113 = scmp.ne.s32.totalorder %s102, %s105
      %p114 = scmp.eq.s32.totalorder %s29, 1
      %p115 = por %p113, %p114
      %p116 = scmp.ne.s32.totalorder %s105, %s106
      %p117 = scmp.eq.s32.totalorder %s29, 0
      %p118 = por %p116, %p117
      %p119 = scmp.ne.s32.totalorder %s105, %s106
      %p120 = scmp.eq.s32.totalorder %s30, 1
      %p121 = por %p119, %p120
      %p123 = scmp.ne.s32.totalorder %s106, %s122
      %p124 = scmp.eq.s32.totalorder %s30, 0
      %p125 = por %p123, %p124
      %s127 = sadd.s32 %s126, 1
      %p130 = scmp.eq.s32.totalorder %s24, 1
      %p131 = scmp.ne.s32.totalorder %s126, %s128
      %p132 = scmp.eq.s32.totalorder %s24, 0
      %p133 = por %p131, %p132
      %p134 = scmp.ne.s32.totalorder %s126, %s128
      %p135 = scmp.eq.s32.totalorder %s29, 1
      %p136 = por %p134, %p135
      %p137 = scmp.ne.s32.totalorder %s128, %s129
      %p138 = scmp.eq.s32.totalorder %s29, 0
      %p139 = por %p137, %p138
      %p140 = scmp.ne.s32.totalorder %s128, %s129
      %p141 = scmp.eq.s32.totalorder %s30, 1
      %p142 = por %p140, %p141
      %p144 = scmp.ne.s32.totalorder %s129, %s143
      %p145 = scmp.eq.s32.totalorder %s30, 0
      %p146 = por %p144, %p145
      %s148 = sadd.s32 %s147, 1
      %p151 = scmp.eq.s32.totalorder %s24, 1
      %p152 = scmp.ne.s32.totalorder %s147, %s149
      %p153 = scmp.eq.s32.totalorder %s24, 0
      %p154 = por %p152, %p153
      %p155 = scmp.ne.s32.totalorder %s147, %s149
      %p156 = scmp.eq.s32.totalorder %s29, 1
      %p157 = por %p155, %p156
      %p158 = scmp.ne.s32.totalorder %s149, %s150
      %p159 = scmp.eq.s32.totalorder %s29, 0
      %p160 = por %p158, %p159
      %p161 = scmp.ne.s32.totalorder %s149, %s150
      %p162 = scmp.eq.s32.totalorder %s30, 1
      %p163 = por %p161, %p162
      %p165 = scmp.ne.s32.totalorder %s150, %s164
      %p166 = scmp.eq.s32.totalorder %s30, 0
      %p167 = por %p165, %p166
      %s169 = sadd.s32 %s168, 1
      %p172 = scmp.eq.s32.totalorder %s24, 1
      %p173 = scmp.ne.s32.totalorder %s168, %s170
      %p174 = scmp.eq.s32.totalorder %s24, 0
      %p175 = por %p173, %p174
      %p176 = scmp.ne.s32.totalorder %s168, %s170
      %p177 = scmp.eq.s32.totalorder %s29, 1
      %p178 = por %p176, %p177
      %p179 = scmp.ne.s32.totalorder %s170, %s171
      %p180 = scmp.eq.s32.totalorder %s29, 0
      %p181 = por %p179, %p180
      %p182 = scmp.ne.s32.totalorder %s170, %s171
      %p183 = scmp.eq.s32.totalorder %s30, 1
      %p184 = por %p182, %p183
      %p186 = scmp.ne.s32.totalorder %s171, %s185
      %p187 = scmp.eq.s32.totalorder %s30, 0
      %p188 = por %p186, %p187
      %s189 = ssub.s32 %s24, %s31
      %p190 = scmp.eq.s32.totalorder %s189, 0
      %s192 = sadd.s32 %s191, 1
      %s193 = scalar_select %p190, %s191, %s192
      %p196 = pneg %p190
      %p197 = scmp.eq.s32.totalorder %s24, 1
      %p198 = por %p196, %p197
      %p199 = scmp.ne.s32.totalorder %s191, %s194
      %p200 = scmp.eq.s32.totalorder %s24, 0
      %p201 = por %p199, %p200
      %p202 = scmp.ne.s32.totalorder %s191, %s194
      %p203 = scmp.eq.s32.totalorder %s29, 1
      %p204 = por %p202, %p203
      %p205 = scmp.ne.s32.totalorder %s194, %s195
      %p206 = scmp.eq.s32.totalorder %s29, 0
      %p207 = por %p205, %p206
      %p208 = scmp.ne.s32.totalorder %s194, %s195
      %p209 = scmp.eq.s32.totalorder %s30, 1
      %p210 = por %p208, %p209
      %p212 = scmp.ne.s32.totalorder %s195, %s211
      %p213 = scmp.eq.s32.totalorder %s30, 0
      %p214 = por %p212, %p213
      %p215 = scmp.le.s32.totalorder 1, %s24
      %p216 = scmp.lt.s32.totalorder %s24, 3
      %p217 = pnand %p215, %p216
      %p218 = pneg %p217
      // Predicated region
      $region9: #{tpu_custom_call.1} parent=5 // pred_check
        _
      $region10: #{tpu_custom_call.1} parent=5 // pred_check_branch
        %220 = sbr.rel (%p217) target = $region12
      $region11: #{tpu_custom_call.1} parent=5 // pred_region
        %s221 = ssub.s32 %s24, 1
        // Predicated region
        $region13: #{tpu_custom_call.1} parent=11 // pred_check
          %p222 = pneg %p71
        $region14: #{tpu_custom_call.1} parent=11 // pred_check_branch
          %224 = sbr.rel (%p222) target = $region16
        $region15: #{tpu_custom_call.1} parent=11 // pred_region
          %s226 = ssub.s32 18432, 18432
          %227 = vsyncadd [#allocation6], %s226
          %s228 = sshll.u32 [#allocation5], 4
          %s229 = int_to_ptr.vmem [resolvable:$true] %s228
          %234 = dma.hbm_to_vmem [thread:$0]  %s1, 18432, %s229, [#allocation6], 128, 128, 8
        $region16: #{tpu_custom_call.1} parent=11 // pred_fallthru
          _
        // Predicated region
        $region17: #{tpu_custom_call.1} parent=11 // pred_check
          %p235 = pneg %p92
        $region18: #{tpu_custom_call.1} parent=11 // pred_check_branch
          %237 = sbr.rel (%p235) target = $region20
        $region19: #{tpu_custom_call.1} parent=11 // pred_region
          %s239 = ssub.s32 16, 16
          %240 = vsyncadd [#allocation6], %s239
          %s242 = sshll.u32 [#allocation7], 4
          %s243 = int_to_ptr.vmem [resolvable:$true] %s242
          %245 = dma.hbm_to_vmem [thread:$0]  %s2, 16, %s243, [#allocation6]
        $region20: #{tpu_custom_call.1} parent=11 // pred_fallthru
          _
        // Predicated region
        $region21: #{tpu_custom_call.1} parent=11 // pred_check
          %p246 = pneg %p139
        $region22: #{tpu_custom_call.1} parent=11 // pred_check_branch
          %248 = sbr.rel (%p246) target = $region24
        $region23: #{tpu_custom_call.1} parent=11 // pred_region
          %s250 = ssub.s32 18432, 18432
          %251 = vsyncadd [#allocation9], %s250
          %s252 = sshll.u32 [#allocation10], 4
          %s253 = int_to_ptr.vmem [resolvable:$true] %s252
          %258 = dma.hbm_to_vmem [thread:$0]  %s4, 18432, %s253, [#allocation9], 128, 128, 8
        $region24: #{tpu_custom_call.1} parent=11 // pred_fallthru
          _
        // Predicated region
        $region25: #{tpu_custom_call.1} parent=11 // pred_check
          %p259 = pneg %p160
        $region26: #{tpu_custom_call.1} parent=11 // pred_check_branch
          %261 = sbr.rel (%p259) target = $region28
        $region27: #{tpu_custom_call.1} parent=11 // pred_region
          %s263 = ssub.s32 16, 16
          %264 = vsyncadd [#allocation12], %s263
          %s266 = sshll.u32 [#allocation11], 4
          %s267 = int_to_ptr.vmem [resolvable:$true] %s266
          %269 = dma.hbm_to_vmem [thread:$0]  %s5, 16, %s267, [#allocation12]
        $region28: #{tpu_custom_call.1} parent=11 // pred_fallthru
          _
        // Predicated region
        $region29: #{tpu_custom_call.1} parent=11 // pred_check
          %p270 = pneg %p181
        $region30: #{tpu_custom_call.1} parent=11 // pred_check_branch
          %272 = sbr.rel (%p270) target = $region32
        $region31: #{tpu_custom_call.1} parent=11 // pred_region
          %s274 = ssub.s32 256, 256
          %275 = vsyncadd [#allocation12], %s274
          %s276 = sshll.u32 [#allocation13], 4
          %s277 = int_to_ptr.vmem [resolvable:$true] %s276
          %282 = dma.hbm_to_vmem [thread:$0]  %s6, 256, %s277, [#allocation12], 128, 128, 8
        $region32: #{tpu_custom_call.1} parent=11 // pred_fallthru
          _
      $region12: #{tpu_custom_call.1} parent=5 // pred_fallthru
        _
      %p283 = scmp.lt.s32.totalorder %s24, 2
      // Predicated region
      $region33: #{tpu_custom_call.1} parent=5 // pred_check
        %p284 = pneg %p283
      $region34: #{tpu_custom_call.1} parent=5 // pred_check_branch
        %286 = sbr.rel (%p284) target = $region36
      $region35: #{tpu_custom_call.1} parent=5 // pred_region
        // Predicated region
        $region37: #{tpu_custom_call.1} parent=35 // pred_check
          %p287 = pneg %p44
        $region38: #{tpu_custom_call.1} parent=35 // pred_check_branch
          %289 = sbr.rel (%p287) target = $region40
        $region39: #{tpu_custom_call.1} parent=35 // pred_region
          %s290 = sand.u32 %s34, 1
          %s291 = scalar_lea.sflag [#allocation3], %s290
          %s292 = sand.u32 %s34, 1
          %s293 = smul.addr %s292, 432
          %s294 = scalar_lea.vmem [#allocation2], %s293
          %s296 = ssub.s32 6912, 6912
          %297 = vsyncadd %s291, %s296
          %s298 = smul.addr %s24, 54
          %s299 = smul.addr %s298, 128
          %s300 = scalar_lea.hbm %s0, %s299
          %s301 = sshll.u32 %s294, 4
          %s302 = int_to_ptr.vmem [resolvable:$true] %s301
          %307 = dma.hbm_to_vmem [thread:$0]  %s300, 6912, %s302, %s291, 128, 128, 8
        $region40: #{tpu_custom_call.1} parent=35 // pred_fallthru
          _
        // Predicated region
        $region41: #{tpu_custom_call.1} parent=35 // pred_check
          %p308 = pneg %p112
        $region42: #{tpu_custom_call.1} parent=35 // pred_check_branch
          %310 = sbr.rel (%p308) target = $region44
        $region43: #{tpu_custom_call.1} parent=35 // pred_region
          %s311 = sand.u32 %s24, 1
          %s312 = scalar_lea.sflag [#allocation9], %s311
          %s313 = sand.u32 %s102, 1
          %s314 = smul.addr %s313, 160
          %s315 = scalar_lea.vmem [#allocation8], %s314
          %s317 = ssub.s32 2560, 2560
          %318 = vsyncadd %s312, %s317
          %s319 = smul.addr %s24, 20
          %s320 = smul.addr %s319, 128
          %s321 = scalar_lea.hbm %s3, %s320
          %s322 = sshll.u32 %s315, 4
          %s323 = int_to_ptr.vmem [resolvable:$true] %s322
          %328 = dma.hbm_to_vmem [thread:$0]  %s321, 2560, %s323, %s312, 128, 128, 8
        $region44: #{tpu_custom_call.1} parent=35 // pred_fallthru
          _
      $region36: #{tpu_custom_call.1} parent=5 // pred_fallthru
        _
      %p329 = scmp.le.s32.totalorder 1, %s24
      %p330 = scmp.lt.s32.totalorder %s24, 3
      %p331 = pnand %p329, %p330
      %p332 = pneg %p331
      // Predicated region
      $region45: #{tpu_custom_call.1} parent=5 // pred_check
        _
      $region46: #{tpu_custom_call.1} parent=5 // pred_check_branch
        %334 = sbr.rel (%p331) target = $region48
      $region47: #{tpu_custom_call.1} parent=5 // pred_region
        %s335 = ssub.s32 %s24, 1
        %s336 = sand.u32 %s37, 1
        %s337 = scalar_lea.sflag [#allocation3], %s336
        %s338 = sand.u32 %s37, 1
        %s339 = smul.addr %s338, 432
        %s340 = scalar_lea.vmem [#allocation2], %s339
        // Predicated region
        $region49: #{tpu_custom_call.1} parent=47 // pred_check
          %p341 = pneg %p50
        $region50: #{tpu_custom_call.1} parent=47 // pred_check_branch
          %343 = sbr.rel (%p341) target = $region52
        $region51: #{tpu_custom_call.1} parent=47 // pred_region
          %344 = dma.done %s337, 6912
        $region52: #{tpu_custom_call.1} parent=47 // pred_fallthru
          _
        // Predicated region
        $region53: #{tpu_custom_call.1} parent=47 // pred_check
          %p345 = pneg %p71
        $region54: #{tpu_custom_call.1} parent=47 // pred_check_branch
          %347 = sbr.rel (%p345) target = $region56
        $region55: #{tpu_custom_call.1} parent=47 // pred_region
          %348 = dma.done [#allocation6], 18432
        $region56: #{tpu_custom_call.1} parent=47 // pred_fallthru
          _
        // Predicated region
        $region57: #{tpu_custom_call.1} parent=47 // pred_check
          %p349 = pneg %p92
        $region58: #{tpu_custom_call.1} parent=47 // pred_check_branch
          %351 = sbr.rel (%p349) target = $region60
        $region59: #{tpu_custom_call.1} parent=47 // pred_region
          %352 = dma.done [#allocation6], 16
        $region60: #{tpu_custom_call.1} parent=47 // pred_fallthru
          _
        %s353 = sand.u32 %s29, 1
        %s354 = scalar_lea.sflag [#allocation9], %s353
        %s355 = sand.u32 %s105, 1
        %s356 = smul.addr %s355, 160
        %s357 = scalar_lea.vmem [#allocation8], %s356
        // Predicated region
        $region61: #{tpu_custom_call.1} parent=47 // pred_check
          %p358 = pneg %p118
        $region62: #{tpu_custom_call.1} parent=47 // pred_check_branch
          %360 = sbr.rel (%p358) target = $region64
        $region63: #{tpu_custom_call.1} parent=47 // pred_region
          %361 = dma.done %s354, 2560
        $region64: #{tpu_custom_call.1} parent=47 // pred_fallthru
          _
        // Predicated region
        $region65: #{tpu_custom_call.1} parent=47 // pred_check
          %p362 = pneg %p139
        $region66: #{tpu_custom_call.1} parent=47 // pred_check_branch
          %364 = sbr.rel (%p362) target = $region68
        $region67: #{tpu_custom_call.1} parent=47 // pred_region
          %365 = dma.done [#allocation9], 18432
        $region68: #{tpu_custom_call.1} parent=47 // pred_fallthru
          _
        // Predicated region
        $region69: #{tpu_custom_call.1} parent=47 // pred_check
          %p366 = pneg %p160
        $region70: #{tpu_custom_call.1} parent=47 // pred_check_branch
          %368 = sbr.rel (%p366) target = $region72
        $region71: #{tpu_custom_call.1} parent=47 // pred_region
          %369 = dma.done [#allocation12], 16
        $region72: #{tpu_custom_call.1} parent=47 // pred_fallthru
          _
        // Predicated region
        $region73: #{tpu_custom_call.1} parent=47 // pred_check
          %p370 = pneg %p181
        $region74: #{tpu_custom_call.1} parent=47 // pred_check_branch
          %372 = sbr.rel (%p370) target = $region76
        $region75: #{tpu_custom_call.1} parent=47 // pred_region
          %373 = dma.done [#allocation12], 256
        $region76: #{tpu_custom_call.1} parent=47 // pred_fallthru
          _
        %s374 = sand.u32 %s37, 1
        %s375 = scalar_lea.sflag [#allocation3], %s374
        %s376 = sand.u32 %s37, 1
        %s377 = smul.addr %s376, 432
        %s378 = scalar_lea.vmem [#allocation2], %s377
        %p379 = pneg %p50
        %p380 = pneg %p47
        %p381 = pneg %p71
        %p382 = pneg %p68
        %p383 = pneg %p92
        %p384 = pneg %p89
        %s385 = sand.u32 %s29, 1
        %s386 = scalar_lea.sflag [#allocation9], %s385
        %s387 = sand.u32 %s105, 1
        %s388 = smul.addr %s387, 160
        %s389 = scalar_lea.vmem [#allocation8], %s388
        %p390 = pneg %p118
        %p391 = pneg %p115
        %p392 = pneg %p139
        %p393 = pneg %p136
        %p394 = pneg %p160
        %p395 = pneg %p157
        %p396 = pneg %p181
        %p397 = pneg %p178
        %p398 = pneg %p207
        %p399 = pneg %p204
        %s400 = sand.u32 %s194, 1
        %s401 = scalar_lea.sflag [#allocation4], %s400
        %s402 = sand.u32 %s194, 1
        %s403 = smul.addr %s402, 256
        %s404 = scalar_lea.vmem [#allocation14], %s403
        %v405 = vld [vmem:[%s340] sm:$0xff]
        %v406 = vld [vmem:[%s340 + $0x8] sm:$0xff]
        %v407 = vld [vmem:[%s340 + $0x10] sm:$0x3]
        %v408 = vld [vmem:[%s340 + $0x18] sm:$0xff]
        %v409 = vld [vmem:[%s340 + $0x20] sm:$0xff]
        %v410 = vld [vmem:[%s340 + $0x28] sm:$0x3]
        %v411 = vld [vmem:[%s340 + $0x30] sm:$0xff]
        %v412 = vld [vmem:[%s340 + $0x38] sm:$0xff]
        %v413 = vld [vmem:[%s340 + $0x40] sm:$0x3]
        %v414 = vld [vmem:[%s340 + $0x48] sm:$0xff]
        %v415 = vld [vmem:[%s340 + $0x50] sm:$0xff]
        %v416 = vld [vmem:[%s340 + $0x58] sm:$0x3]
        %v417 = vld [vmem:[%s340 + $0x60] sm:$0xff]
        %v418 = vld [vmem:[%s340 + $0x68] sm:$0xff]
        %v419 = vld [vmem:[%s340 + $0x70] sm:$0x3]
        %v420 = vld [vmem:[%s340 + $0x78] sm:$0xff]
        %v421 = vld [vmem:[%s340 + $0x80] sm:$0xff]
        %v422 = vld [vmem:[%s340 + $0x88] sm:$0x3]
        %v423 = vld [vmem:[%s340 + $0x90] sm:$0xff]
        %v424 = vld [vmem:[%s340 + $0x98] sm:$0xff]
        %v425 = vld [vmem:[%s340 + $0xa0] sm:$0x3]
        %v426 = vld [vmem:[%s340 + $0xa8] sm:$0xff]
        %v427 = vld [vmem:[%s340 + $0xb0] sm:$0xff]
        %v428 = vld [vmem:[%s340 + $0xb8] sm:$0x3]
        %v429 = vld [vmem:[%s340 + $0xc0] sm:$0xff]
        %v430 = vld [vmem:[%s340 + $0xc8] sm:$0xff]
        %v431 = vld [vmem:[%s340 + $0xd0] sm:$0x3]
        %v432 = vld [vmem:[%s340 + $0xd8] sm:$0xff]
        %v433 = vld [vmem:[%s340 + $0xe0] sm:$0xff]
        %v434 = vld [vmem:[%s340 + $0xe8] sm:$0x3]
        %v435 = vld [vmem:[%s340 + $0xf0] sm:$0xff]
        %v436 = vld [vmem:[%s340 + $0xf8] sm:$0xff]
        %v437 = vld [vmem:[%s340 + $0x100] sm:$0x3]
        %v438 = vld [vmem:[%s340 + $0x108] sm:$0xff]
        %v439 = vld [vmem:[%s340 + $0x110] sm:$0xff]
        %v440 = vld [vmem:[%s340 + $0x118] sm:$0x3]
        %v441 = vld [vmem:[%s340 + $0x120] sm:$0xff]
        %v442 = vld [vmem:[%s340 + $0x128] sm:$0xff]
        %v443 = vld [vmem:[%s340 + $0x130] sm:$0x3]
        %v444 = vld [vmem:[%s340 + $0x138] sm:$0xff]
        %v445 = vld [vmem:[%s340 + $0x140] sm:$0xff]
        %v446 = vld [vmem:[%s340 + $0x148] sm:$0x3]
        %v447 = vld [vmem:[%s340 + $0x150] sm:$0xff]
        %v448 = vld [vmem:[%s340 + $0x158] sm:$0xff]
        %v449 = vld [vmem:[%s340 + $0x160] sm:$0x3]
        %v450 = vld [vmem:[%s340 + $0x168] sm:$0xff]
        %v451 = vld [vmem:[%s340 + $0x170] sm:$0xff]
        %v452 = vld [vmem:[%s340 + $0x178] sm:$0x3]
        %v453 = vld [vmem:[%s340 + $0x180] sm:$0xff]
        %v454 = vld [vmem:[%s340 + $0x188] sm:$0xff]
        %v455 = vld [vmem:[%s340 + $0x190] sm:$0x3]
        %v456 = vld [vmem:[%s340 + $0x198] sm:$0xff]
        %v457 = vld [vmem:[%s340 + $0x1a0] sm:$0xff]
        %v458 = vld [vmem:[%s340 + $0x1a8] sm:$0x3]
        %vm507 = vcmask 1046528
        %v508 = vrot.slane %v405, 1
        %v509 = vrot.slane %v406, 1
        %v510 = vsel %vm507, %v508, %v509
        %v511 = vrot.slane %v407, 1
        %v512 = vsel %vm507, %v509, %v511
        %v513 = vrot.slane %v408, 1
        %v514 = vrot.slane %v409, 1
        %v515 = vsel %vm507, %v513, %v514
        %v516 = vrot.slane %v410, 1
        %v517 = vsel %vm507, %v514, %v516
        %v518 = vrot.slane %v411, 1
        %v519 = vrot.slane %v412, 1
        %v520 = vsel %vm507, %v518, %v519
        %v521 = vrot.slane %v413, 1
        %v522 = vsel %vm507, %v519, %v521
        %v523 = vrot.slane %v414, 1
        %v524 = vrot.slane %v415, 1
        %v525 = vsel %vm507, %v523, %v524
        %v526 = vrot.slane %v416, 1
        %v527 = vsel %vm507, %v524, %v526
        %v528 = vrot.slane %v417, 1
        %v529 = vrot.slane %v418, 1
        %v530 = vsel %vm507, %v528, %v529
        %v531 = vrot.slane %v419, 1
        %v532 = vsel %vm507, %v529, %v531
        %v533 = vrot.slane %v420, 1
        %v534 = vrot.slane %v421, 1
        %v535 = vsel %vm507, %v533, %v534
        %v536 = vrot.slane %v422, 1
        %v537 = vsel %vm507, %v534, %v536
        %v538 = vrot.slane %v423, 1
        %v539 = vrot.slane %v424, 1
        %v540 = vsel %vm507, %v538, %v539
        %v541 = vrot.slane %v425, 1
        %v542 = vsel %vm507, %v539, %v541
        %v543 = vrot.slane %v426, 1
        %v544 = vrot.slane %v427, 1
        %v545 = vsel %vm507, %v543, %v544
        %v546 = vrot.slane %v428, 1
        %v547 = vsel %vm507, %v544, %v546
        %v548 = vrot.slane %v429, 1
        %v549 = vrot.slane %v430, 1
        %v550 = vsel %vm507, %v548, %v549
        %v551 = vrot.slane %v431, 1
        %v552 = vsel %vm507, %v549, %v551
        %v553 = vrot.slane %v432, 1
        %v554 = vrot.slane %v433, 1
        %v555 = vsel %vm507, %v553, %v554
        %v556 = vrot.slane %v434, 1
        %v557 = vsel %vm507, %v554, %v556
        %v558 = vrot.slane %v435, 1
        %v559 = vrot.slane %v436, 1
        %v560 = vsel %vm507, %v558, %v559
        %v561 = vrot.slane %v437, 1
        %v562 = vsel %vm507, %v559, %v561
        %v563 = vrot.slane %v438, 1
        %v564 = vrot.slane %v439, 1
        %v565 = vsel %vm507, %v563, %v564
        %v566 = vrot.slane %v440, 1
        %v567 = vsel %vm507, %v564, %v566
        %v568 = vrot.slane %v441, 1
        %v569 = vrot.slane %v442, 1
        %v570 = vsel %vm507, %v568, %v569
        %v571 = vrot.slane %v443, 1
        %v572 = vsel %vm507, %v569, %v571
        %v573 = vrot.slane %v444, 1
        %v574 = vrot.slane %v445, 1
        %v575 = vsel %vm507, %v573, %v574
        %v576 = vrot.slane %v446, 1
        %v577 = vsel %vm507, %v574, %v576
        %v578 = vrot.slane %v447, 1
        %v579 = vrot.slane %v448, 1
        %v580 = vsel %vm507, %v578, %v579
        %v581 = vrot.slane %v449, 1
        %v582 = vsel %vm507, %v579, %v581
        %v583 = vrot.slane %v450, 1
        %v584 = vrot.slane %v451, 1
        %v585 = vsel %vm507, %v583, %v584
        %v586 = vrot.slane %v452, 1
        %v587 = vsel %vm507, %v584, %v586
        %vm620 = vcmask 1045504
        %v621 = vrot.slane %v405, 2
        %v622 = vrot.slane %v406, 2
        %v623 = vsel %vm620, %v621, %v622
        %v624 = vrot.slane %v407, 2
        %v625 = vsel %vm620, %v622, %v624
        %v626 = vrot.slane %v408, 2
        %v627 = vrot.slane %v409, 2
        %v628 = vsel %vm620, %v626, %v627
        %v629 = vrot.slane %v410, 2
        %v630 = vsel %vm620, %v627, %v629
        %v631 = vrot.slane %v411, 2
        %v632 = vrot.slane %v412, 2
        %v633 = vsel %vm620, %v631, %v632
        %v634 = vrot.slane %v413, 2
        %v635 = vsel %vm620, %v632, %v634
        %v636 = vrot.slane %v414, 2
        %v637 = vrot.slane %v415, 2
        %v638 = vsel %vm620, %v636, %v637
        %v639 = vrot.slane %v416, 2
        %v640 = vsel %vm620, %v637, %v639
        %v641 = vrot.slane %v417, 2
        %v642 = vrot.slane %v418, 2
        %v643 = vsel %vm620, %v641, %v642
        %v644 = vrot.slane %v419, 2
        %v645 = vsel %vm620, %v642, %v644
        %v646 = vrot.slane %v420, 2
        %v647 = vrot.slane %v421, 2
        %v648 = vsel %vm620, %v646, %v647
        %v649 = vrot.slane %v422, 2
        %v650 = vsel %vm620, %v647, %v649
        %v651 = vrot.slane %v423, 2
        %v652 = vrot.slane %v424, 2
        %v653 = vsel %vm620, %v651, %v652
        %v654 = vrot.slane %v425, 2
        %v655 = vsel %vm620, %v652, %v654
        %v656 = vrot.slane %v426, 2
        %v657 = vrot.slane %v427, 2
        %v658 = vsel %vm620, %v656, %v657
        %v659 = vrot.slane %v428, 2
        %v660 = vsel %vm620, %v657, %v659
        %v661 = vrot.slane %v429, 2
        %v662 = vrot.slane %v430, 2
        %v663 = vsel %vm620, %v661, %v662
        %v664 = vrot.slane %v431, 2
        %v665 = vsel %vm620, %v662, %v664
        %v666 = vrot.slane %v432, 2
        %v667 = vrot.slane %v433, 2
        %v668 = vsel %vm620, %v666, %v667
        %v669 = vrot.slane %v434, 2
        %v670 = vsel %vm620, %v667, %v669
        %v671 = vrot.slane %v435, 2
        %v672 = vrot.slane %v436, 2
        %v673 = vsel %vm620, %v671, %v672
        %v674 = vrot.slane %v437, 2
        %v675 = vsel %vm620, %v672, %v674
        %v676 = vrot.slane %v438, 2
        %v677 = vrot.slane %v439, 2
        %v678 = vsel %vm620, %v676, %v677
        %v679 = vrot.slane %v440, 2
        %v680 = vsel %vm620, %v677, %v679
        %v681 = vrot.slane %v441, 2
        %v682 = vrot.slane %v442, 2
        %v683 = vsel %vm620, %v681, %v682
        %v684 = vrot.slane %v443, 2
        %v685 = vsel %vm620, %v682, %v684
        %v686 = vrot.slane %v444, 2
        %v687 = vrot.slane %v445, 2
        %v688 = vsel %vm620, %v686, %v687
        %v689 = vrot.slane %v446, 2
        %v690 = vsel %vm620, %v687, %v689
        %v691 = vrot.slane %v447, 2
        %v692 = vrot.slane %v448, 2
        %v693 = vsel %vm620, %v691, %v692
        %v694 = vrot.slane %v449, 2
        %v695 = vsel %vm620, %v692, %v694
        %v696 = vrot.slane %v450, 2
        %v697 = vrot.slane %v451, 2
        %v698 = vsel %vm620, %v696, %v697
        %v699 = vrot.slane %v452, 2
        %v700 = vsel %vm620, %v697, %v699
        %v736 = vrot.slane %v453, 1
        %v737 = vrot.slane %v454, 1
        %v738 = vsel %vm507, %v736, %v737
        %v739 = vrot.slane %v455, 1
        %v740 = vsel %vm507, %v737, %v739
        %v743 = vrot.slane %v453, 2
        %v744 = vrot.slane %v454, 2
        %v745 = vsel %vm620, %v743, %v744
        %v746 = vrot.slane %v455, 2
        %v747 = vsel %vm620, %v744, %v746
        %v753 = vrot.slane %v456, 1
        %v754 = vrot.slane %v457, 1
        %v755 = vsel %vm507, %v753, %v754
        %v756 = vrot.slane %v458, 1
        %v757 = vsel %vm507, %v754, %v756
        %v760 = vrot.slane %v456, 2
        %v761 = vrot.slane %v457, 2
        %v762 = vsel %vm620, %v760, %v761
        %v763 = vrot.slane %v458, 2
        %v764 = vsel %vm620, %v761, %v763
        %v767 = vld [vmem:[#allocation5] sm:$0xff]
        %v768 = vld [vmem:[#allocation5 + $0x8] sm:$0xff]
        %v769 = vld [vmem:[#allocation5 + $0x10] sm:$0xff]
        %v770 = vld [vmem:[#allocation5 + $0x18] sm:$0xff]
        %v771 = vld [vmem:[#allocation5 + $0x20] sm:$0xff]
        %v772 = vld [vmem:[#allocation5 + $0x28] sm:$0xff]
        %v773 = vld [vmem:[#allocation5 + $0x30] sm:$0xff]
        %v774 = vld [vmem:[#allocation5 + $0x38] sm:$0xff]
        %v775 = vld [vmem:[#allocation5 + $0x40] sm:$0xff]
        %v776 = vld [vmem:[#allocation5 + $0x48] sm:$0xff]
        %v777 = vld [vmem:[#allocation5 + $0x50] sm:$0xff]
        %v778 = vld [vmem:[#allocation5 + $0x58] sm:$0xff]
        %v779 = vld [vmem:[#allocation5 + $0x60] sm:$0xff]
        %v780 = vld [vmem:[#allocation5 + $0x68] sm:$0xff]
        %v781 = vld [vmem:[#allocation5 + $0x70] sm:$0xff]
        %v782 = vld [vmem:[#allocation5 + $0x78] sm:$0xff]
        %v783 = vld [vmem:[#allocation5 + $0x80] sm:$0xff]
        %v784 = vld [vmem:[#allocation5 + $0x88] sm:$0xff]
        %v785 = vld [vmem:[#allocation5 + $0x90] sm:$0xff]
        %v786 = vld [vmem:[#allocation5 + $0x98] sm:$0xff]
        %v787 = vld [vmem:[#allocation5 + $0xa0] sm:$0xff]
        %v788 = vld [vmem:[#allocation5 + $0xa8] sm:$0xff]
        %v789 = vld [vmem:[#allocation5 + $0xb0] sm:$0xff]
        %v790 = vld [vmem:[#allocation5 + $0xb8] sm:$0xff]
        %v791 = vld [vmem:[#allocation5 + $0xc0] sm:$0xff]
        %v792 = vld [vmem:[#allocation5 + $0xc8] sm:$0xff]
        %v793 = vld [vmem:[#allocation5 + $0xd0] sm:$0xff]
        %v794 = vld [vmem:[#allocation5 + $0xd8] sm:$0xff]
        %v795 = vld [vmem:[#allocation5 + $0xe0] sm:$0xff]
        %v796 = vld [vmem:[#allocation5 + $0xe8] sm:$0xff]
        %v797 = vld [vmem:[#allocation5 + $0xf0] sm:$0xff]
        %v798 = vld [vmem:[#allocation5 + $0xf8] sm:$0xff]
        %v799 = vld [vmem:[#allocation5 + $0x100] sm:$0xff]
        %v800 = vld [vmem:[#allocation5 + $0x108] sm:$0xff]
        %v801 = vld [vmem:[#allocation5 + $0x110] sm:$0xff]
        %v802 = vld [vmem:[#allocation5 + $0x118] sm:$0xff]
        %v803 = vld [vmem:[#allocation5 + $0x120] sm:$0xff]
        %v804 = vld [vmem:[#allocation5 + $0x128] sm:$0xff]
        %v805 = vld [vmem:[#allocation5 + $0x130] sm:$0xff]
        %v806 = vld [vmem:[#allocation5 + $0x138] sm:$0xff]
        %v807 = vld [vmem:[#allocation5 + $0x140] sm:$0xff]
        %v808 = vld [vmem:[#allocation5 + $0x148] sm:$0xff]
        %v809 = vld [vmem:[#allocation5 + $0x150] sm:$0xff]
        %v810 = vld [vmem:[#allocation5 + $0x158] sm:$0xff]
        %v811 = vld [vmem:[#allocation5 + $0x160] sm:$0xff]
        %v812 = vld [vmem:[#allocation5 + $0x168] sm:$0xff]
        %v813 = vld [vmem:[#allocation5 + $0x170] sm:$0xff]
        %v814 = vld [vmem:[#allocation5 + $0x178] sm:$0xff]
        %v815 = vld [vmem:[#allocation5 + $0x180] sm:$0xff]
        %v816 = vld [vmem:[#allocation5 + $0x188] sm:$0xff]
        %v817 = vld [vmem:[#allocation5 + $0x190] sm:$0xff]
        %v818 = vld [vmem:[#allocation5 + $0x198] sm:$0xff]
        %v819 = vld [vmem:[#allocation5 + $0x1a0] sm:$0xff]
        %v820 = vld [vmem:[#allocation5 + $0x1a8] sm:$0xff]
        %v821 = vld [vmem:[#allocation5 + $0x1b0] sm:$0xff]
        %v822 = vld [vmem:[#allocation5 + $0x1b8] sm:$0xff]
        %v823 = vld [vmem:[#allocation5 + $0x1c0] sm:$0xff]
        %v824 = vld [vmem:[#allocation5 + $0x1c8] sm:$0xff]
        %v825 = vld [vmem:[#allocation5 + $0x1d0] sm:$0xff]
        %v826 = vld [vmem:[#allocation5 + $0x1d8] sm:$0xff]
        %v827 = vld [vmem:[#allocation5 + $0x1e0] sm:$0xff]
        %v828 = vld [vmem:[#allocation5 + $0x1e8] sm:$0xff]
        %v829 = vld [vmem:[#allocation5 + $0x1f0] sm:$0xff]
        %v830 = vld [vmem:[#allocation5 + $0x1f8] sm:$0xff]
        %v831 = vld [vmem:[#allocation5 + $0x200] sm:$0xff]
        %v832 = vld [vmem:[#allocation5 + $0x208] sm:$0xff]
        %v833 = vld [vmem:[#allocation5 + $0x210] sm:$0xff]
        %v834 = vld [vmem:[#allocation5 + $0x218] sm:$0xff]
        %v835 = vld [vmem:[#allocation5 + $0x220] sm:$0xff]
        %v836 = vld [vmem:[#allocation5 + $0x228] sm:$0xff]
        %v837 = vld [vmem:[#allocation5 + $0x230] sm:$0xff]
        %v838 = vld [vmem:[#allocation5 + $0x238] sm:$0xff]
        %v839 = vld [vmem:[#allocation5 + $0x240] sm:$0xff]
        %v840 = vld [vmem:[#allocation5 + $0x248] sm:$0xff]
        %v841 = vld [vmem:[#allocation5 + $0x250] sm:$0xff]
        %v842 = vld [vmem:[#allocation5 + $0x258] sm:$0xff]
        %v843 = vld [vmem:[#allocation5 + $0x260] sm:$0xff]
        %v844 = vld [vmem:[#allocation5 + $0x268] sm:$0xff]
        %v845 = vld [vmem:[#allocation5 + $0x270] sm:$0xff]
        %v846 = vld [vmem:[#allocation5 + $0x278] sm:$0xff]
        %v847 = vld [vmem:[#allocation5 + $0x280] sm:$0xff]
        %v848 = vld [vmem:[#allocation5 + $0x288] sm:$0xff]
        %v849 = vld [vmem:[#allocation5 + $0x290] sm:$0xff]
        %v850 = vld [vmem:[#allocation5 + $0x298] sm:$0xff]
        %v851 = vld [vmem:[#allocation5 + $0x2a0] sm:$0xff]
        %v852 = vld [vmem:[#allocation5 + $0x2a8] sm:$0xff]
        %v853 = vld [vmem:[#allocation5 + $0x2b0] sm:$0xff]
        %v854 = vld [vmem:[#allocation5 + $0x2b8] sm:$0xff]
        %v855 = vld [vmem:[#allocation5 + $0x2c0] sm:$0xff]
        %v856 = vld [vmem:[#allocation5 + $0x2c8] sm:$0xff]
        %v857 = vld [vmem:[#allocation5 + $0x2d0] sm:$0xff]
        %v858 = vld [vmem:[#allocation5 + $0x2d8] sm:$0xff]
        %v859 = vld [vmem:[#allocation5 + $0x2e0] sm:$0xff]
        %v860 = vld [vmem:[#allocation5 + $0x2e8] sm:$0xff]
        %v861 = vld [vmem:[#allocation5 + $0x2f0] sm:$0xff]
        %v862 = vld [vmem:[#allocation5 + $0x2f8] sm:$0xff]
        %v863 = vld [vmem:[#allocation5 + $0x300] sm:$0xff]
        %v864 = vld [vmem:[#allocation5 + $0x308] sm:$0xff]
        %v865 = vld [vmem:[#allocation5 + $0x310] sm:$0xff]
        %v866 = vld [vmem:[#allocation5 + $0x318] sm:$0xff]
        %v867 = vld [vmem:[#allocation5 + $0x320] sm:$0xff]
        %v868 = vld [vmem:[#allocation5 + $0x328] sm:$0xff]
        %v869 = vld [vmem:[#allocation5 + $0x330] sm:$0xff]
        %v870 = vld [vmem:[#allocation5 + $0x338] sm:$0xff]
        %v871 = vld [vmem:[#allocation5 + $0x340] sm:$0xff]
        %v872 = vld [vmem:[#allocation5 + $0x348] sm:$0xff]
        %v873 = vld [vmem:[#allocation5 + $0x350] sm:$0xff]
        %v874 = vld [vmem:[#allocation5 + $0x358] sm:$0xff]
        %v875 = vld [vmem:[#allocation5 + $0x360] sm:$0xff]
        %v876 = vld [vmem:[#allocation5 + $0x368] sm:$0xff]
        %v877 = vld [vmem:[#allocation5 + $0x370] sm:$0xff]
        %v878 = vld [vmem:[#allocation5 + $0x378] sm:$0xff]
        %v879 = vld [vmem:[#allocation5 + $0x380] sm:$0xff]
        %v880 = vld [vmem:[#allocation5 + $0x388] sm:$0xff]
        %v881 = vld [vmem:[#allocation5 + $0x390] sm:$0xff]
        %v882 = vld [vmem:[#allocation5 + $0x398] sm:$0xff]
        %v883 = vld [vmem:[#allocation5 + $0x3a0] sm:$0xff]
        %v884 = vld [vmem:[#allocation5 + $0x3a8] sm:$0xff]
        %v885 = vld [vmem:[#allocation5 + $0x3b0] sm:$0xff]
        %v886 = vld [vmem:[#allocation5 + $0x3b8] sm:$0xff]
        %v887 = vld [vmem:[#allocation5 + $0x3c0] sm:$0xff]
        %v888 = vld [vmem:[#allocation5 + $0x3c8] sm:$0xff]
        %v889 = vld [vmem:[#allocation5 + $0x3d0] sm:$0xff]
        %v890 = vld [vmem:[#allocation5 + $0x3d8] sm:$0xff]
        %v891 = vld [vmem:[#allocation5 + $0x3e0] sm:$0xff]
        %v892 = vld [vmem:[#allocation5 + $0x3e8] sm:$0xff]
        %v893 = vld [vmem:[#allocation5 + $0x3f0] sm:$0xff]
        %v894 = vld [vmem:[#allocation5 + $0x3f8] sm:$0xff]
        %v895 = vld [vmem:[#allocation5 + $0x400] sm:$0xff]
        %v896 = vld [vmem:[#allocation5 + $0x408] sm:$0xff]
        %v897 = vld [vmem:[#allocation5 + $0x410] sm:$0xff]
        %v898 = vld [vmem:[#allocation5 + $0x418] sm:$0xff]
        %v899 = vld [vmem:[#allocation5 + $0x420] sm:$0xff]
        %v900 = vld [vmem:[#allocation5 + $0x428] sm:$0xff]
        %v901 = vld [vmem:[#allocation5 + $0x430] sm:$0xff]
        %v902 = vld [vmem:[#allocation5 + $0x438] sm:$0xff]
        %v903 = vld [vmem:[#allocation5 + $0x440] sm:$0xff]
        %v904 = vld [vmem:[#allocation5 + $0x448] sm:$0xff]
        %v905 = vld [vmem:[#allocation5 + $0x450] sm:$0xff]
        %v906 = vld [vmem:[#allocation5 + $0x458] sm:$0xff]
        %v907 = vld [vmem:[#allocation5 + $0x460] sm:$0xff]
        %v908 = vld [vmem:[#allocation5 + $0x468] sm:$0xff]
        %v909 = vld [vmem:[#allocation5 + $0x470] sm:$0xff]
        %v910 = vld [vmem:[#allocation5 + $0x478] sm:$0xff]
        %v911 = vld [vmem:[#allocation7] sm:$0x1]
        %v913 = vlaneseq
        %v914 = vshrl.u32 %v913, 7
        %v915 = vsub.s32 0, %v914
        %v916 = vrot.slane %v911, %v915
        %918 = vmatprep.subr.mxu0 0.0
        %919 = vmatpush1.msra.mxu0 %v767
        %920 = vmatprep.subr.mxu0 0.0
        %921 = vmatpush1.msra.mxu0 %v768
        %922 = vmatprep.subr.mxu0 0.0
        %923 = vmatpush1.msra.mxu0 %v769
        %924 = vmatprep.subr.mxu0 0.0
        %925 = vmatpush1.msra.mxu0 %v770
        %926 = vmatprep.subr.mxu0 0.0
        %927 = vmatpush1.msra.mxu0 %v771
        %928 = vmatprep.subr.mxu0 0.0
        %929 = vmatpush1.msra.mxu0 %v772
        %930 = vmatprep.subr.mxu0 0.0
        %931 = vmatpush1.msra.mxu0 %v773
        %932 = vmatprep.subr.mxu0 0.0
        %933 = vmatpush1.msra.mxu0 %v774
        %934 = vmatprep.subr.mxu0 0.0
        %935 = vmatpush1.msra.mxu0 %v775
        %936 = vmatprep.subr.mxu0 0.0
        %937 = vmatpush1.msra.mxu0 %v776
        %938 = vmatprep.subr.mxu0 0.0
        %939 = vmatpush1.msra.mxu0 %v777
        %940 = vmatprep.subr.mxu0 0.0
        %941 = vmatpush1.msra.mxu0 %v778
        %942 = vmatprep.subr.mxu0 0.0
        %943 = vmatpush1.msra.mxu0 %v779
        %944 = vmatprep.subr.mxu0 0.0
        %945 = vmatpush1.msra.mxu0 %v780
        %946 = vmatprep.subr.mxu0 0.0
        %947 = vmatpush1.msra.mxu0 %v781
        %948 = vmatprep.subr.mxu0 0.0
        %949 = vmatpush1.msra.mxu0 %v782
        %950 = vmatprep.subr.mxu0 0.0
        %951 = vmatpush1.msra.mxu0 %v783
        %952 = vmatprep.subr.mxu0 0.0
        %953 = vmatpush1.msra.mxu0 %v784
        %954 = vmatprep.subr.mxu0 0.0
        %955 = vmatpush1.msra.mxu0 %v785
        %956 = vmatprep.subr.mxu0 0.0
        %957 = vmatpush1.msra.mxu0 %v786
        %958 = vmatprep.subr.mxu0 0.0
        %959 = vmatpush1.msra.mxu0 %v787
        %960 = vmatprep.subr.mxu0 0.0
        %961 = vmatpush1.msra.mxu0 %v788
        %962 = vmatprep.subr.mxu0 0.0
        %963 = vmatpush1.msra.mxu0 %v789
        %964 = vmatprep.subr.mxu0 0.0
        %965 = vmatpush1.msra.mxu0 %v790
        %966 = vmatprep.subr.mxu0 0.0
        %967 = vmatpush1.msra.mxu0 %v791
        %968 = vmatprep.subr.mxu0 0.0
        %969 = vmatpush1.msra.mxu0 %v792
        %970 = vmatprep.subr.mxu0 0.0
        %971 = vmatpush1.msra.mxu0 %v793
        %972 = vmatprep.subr.mxu0 0.0
        %973 = vmatpush1.msra.mxu0 %v794
        %974 = vmatprep.subr.mxu0 0.0
        %975 = vmatpush1.msra.mxu0 %v795
        %976 = vmatprep.subr.mxu0 0.0
        %977 = vmatpush1.msra.mxu0 %v796
        %978 = vmatprep.subr.mxu0 0.0
        %979 = vmatpush1.msra.mxu0 %v797
        %980 = vmatprep.subr.mxu0 0.0
        %981 = vmatpush1.msra.mxu0 %v798
        %982 = vmatprep.mubr.f32.mxu0 %v510
        %983 = vmatmul.mubr.f32.gmra.mrb[0].mxu0 %v405
        %v984 = vpop.f32.mrb[0].mxu0
        %v985 = vadd.f32 %v916, %v984
        %v986 = vpop.f32.mrb[0].mxu0
        %987 = vmatprep.mubr.f32.mxu0 %v512
        %988 = vmatmul.mubr.f32.gmra.mrb[0].mxu0 %v406
        %v989 = vpop.f32.mrb[0].mxu0
        %v990 = vadd.f32 %v916, %v989
        %v991 = vpop.f32.mrb[0].mxu0
        %992 = vmatprep.mubr.f32.mxu0 %v515
        %993 = vmatmul.mubr.f32.gmra.mrb[0].mxu0 %v408
        %v994 = vpop.f32.mrb[0].mxu0
        %v995 = vadd.f32 %v916, %v994
        %v996 = vpop.f32.mrb[0].mxu0
        %997 = vmatprep.mubr.f32.mxu0 %v517
        %998 = vmatmul.mubr.f32.gmra.mrb[0].mxu0 %v409
        %v999 = vpop.f32.mrb[0].mxu0
        %v1000 = vadd.f32 %v916, %v999
        %v1001 = vpop.f32.mrb[0].mxu0
        %1002 = vmatprep.mubr.f32.mxu0 %v520
        %1003 = vmatmul.mubr.f32.gmra.mrb[0].mxu0 %v411
        %v1004 = vpop.f32.mrb[0].mxu0
        %v1005 = vadd.f32 %v916, %v1004
        %v1006 = vpop.f32.mrb[0].mxu0
        %1007 = vmatprep.mubr.f32.mxu0 %v522
        %1008 = vmatmul.mubr.f32.gmra.mrb[0].mxu0 %v412
        %v1009 = vpop.f32.mrb[0].mxu0
        %v1010 = vadd.f32 %v916, %v1009
        %v1011 = vpop.f32.mrb[0].mxu0
        %1012 = vmatprep.mubr.f32.mxu0 %v525
        %1013 = vmatmul.mubr.f32.gmra.mrb[0].mxu0 %v414
        %v1014 = vpop.f32.mrb[0].mxu0
        %v1015 = vadd.f32 %v916, %v1014
        %v1016 = vpop.f32.mrb[0].mxu0
        %1017 = vmatprep.mubr.f32.mxu0 %v527
        %1018 = vmatmul.mubr.f32.gmra.mrb[0].mxu0 %v415
        %v1019 = vpop.f32.mrb[0].mxu0
        %v1020 = vadd.f32 %v916, %v1019
        %v1021 = vpop.f32.mrb[0].mxu0
        %1022 = vmatprep.mubr.f32.mxu0 %v530
        %1023 = vmatmul.mubr.f32.gmra.mrb[0].mxu0 %v417
        %v1024 = vpop.f32.mrb[0].mxu0
        %v1025 = vadd.f32 %v916, %v1024
        %v1026 = vpop.f32.mrb[0].mxu0
        %1027 = vmatprep.mubr.f32.mxu0 %v532
        %1028 = vmatmul.mubr.f32.gmra.mrb[0].mxu0 %v418
        %v1029 = vpop.f32.mrb[0].mxu0
        %v1030 = vadd.f32 %v916, %v1029
        %v1031 = vpop.f32.mrb[0].mxu0
        %1032 = vmatprep.mubr.f32.mxu0 %v535
        %1033 = vmatmul.mubr.f32.gmra.mrb[0].mxu0 %v420
        %v1034 = vpop.f32.mrb[0].mxu0
        %v1035 = vadd.f32 %v916, %v1034
        %v1036 = vpop.f32.mrb[0].mxu0
        %1037 = vmatprep.mubr.f32.mxu0 %v537
        %1038 = vmatmul.mubr.f32.gmra.mrb[0].mxu0 %v421
        %v1039 = vpop.f32.mrb[0].mxu0
        %v1040 = vadd.f32 %v916, %v1039
        %v1041 = vpop.f32.mrb[0].mxu0
        %1042 = vmatprep.mubr.f32.mxu0 %v540
        %1043 = vmatmul.mubr.f32.gmra.mrb[0].mxu0 %v423
        %v1044 = vpop.f32.mrb[0].mxu0
        %v1045 = vadd.f32 %v916, %v1044
        %v1046 = vpop.f32.mrb[0].mxu0
        %1047 = vmatprep.mubr.f32.mxu0 %v542
        %1048 = vmatmul.mubr.f32.gmra.mrb[0].mxu0 %v424
        %v1049 = vpop.f32.mrb[0].mxu0
        %v1050 = vadd.f32 %v916, %v1049
        %v1051 = vpop.f32.mrb[0].mxu0
        %1052 = vmatprep.mubr.f32.mxu0 %v545
        %1053 = vmatmul.mubr.f32.gmra.mrb[0].mxu0 %v426
        %v1054 = vpop.f32.mrb[0].mxu0
        %v1055 = vadd.f32 %v916, %v1054
        %v1056 = vpop.f32.mrb[0].mxu0
        %1057 = vmatprep.mubr.f32.mxu0 %v547
        %1058 = vmatmul.mubr.f32.gmra.mrb[0].mxu0 %v427
        %v1059 = vpop.f32.mrb[0].mxu0
        %v1060 = vadd.f32 %v916, %v1059
        %v1061 = vpop.f32.mrb[0].mxu0
        %1062 = vmatprep.mubr.f32.mxu0 %v550
        %1063 = vmatmul.mubr.f32.gmra.mrb[0].mxu0 %v429
        %v1064 = vpop.f32.mrb[0].mxu0
        %v1065 = vadd.f32 %v916, %v1064
        %v1066 = vpop.f32.mrb[0].mxu0
        %1067 = vmatprep.mubr.f32.mxu0 %v552
        %1068 = vmatmul.mubr.f32.gmra.mrb[0].mxu0 %v430
        %v1069 = vpop.f32.mrb[0].mxu0
        %v1070 = vadd.f32 %v916, %v1069
        %v1071 = vpop.f32.mrb[0].mxu0
        %1072 = vmatprep.mubr.f32.mxu0 %v555
        %1073 = vmatmul.mubr.f32.gmra.mrb[0].mxu0 %v432
        %v1074 = vpop.f32.mrb[0].mxu0
        %v1075 = vadd.f32 %v916, %v1074
        %v1076 = vpop.f32.mrb[0].mxu0
        %1077 = vmatprep.mubr.f32.mxu0 %v557
        %1078 = vmatmul.mubr.f32.gmra.mrb[0].mxu0 %v433
        %v1079 = vpop.f32.mrb[0].mxu0
        %v1080 = vadd.f32 %v916, %v1079
        %v1081 = vpop.f32.mrb[0].mxu0
        %1082 = vmatprep.mubr.f32.mxu0 %v560
        %1083 = vmatmul.mubr.f32.gmra.mrb[0].mxu0 %v435
        %v1084 = vpop.f32.mrb[0].mxu0
        %v1085 = vadd.f32 %v916, %v1084
        %v1086 = vpop.f32.mrb[0].mxu0
        %1087 = vmatprep.mubr.f32.mxu0 %v562
        %1088 = vmatmul.mubr.f32.gmra.mrb[0].mxu0 %v436
        %v1089 = vpop.f32.mrb[0].mxu0
        %v1090 = vadd.f32 %v916, %v1089
        %v1091 = vpop.f32.mrb[0].mxu0
        %1092 = vmatprep.mubr.f32.mxu0 %v565
        %1093 = vmatmul.mubr.f32.gmra.mrb[0].mxu0 %v438
        %v1094 = vpop.f32.mrb[0].mxu0
        %v1095 = vadd.f32 %v916, %v1094
        %v1096 = vpop.f32.mrb[0].mxu0
        %1097 = vmatprep.mubr.f32.mxu0 %v567
        %1098 = vmatmul.mubr.f32.gmra.mrb[0].mxu0 %v439
        %v1099 = vpop.f32.mrb[0].mxu0
        %v1100 = vadd.f32 %v916, %v1099
        %v1101 = vpop.f32.mrb[0].mxu0
        %1102 = vmatprep.mubr.f32.mxu0 %v570
        %1103 = vmatmul.mubr.f32.gmra.mrb[0].mxu0 %v441
        %v1104 = vpop.f32.mrb[0].mxu0
        %v1105 = vadd.f32 %v916, %v1104
        %v1106 = vpop.f32.mrb[0].mxu0
        %1107 = vmatprep.mubr.f32.mxu0 %v572
        %1108 = vmatmul.mubr.f32.gmra.mrb[0].mxu0 %v442
        %v1109 = vpop.f32.mrb[0].mxu0
        %v1110 = vadd.f32 %v916, %v1109
        %v1111 = vpop.f32.mrb[0].mxu0
        %1112 = vmatprep.mubr.f32.mxu0 %v575
        %1113 = vmatmul.mubr.f32.gmra.mrb[0].mxu0 %v444
        %v1114 = vpop.f32.mrb[0].mxu0
        %v1115 = vadd.f32 %v916, %v1114
        %v1116 = vpop.f32.mrb[0].mxu0
        %1117 = vmatprep.mubr.f32.mxu0 %v577
        %1118 = vmatmul.mubr.f32.gmra.mrb[0].mxu0 %v445
        %v1119 = vpop.f32.mrb[0].mxu0
        %v1120 = vadd.f32 %v916, %v1119
        %v1121 = vpop.f32.mrb[0].mxu0
        %1122 = vmatprep.mubr.f32.mxu0 %v580
        %1123 = vmatmul.mubr.f32.gmra.mrb[0].mxu0 %v447
        %v1124 = vpop.f32.mrb[0].mxu0
        %v1125 = vadd.f32 %v916, %v1124
        %v1126 = vpop.f32.mrb[0].mxu0
        %1127 = vmatprep.mubr.f32.mxu0 %v582
        %1128 = vmatmul.mubr.f32.gmra.mrb[0].mxu0 %v448
        %v1129 = vpop.f32.mrb[0].mxu0
        %v1130 = vadd.f32 %v916, %v1129
        %v1131 = vpop.f32.mrb[0].mxu0
        %1132 = vmatprep.mubr.f32.mxu0 %v585
        %1133 = vmatmul.mubr.f32.gmra.mrb[0].mxu0 %v450
        %v1134 = vpop.f32.mrb[0].mxu0
        %v1135 = vadd.f32 %v916, %v1134
        %v1136 = vpop.f32.mrb[0].mxu0
        %1137 = vmatprep.mubr.f32.mxu0 %v587
        %1138 = vmatmul.mubr.f32.gmra.mrb[0].mxu0 %v451
        %v1139 = vpop.f32.mrb[0].mxu0
        %v1140 = vadd.f32 %v916, %v1139
        %v1141 = vpop.f32.mrb[0].mxu0
        %1142 = vdwg.mxu0
        %1143 = vmatprep.subr.mxu0 0.0
        %1144 = vmatpush1.msra.mxu0 %v799
        %1145 = vmatprep.subr.mxu0 0.0
        %1146 = vmatpush1.msra.mxu0 %v800
        %1147 = vmatprep.subr.mxu0 0.0
        %1148 = vmatpush1.msra.mxu0 %v801
        %1149 = vmatprep.subr.mxu0 0.0
        %1150 = vmatpush1.msra.mxu0 %v802
        %1151 = vmatprep.subr.mxu0 0.0
        %1152 = vmatpush1.msra.mxu0 %v803
        %1153 = vmatprep.subr.mxu0 0.0
        %1154 = vmatpush1.msra.mxu0 %v804
        %1155 = vmatprep.subr.mxu0 0.0
        %1156 = vmatpush1.msra.mxu0 %v805
        %1157 = vmatprep.subr.mxu0 0.0
        %1158 = vmatpush1.msra.mxu0 %v806
        %1159 = vmatprep.subr.mxu0 0.0
        %1160 = vmatpush1.msra.mxu0 %v807
        %1161 = vmatprep.subr.mxu0 0.0
        %1162 = vmatpush1.msra.mxu0 %v808
        %1163 = vmatprep.subr.mxu0 0.0
        %1164 = vmatpush1.msra.mxu0 %v809
        %1165 = vmatprep.subr.mxu0 0.0
        %1166 = vmatpush1.msra.mxu0 %v810
        %1167 = vmatprep.subr.mxu0 0.0
        %1168 = vmatpush1.msra.mxu0 %v811
        %1169 = vmatprep.subr.mxu0 0.0
        %1170 = vmatpush1.msra.mxu0 %v812
        %1171 = vmatprep.subr.mxu0 0.0
        %1172 = vmatpush1.msra.mxu0 %v813
        %1173 = vmatprep.subr.mxu0 0.0
        %1174 = vmatpush1.msra.mxu0 %v814
        %1175 = vmatprep.subr.mxu0 0.0
        %1176 = vmatpush1.msra.mxu0 %v815
        %1177 = vmatprep.subr.mxu0 0.0
        %1178 = vmatpush1.msra.mxu0 %v816
        %1179 = vmatprep.subr.mxu0 0.0
        %1180 = vmatpush1.msra.mxu0 %v817
        %1181 = vmatprep.subr.mxu0 0.0
        %1182 = vmatpush1.msra.mxu0 %v818
        %1183 = vmatprep.subr.mxu0 0.0
        %1184 = vmatpush1.msra.mxu0 %v819
        %1185 = vmatprep.subr.mxu0 0.0
        %1186 = vmatpush1.msra.mxu0 %v820
        %1187 = vmatprep.subr.mxu0 0.0
        %1188 = vmatpush1.msra.mxu0 %v821
        %1189 = vmatprep.subr.mxu0 0.0
        %1190 = vmatpush1.msra.mxu0 %v822
        %1191 = vmatprep.subr.mxu0 0.0
        %1192 = vmatpush1.msra.mxu0 %v823
        %1193 = vmatprep.subr.mxu0 0.0
        %1194 = vmatpush1.msra.mxu0 %v824
        %1195 = vmatprep.subr.mxu0 0.0
        %1196 = vmatpush1.msra.mxu0 %v825
        %1197 = vmatprep.subr.mxu0 0.0
        %1198 = vmatpush1.msra.mxu0 %v826
        %1199 = vmatprep.subr.mxu0 0.0
        %1200 = vmatpush1.msra.mxu0 %v827
        %1201 = vmatprep.subr.mxu0 0.0
        %1202 = vmatpush1.msra.mxu0 %v828
        %1203 = vmatprep.subr.mxu0 0.0
        %1204 = vmatpush1.msra.mxu0 %v829
        %1205 = vmatprep.subr.mxu0 0.0
        %1206 = vmatpush1.msra.mxu0 %v830
        %1207 = vmatprep.mubr.f32.mxu0 %v408
        %1208 = vmatmul.mubr.f32.gmra.mrb[0].mxu0 %v623
        %v1209 = vpop.f32.mrb[0].mxu0
        %v1210 = vadd.f32 %v985, %v1209
        %v1211 = vpop.f32.mrb[0].mxu0
        %1212 = vmatprep.mubr.f32.mxu0 %v409
        %1213 = vmatmul.mubr.f32.gmra.mrb[0].mxu0 %v625
        %v1214 = vpop.f32.mrb[0].mxu0
        %v1215 = vadd.f32 %v990, %v1214
        %v1216 = vpop.f32.mrb[0].mxu0
        %1217 = vmatprep.mubr.f32.mxu0 %v411
        %1218 = vmatmul.mubr.f32.gmra.mrb[0].mxu0 %v628
        %v1219 = vpop.f32.mrb[0].mxu0
        %v1220 = vadd.f32 %v995, %v1219
        %v1221 = vpop.f32.mrb[0].mxu0
        %1222 = vmatprep.mubr.f32.mxu0 %v412
        %1223 = vmatmul.mubr.f32.gmra.mrb[0].mxu0 %v630
        %v1224 = vpop.f32.mrb[0].mxu0
        %v1225 = vadd.f32 %v1000, %v1224
        %v1226 = vpop.f32.mrb[0].mxu0
        %1227 = vmatprep.mubr.f32.mxu0 %v414
        %1228 = vmatmul.mubr.f32.gmra.mrb[0].mxu0 %v633
        %v1229 = vpop.f32.mrb[0].mxu0
        %v1230 = vadd.f32 %v1005, %v1229
        %v1231 = vpop.f32.mrb[0].mxu0
        %1232 = vmatprep.mubr.f32.mxu0 %v415
        %1233 = vmatmul.mubr.f32.gmra.mrb[0].mxu0 %v635
        %v1234 = vpop.f32.mrb[0].mxu0
        %v1235 = vadd.f32 %v1010, %v1234
        %v1236 = vpop.f32.mrb[0].mxu0
        %1237 = vmatprep.mubr.f32.mxu0 %v417
        %1238 = vmatmul.mubr.f32.gmra.mrb[0].mxu0 %v638
        %v1239 = vpop.f32.mrb[0].mxu0
        %v1240 = vadd.f32 %v1015, %v1239
        %v1241 = vpop.f32.mrb[0].mxu0
        %1242 = vmatprep.mubr.f32.mxu0 %v418
        %1243 = vmatmul.mubr.f32.gmra.mrb[0].mxu0 %v640
        %v1244 = vpop.f32.mrb[0].mxu0
        %v1245 = vadd.f32 %v1020, %v1244
        %v1246 = vpop.f32.mrb[0].mxu0
        %1247 = vmatprep.mubr.f32.mxu0 %v420
        %1248 = vmatmul.mubr.f32.gmra.mrb[0].mxu0 %v643
        %v1249 = vpop.f32.mrb[0].mxu0
        %v1250 = vadd.f32 %v1025, %v1249
        %v1251 = vpop.f32.mrb[0].mxu0
        %1252 = vmatprep.mubr.f32.mxu0 %v421
        %1253 = vmatmul.mubr.f32.gmra.mrb[0].mxu0 %v645
        %v1254 = vpop.f32.mrb[0].mxu0
        %v1255 = vadd.f32 %v1030, %v1254
        %v1256 = vpop.f32.mrb[0].mxu0
        %1257 = vmatprep.mubr.f32.mxu0 %v423
        %1258 = vmatmul.mubr.f32.gmra.mrb[0].mxu0 %v648
        %v1259 = vpop.f32.mrb[0].mxu0
        %v1260 = vadd.f32 %v1035, %v1259
        %v1261 = vpop.f32.mrb[0].mxu0
        %1262 = vmatprep.mubr.f32.mxu0 %v424
        %1263 = vmatmul.mubr.f32.gmra.mrb[0].mxu0 %v650
        %v1264 = vpop.f32.mrb[0].mxu0
        %v1265 = vadd.f32 %v1040, %v1264
        %v1266 = vpop.f32.mrb[0].mxu0
        %1267 = vmatprep.mubr.f32.mxu0 %v426
        %1268 = vmatmul.mubr.f32.gmra.mrb[0].mxu0 %v653
        %v1269 = vpop.f32.mrb[0].mxu0
        %v1270 = vadd.f32 %v1045, %v1269
        %v1271 = vpop.f32.mrb[0].mxu0
        %1272 = vmatprep.mubr.f32.mxu0 %v427
        %1273 = vmatmul.mubr.f32.gmra.mrb[0].mxu0 %v655
        %v1274 = vpop.f32.mrb[0].mxu0
        %v1275 = vadd.f32 %v1050, %v1274
        %v1276 = vpop.f32.mrb[0].mxu0
        %1277 = vmatprep.mubr.f32.mxu0 %v429
        %1278 = vmatmul.mubr.f32.gmra.mrb[0].mxu0 %v658
        %v1279 = vpop.f32.mrb[0].mxu0
        %v1280 = vadd.f32 %v1055, %v1279
        %v1281 = vpop.f32.mrb[0].mxu0
        %1282 = vmatprep.mubr.f32.mxu0 %v430
        %1283 = vmatmul.mubr.f32.gmra.mrb[0].mxu0 %v660
        %v1284 = vpop.f32.mrb[0].mxu0
        %v1285 = vadd.f32 %v1060, %v1284
        %v1286 = vpop.f32.mrb[0].mxu0
        %1287 = vmatprep.mubr.f32.mxu0 %v432
        %1288 = vmatmul.mubr.f32.gmra.mrb[0].mxu0 %v663
        %v1289 = vpop.f32.mrb[0].mxu0
        %v1290 = vadd.f32 %v1065, %v1289
        %v1291 = vpop.f32.mrb[0].mxu0
        %1292 = vmatprep.mubr.f32.mxu0 %v433
        %1293 = vmatmul.mubr.f32.gmra.mrb[0].mxu0 %v665
        %v1294 = vpop.f32.mrb[0].mxu0
        %v1295 = vadd.f32 %v1070, %v1294
        %v1296 = vpop.f32.mrb[0].mxu0
        %1297 = vmatprep.mubr.f32.mxu0 %v435
        %1298 = vmatmul.mubr.f32.gmra.mrb[0].mxu0 %v668
        %v1299 = vpop.f32.mrb[0].mxu0
        %v1300 = vadd.f32 %v1075, %v1299
        %v1301 = vpop.f32.mrb[0].mxu0
        %1302 = vmatprep.mubr.f32.mxu0 %v436
        %1303 = vmatmul.mubr.f32.gmra.mrb[0].mxu0 %v670
        %v1304 = vpop.f32.mrb[0].mxu0
        %v1305 = vadd.f32 %v1080, %v1304
        %v1306 = vpop.f32.mrb[0].mxu0
        %1307 = vmatprep.mubr.f32.mxu0 %v438
        %1308 = vmatmul.mubr.f32.gmra.mrb[0].mxu0 %v673
        %v1309 = vpop.f32.mrb[0].mxu0
        %v1310 = vadd.f32 %v1085, %v1309
        %v1311 = vpop.f32.mrb[0].mxu0
        %1312 = vmatprep.mubr.f32.mxu0 %v439
        %1313 = vmatmul.mubr.f32.gmra.mrb[0].mxu0 %v675
        %v1314 = vpop.f32.mrb[0].mxu0
        %v1315 = vadd.f32 %v1090, %v1314
        %v1316 = vpop.f32.mrb[0].mxu0
        %1317 = vmatprep.mubr.f32.mxu0 %v441
        %1318 = vmatmul.mubr.f32.gmra.mrb[0].mxu0 %v678
        %v1319 = vpop.f32.mrb[0].mxu0
        %v1320 = vadd.f32 %v1095, %v1319
        %v1321 = vpop.f32.mrb[0].mxu0
        %1322 = vmatprep.mubr.f32.mxu0 %v442
        %1323 = vmatmul.mubr.f32.gmra.mrb[0].mxu0 %v680
        %v1324 = vpop.f32.mrb[0].mxu0
        %v1325 = vadd.f32 %v1100, %v1324
        %v1326 = vpop.f32.mrb[0].mxu0
        %1327 = vmatprep.mubr.f32.mxu0 %v444
        %1328 = vmatmul.mubr.f32.gmra.mrb[0].mxu0 %v683
        %v1329 = vpop.f32.mrb[0].mxu0
        %v1330 = vadd.f32 %v1105, %v1329
        %v1331 = vpop.f32.mrb[0].mxu0
        %1332 = vmatprep.mubr.f32.mxu0 %v445
        %1333 = vmatmul.mubr.f32.gmra.mrb[0].mxu0 %v685
        %v1334 = vpop.f32.mrb[0].mxu0
        %v1335 = vadd.f32 %v1110, %v1334
        %v1336 = vpop.f32.mrb[0].mxu0
        %1337 = vmatprep.mubr.f32.mxu0 %v447
        %1338 = vmatmul.mubr.f32.gmra.mrb[0].mxu0 %v688
        %v1339 = vpop.f32.mrb[0].mxu0
        %v1340 = vadd.f32 %v1115, %v1339
        %v1341 = vpop.f32.mrb[0].mxu0
        %1342 = vmatprep.mubr.f32.mxu0 %v448
        %1343 = vmatmul.mubr.f32.gmra.mrb[0].mxu0 %v690
        %v1344 = vpop.f32.mrb[0].mxu0
        %v1345 = vadd.f32 %v1120, %v1344
        %v1346 = vpop.f32.mrb[0].mxu0
        %1347 = vmatprep.mubr.f32.mxu0 %v450
        %1348 = vmatmul.mubr.f32.gmra.mrb[0].mxu0 %v693
        %v1349 = vpop.f32.mrb[0].mxu0
        %v1350 = vadd.f32 %v1125, %v1349
        %v1351 = vpop.f32.mrb[0].mxu0
        %1352 = vmatprep.mubr.f32.mxu0 %v451
        %1353 = vmatmul.mubr.f32.gmra.mrb[0].mxu0 %v695
        %v1354 = vpop.f32.mrb[0].mxu0
        %v1355 = vadd.f32 %v1130, %v1354
        %v1356 = vpop.f32.mrb[0].mxu0
        %1357 = vmatprep.mubr.f32.mxu0 %v453
        %1358 = vmatmul.mubr.f32.gmra.mrb[0].mxu0 %v698
        %v1359 = vpop.f32.mrb[0].mxu0
        %v1360 = vadd.f32 %v1135, %v1359
        %v1361 = vpop.f32.mrb[0].mxu0
        %1362 = vmatprep.mubr.f32.mxu0 %v454
        %1363 = vmatmul.mubr.f32.gmra.mrb[0].mxu0 %v700
        %v1364 = vpop.f32.mrb[0].mxu0
        %v1365 = vadd.f32 %v1140, %v1364
        %v1366 = vpop.f32.mrb[0].mxu0
        %1367 = vdwg.mxu0
        %1368 = vmatprep.subr.mxu0 0.0
        %1369 = vmatpush1.msra.mxu0 %v831
        %1370 = vmatprep.subr.mxu0 0.0
        %1371 = vmatpush1.msra.mxu0 %v832
        %1372 = vmatprep.subr.mxu0 0.0
        %1373 = vmatpush1.msra.mxu0 %v833
        %1374 = vmatprep.subr.mxu0 0.0
        %1375 = vmatpush1.msra.mxu0 %v834
        %1376 = vmatprep.subr.mxu0 0.0
        %1377 = vmatpush1.msra.mxu0 %v835
        %1378 = vmatprep.subr.mxu0 0.0
        %1379 = vmatpush1.msra.mxu0 %v836
        %1380 = vmatprep.subr.mxu0 0.0
        %1381 = vmatpush1.msra.mxu0 %v837
        %1382 = vmatprep.subr.mxu0 0.0
        %1383 = vmatpush1.msra.mxu0 %v838
        %1384 = vmatprep.subr.mxu0 0.0
        %1385 = vmatpush1.msra.mxu0 %v839
        %1386 = vmatprep.subr.mxu0 0.0
        %1387 = vmatpush1.msra.mxu0 %v840
        %1388 = vmatprep.subr.mxu0 0.0
        %1389 = vmatpush1.msra.mxu0 %v841
        %1390 = vmatprep.subr.mxu0 0.0
        %1391 = vmatpush1.msra.mxu0 %v842
        %1392 = vmatprep.subr.mxu0 0.0
        %1393 = vmatpush1.msra.mxu0 %v843
        %1394 = vmatprep.subr.mxu0 0.0
        %1395 = vmatpush1.msra.mxu0 %v844
        %1396 = vmatprep.subr.mxu0 0.0
        %1397 = vmatpush1.msra.mxu0 %v845
        %1398 = vmatprep.subr.mxu0 0.0
        %1399 = vmatpush1.msra.mxu0 %v846
        %1400 = vmatprep.subr.mxu0 0.0
        %1401 = vmatpush1.msra.mxu0 %v847
        %1402 = vmatprep.subr.mxu0 0.0
        %1403 = vmatpush1.msra.mxu0 %v848
        %1404 = vmatprep.subr.mxu0 0.0
        %1405 = vmatpush1.msra.mxu0 %v849
        %1406 = vmatprep.subr.mxu0 0.0
        %1407 = vmatpush1.msra.mxu0 %v850
        %1408 = vmatprep.subr.mxu0 0.0
        %1409 = vmatpush1.msra.mxu0 %v851
        %1410 = vmatprep.subr.mxu0 0.0
        %1411 = vmatpush1.msra.mxu0 %v852
        %1412 = vmatprep.subr.mxu0 0.0
        %1413 = vmatpush1.msra.mxu0 %v853
        %1414 = vmatprep.subr.mxu0 0.0
        %1415 = vmatpush1.msra.mxu0 %v854
        %1416 = vmatprep.subr.mxu0 0.0
        %1417 = vmatpush1.msra.mxu0 %v855
        %1418 = vmatprep.subr.mxu0 0.0
        %1419 = vmatpush1.msra.mxu0 %v856
        %1420 = vmatprep.subr.mxu0 0.0
        %1421 = vmatpush1.msra.mxu0 %v857
        %1422 = vmatprep.subr.mxu0 0.0
        %1423 = vmatpush1.msra.mxu0 %v858
        %1424 = vmatprep.subr.mxu0 0.0
        %1425 = vmatpush1.msra.mxu0 %v859
        %1426 = vmatprep.subr.mxu0 0.0
        %1427 = vmatpush1.msra.mxu0 %v860
        %1428 = vmatprep.subr.mxu0 0.0
        %1429 = vmatpush1.msra.mxu0 %v861
        %1430 = vmatprep.subr.mxu0 0.0
        %1431 = vmatpush1.msra.mxu0 %v862
        %1432 = vmatprep.mubr.f32.mxu0 %v628
        %1433 = vmatmul.mubr.f32.gmra.mrb[0].mxu0 %v515
        %v1434 = vpop.f32.mrb[0].mxu0
        %v1435 = vadd.f32 %v1210, %v1434
        %v1436 = vpop.f32.mrb[0].mxu0
        %1437 = vmatprep.mubr.f32.mxu0 %v630
        %1438 = vmatmul.mubr.f32.gmra.mrb[0].mxu0 %v517
        %v1439 = vpop.f32.mrb[0].mxu0
        %v1440 = vadd.f32 %v1215, %v1439
        %v1441 = vpop.f32.mrb[0].mxu0
        %1442 = vmatprep.mubr.f32.mxu0 %v633
        %1443 = vmatmul.mubr.f32.gmra.mrb[0].mxu0 %v520
        %v1444 = vpop.f32.mrb[0].mxu0
        %v1445 = vadd.f32 %v1220, %v1444
        %v1446 = vpop.f32.mrb[0].mxu0
        %1447 = vmatprep.mubr.f32.mxu0 %v635
        %1448 = vmatmul.mubr.f32.gmra.mrb[0].mxu0 %v522
        %v1449 = vpop.f32.mrb[0].mxu0
        %v1450 = vadd.f32 %v1225, %v1449
        %v1451 = vpop.f32.mrb[0].mxu0
        %1452 = vmatprep.mubr.f32.mxu0 %v638
        %1453 = vmatmul.mubr.f32.gmra.mrb[0].mxu0 %v525
        %v1454 = vpop.f32.mrb[0].mxu0
        %v1455 = vadd.f32 %v1230, %v1454
        %v1456 = vpop.f32.mrb[0].mxu0
        %1457 = vmatprep.mubr.f32.mxu0 %v640
        %1458 = vmatmul.mubr.f32.gmra.mrb[0].mxu0 %v527
        %v1459 = vpop.f32.mrb[0].mxu0
        %v1460 = vadd.f32 %v1235, %v1459
        %v1461 = vpop.f32.mrb[0].mxu0
        %1462 = vmatprep.mubr.f32.mxu0 %v643
        %1463 = vmatmul.mubr.f32.gmra.mrb[0].mxu0 %v530
        %v1464 = vpop.f32.mrb[0].mxu0
        %v1465 = vadd.f32 %v1240, %v1464
        %v1466 = vpop.f32.mrb[0].mxu0
        %1467 = vmatprep.mubr.f32.mxu0 %v645
        %1468 = vmatmul.mubr.f32.gmra.mrb[0].mxu0 %v532
        %v1469 = vpop.f32.mrb[0].mxu0
        %v1470 = vadd.f32 %v1245, %v1469
        %v1471 = vpop.f32.mrb[0].mxu0
        %1472 = vmatprep.mubr.f32.mxu0 %v648
        %1473 = vmatmul.mubr.f32.gmra.mrb[0].mxu0 %v535
        %v1474 = vpop.f32.mrb[0].mxu0
        %v1475 = vadd.f32 %v1250, %v1474
        %v1476 = vpop.f32.mrb[0].mxu0
        %1477 = vmatprep.mubr.f32.mxu0 %v650
        %1478 = vmatmul.mubr.f32.gmra.mrb[0].mxu0 %v537
        %v1479 = vpop.f32.mrb[0].mxu0
        %v1480 = vadd.f32 %v1255, %v1479
        %v1481 = vpop.f32.mrb[0].mxu0
        %1482 = vmatprep.mubr.f32.mxu0 %v653
        %1483 = vmatmul.mubr.f32.gmra.mrb[0].mxu0 %v540
        %v1484 = vpop.f32.mrb[0].mxu0
        %v1485 = vadd.f32 %v1260, %v1484
        %v1486 = vpop.f32.mrb[0].mxu0
        %1487 = vmatprep.mubr.f32.mxu0 %v655
        %1488 = vmatmul.mubr.f32.gmra.mrb[0].mxu0 %v542
        %v1489 = vpop.f32.mrb[0].mxu0
        %v1490 = vadd.f32 %v1265, %v1489
        %v1491 = vpop.f32.mrb[0].mxu0
        %1492 = vmatprep.mubr.f32.mxu0 %v658
        %1493 = vmatmul.mubr.f32.gmra.mrb[0].mxu0 %v545
        %v1494 = vpop.f32.mrb[0].mxu0
        %v1495 = vadd.f32 %v1270, %v1494
        %v1496 = vpop.f32.mrb[0].mxu0
        %1497 = vmatprep.mubr.f32.mxu0 %v660
        %1498 = vmatmul.mubr.f32.gmra.mrb[0].mxu0 %v547
        %v1499 = vpop.f32.mrb[0].mxu0
        %v1500 = vadd.f32 %v1275, %v1499
        %v1501 = vpop.f32.mrb[0].mxu0
        %1502 = vmatprep.mubr.f32.mxu0 %v663
        %1503 = vmatmul.mubr.f32.gmra.mrb[0].mxu0 %v550
        %v1504 = vpop.f32.mrb[0].mxu0
        %v1505 = vadd.f32 %v1280, %v1504
        %v1506 = vpop.f32.mrb[0].mxu0
        %1507 = vmatprep.mubr.f32.mxu0 %v665
        %1508 = vmatmul.mubr.f32.gmra.mrb[0].mxu0 %v552
        %v1509 = vpop.f32.mrb[0].mxu0
        %v1510 = vadd.f32 %v1285, %v1509
        %v1511 = vpop.f32.mrb[0].mxu0
        %1512 = vmatprep.mubr.f32.mxu0 %v668
        %1513 = vmatmul.mubr.f32.gmra.mrb[0].mxu0 %v555
        %v1514 = vpop.f32.mrb[0].mxu0
        %v1515 = vadd.f32 %v1290, %v1514
        %v1516 = vpop.f32.mrb[0].mxu0
        %1517 = vmatprep.mubr.f32.mxu0 %v670
        %1518 = vmatmul.mubr.f32.gmra.mrb[0].mxu0 %v557
        %v1519 = vpop.f32.mrb[0].mxu0
        %v1520 = vadd.f32 %v1295, %v1519
        %v1521 = vpop.f32.mrb[0].mxu0
        %1522 = vmatprep.mubr.f32.mxu0 %v673
        %1523 = vmatmul.mubr.f32.gmra.mrb[0].mxu0 %v560
        %v1524 = vpop.f32.mrb[0].mxu0
        %v1525 = vadd.f32 %v1300, %v1524
        %v1526 = vpop.f32.mrb[0].mxu0
        %1527 = vmatprep.mubr.f32.mxu0 %v675
        %1528 = vmatmul.mubr.f32.gmra.mrb[0].mxu0 %v562
        %v1529 = vpop.f32.mrb[0].mxu0
        %v1530 = vadd.f32 %v1305, %v1529
        %v1531 = vpop.f32.mrb[0].mxu0
        %1532 = vmatprep.mubr.f32.mxu0 %v678
        %1533 = vmatmul.mubr.f32.gmra.mrb[0].mxu0 %v565
        %v1534 = vpop.f32.mrb[0].mxu0
        %v1535 = vadd.f32 %v1310, %v1534
        %v1536 = vpop.f32.mrb[0].mxu0
        %1537 = vmatprep.mubr.f32.mxu0 %v680
        %1538 = vmatmul.mubr.f32.gmra.mrb[0].mxu0 %v567
        %v1539 = vpop.f32.mrb[0].mxu0
        %v1540 = vadd.f32 %v1315, %v1539
        %v1541 = vpop.f32.mrb[0].mxu0
        %1542 = vmatprep.mubr.f32.mxu0 %v683
        %1543 = vmatmul.mubr.f32.gmra.mrb[0].mxu0 %v570
        %v1544 = vpop.f32.mrb[0].mxu0
        %v1545 = vadd.f32 %v1320, %v1544
        %v1546 = vpop.f32.mrb[0].mxu0
        %1547 = vmatprep.mubr.f32.mxu0 %v685
        %1548 = vmatmul.mubr.f32.gmra.mrb[0].mxu0 %v572
        %v1549 = vpop.f32.mrb[0].mxu0
        %v1550 = vadd.f32 %v1325, %v1549
        %v1551 = vpop.f32.mrb[0].mxu0
        %1552 = vmatprep.mubr.f32.mxu0 %v688
        %1553 = vmatmul.mubr.f32.gmra.mrb[0].mxu0 %v575
        %v1554 = vpop.f32.mrb[0].mxu0
        %v1555 = vadd.f32 %v1330, %v1554
        %v1556 = vpop.f32.mrb[0].mxu0
        %1557 = vmatprep.mubr.f32.mxu0 %v690
        %1558 = vmatmul.mubr.f32.gmra.mrb[0].mxu0 %v577
        %v1559 = vpop.f32.mrb[0].mxu0
        %v1560 = vadd.f32 %v1335, %v1559
        %v1561 = vpop.f32.mrb[0].mxu0
        %1562 = vmatprep.mubr.f32.mxu0 %v693
        %1563 = vmatmul.mubr.f32.gmra.mrb[0].mxu0 %v580
        %v1564 = vpop.f32.mrb[0].mxu0
        %v1565 = vadd.f32 %v1340, %v1564
        %v1566 = vpop.f32.mrb[0].mxu0
        %1567 = vmatprep.mubr.f32.mxu0 %v695
        %1568 = vmatmul.mubr.f32.gmra.mrb[0].mxu0 %v582
        %v1569 = vpop.f32.mrb[0].mxu0
        %v1570 = vadd.f32 %v1345, %v1569
        %v1571 = vpop.f32.mrb[0].mxu0
        %1572 = vmatprep.mubr.f32.mxu0 %v698
        %1573 = vmatmul.mubr.f32.gmra.mrb[0].mxu0 %v585
        %v1574 = vpop.f32.mrb[0].mxu0
        %v1575 = vadd.f32 %v1350, %v1574
        %v1576 = vpop.f32.mrb[0].mxu0
        %1577 = vmatprep.mubr.f32.mxu0 %v700
        %1578 = vmatmul.mubr.f32.gmra.mrb[0].mxu0 %v587
        %v1579 = vpop.f32.mrb[0].mxu0
        %v1580 = vadd.f32 %v1355, %v1579
        %v1581 = vpop.f32.mrb[0].mxu0
        %1582 = vmatprep.mubr.f32.mxu0 %v745
        %1583 = vmatmul.mubr.f32.gmra.mrb[0].mxu0 %v738
        %v1584 = vpop.f32.mrb[0].mxu0
        %v1585 = vadd.f32 %v1360, %v1584
        %v1586 = vpop.f32.mrb[0].mxu0
        %1587 = vmatprep.mubr.f32.mxu0 %v747
        %1588 = vmatmul.mubr.f32.gmra.mrb[0].mxu0 %v740
        %v1589 = vpop.f32.mrb[0].mxu0
        %v1590 = vadd.f32 %v1365, %v1589
        %v1591 = vpop.f32.mrb[0].mxu0
        %1592 = vdwg.mxu0
        %1593 = vmatprep.subr.mxu0 0.0
        %1594 = vmatpush1.msra.mxu0 %v863
        %1595 = vmatprep.subr.mxu0 0.0
        %1596 = vmatpush1.msra.mxu0 %v864
        %1597 = vmatprep.subr.mxu0 0.0
        %1598 = vmatpush1.msra.mxu0 %v865
        %1599 = vmatprep.subr.mxu0 0.0
        %1600 = vmatpush1.msra.mxu0 %v866
        %1601 = vmatprep.subr.mxu0 0.0
        %1602 = vmatpush1.msra.mxu0 %v867
        %1603 = vmatprep.subr.mxu0 0.0
        %1604 = vmatpush1.msra.mxu0 %v868
        %1605 = vmatprep.subr.mxu0 0.0
        %1606 = vmatpush1.msra.mxu0 %v869
        %1607 = vmatprep.subr.mxu0 0.0
        %1608 = vmatpush1.msra.mxu0 %v870
        %1609 = vmatprep.subr.mxu0 0.0
        %1610 = vmatpush1.msra.mxu0 %v871
        %1611 = vmatprep.subr.mxu0 0.0
        %1612 = vmatpush1.msra.mxu0 %v872
        %1613 = vmatprep.subr.mxu0 0.0
        %1614 = vmatpush1.msra.mxu0 %v873
        %1615 = vmatprep.subr.mxu0 0.0
        %1616 = vmatpush1.msra.mxu0 %v874
        %1617 = vmatprep.subr.mxu0 0.0
        %1618 = vmatpush1.msra.mxu0 %v875
        %1619 = vmatprep.subr.mxu0 0.0
        %1620 = vmatpush1.msra.mxu0 %v876
        %1621 = vmatprep.subr.mxu0 0.0
        %1622 = vmatpush1.msra.mxu0 %v877
        %1623 = vmatprep.subr.mxu0 0.0
        %1624 = vmatpush1.msra.mxu0 %v878
        %1625 = vmatprep.subr.mxu0 0.0
        %1626 = vmatpush1.msra.mxu0 %v879
        %1627 = vmatprep.subr.mxu0 0.0
        %1628 = vmatpush1.msra.mxu0 %v880
        %1629 = vmatprep.subr.mxu0 0.0
        %1630 = vmatpush1.msra.mxu0 %v881
        %1631 = vmatprep.subr.mxu0 0.0
        %1632 = vmatpush1.msra.mxu0 %v882
        %1633 = vmatprep.subr.mxu0 0.0
        %1634 = vmatpush1.msra.mxu0 %v883
        %1635 = vmatprep.subr.mxu0 0.0
        %1636 = vmatpush1.msra.mxu0 %v884
        %1637 = vmatprep.subr.mxu0 0.0
        %1638 = vmatpush1.msra.mxu0 %v885
        %1639 = vmatprep.subr.mxu0 0.0
        %1640 = vmatpush1.msra.mxu0 %v886
        %1641 = vmatprep.subr.mxu0 0.0
        %1642 = vmatpush1.msra.mxu0 %v887
        %1643 = vmatprep.subr.mxu0 0.0
        %1644 = vmatpush1.msra.mxu0 %v888
        %1645 = vmatprep.subr.mxu0 0.0
        %1646 = vmatpush1.msra.mxu0 %v889
        %1647 = vmatprep.subr.mxu0 0.0
        %1648 = vmatpush1.msra.mxu0 %v890
        %1649 = vmatprep.subr.mxu0 0.0
        %1650 = vmatpush1.msra.mxu0 %v891
        %1651 = vmatprep.subr.mxu0 0.0
        %1652 = vmatpush1.msra.mxu0 %v892
        %1653 = vmatprep.subr.mxu0 0.0
        %1654 = vmatpush1.msra.mxu0 %v893
        %1655 = vmatprep.subr.mxu0 0.0
        %1656 = vmatpush1.msra.mxu0 %v894
        %1657 = vmatprep.mubr.f32.mxu0 %v520
        %1658 = vmatmul.mubr.f32.gmra.mrb[0].mxu0 %v411
        %v1659 = vpop.f32.mrb[0].mxu0
        %v1660 = vadd.f32 %v1435, %v1659
        %v1661 = vpop.f32.mrb[0].mxu0
        %1662 = vmatprep.mubr.f32.mxu0 %v522
        %1663 = vmatmul.mubr.f32.gmra.mrb[0].mxu0 %v412
        %v1664 = vpop.f32.mrb[0].mxu0
        %v1665 = vadd.f32 %v1440, %v1664
        %v1666 = vpop.f32.mrb[0].mxu0
        %1667 = vmatprep.mubr.f32.mxu0 %v525
        %1668 = vmatmul.mubr.f32.gmra.mrb[0].mxu0 %v414
        %v1669 = vpop.f32.mrb[0].mxu0
        %v1670 = vadd.f32 %v1445, %v1669
        %v1671 = vpop.f32.mrb[0].mxu0
        %1672 = vmatprep.mubr.f32.mxu0 %v527
        %1673 = vmatmul.mubr.f32.gmra.mrb[0].mxu0 %v415
        %v1674 = vpop.f32.mrb[0].mxu0
        %v1675 = vadd.f32 %v1450, %v1674
        %v1676 = vpop.f32.mrb[0].mxu0
        %1677 = vmatprep.mubr.f32.mxu0 %v530
        %1678 = vmatmul.mubr.f32.gmra.mrb[0].mxu0 %v417
        %v1679 = vpop.f32.mrb[0].mxu0
        %v1680 = vadd.f32 %v1455, %v1679
        %v1681 = vpop.f32.mrb[0].mxu0
        %1682 = vmatprep.mubr.f32.mxu0 %v532
        %1683 = vmatmul.mubr.f32.gmra.mrb[0].mxu0 %v418
        %v1684 = vpop.f32.mrb[0].mxu0
        %v1685 = vadd.f32 %v1460, %v1684
        %v1686 = vpop.f32.mrb[0].mxu0
        %1687 = vmatprep.mubr.f32.mxu0 %v535
        %1688 = vmatmul.mubr.f32.gmra.mrb[0].mxu0 %v420
        %v1689 = vpop.f32.mrb[0].mxu0
        %v1690 = vadd.f32 %v1465, %v1689
        %v1691 = vpop.f32.mrb[0].mxu0
        %1692 = vmatprep.mubr.f32.mxu0 %v537
        %1693 = vmatmul.mubr.f32.gmra.mrb[0].mxu0 %v421
        %v1694 = vpop.f32.mrb[0].mxu0
        %v1695 = vadd.f32 %v1470, %v1694
        %v1696 = vpop.f32.mrb[0].mxu0
        %1697 = vmatprep.mubr.f32.mxu0 %v540
        %1698 = vmatmul.mubr.f32.gmra.mrb[0].mxu0 %v423
        %v1699 = vpop.f32.mrb[0].mxu0
        %v1700 = vadd.f32 %v1475, %v1699
        %v1701 = vpop.f32.mrb[0].mxu0
        %1702 = vmatprep.mubr.f32.mxu0 %v542
        %1703 = vmatmul.mubr.f32.gmra.mrb[0].mxu0 %v424
        %v1704 = vpop.f32.mrb[0].mxu0
        %v1705 = vadd.f32 %v1480, %v1704
        %v1706 = vpop.f32.mrb[0].mxu0
        %1707 = vmatprep.mubr.f32.mxu0 %v545
        %1708 = vmatmul.mubr.f32.gmra.mrb[0].mxu0 %v426
        %v1709 = vpop.f32.mrb[0].mxu0
        %v1710 = vadd.f32 %v1485, %v1709
        %v1711 = vpop.f32.mrb[0].mxu0
        %1712 = vmatprep.mubr.f32.mxu0 %v547
        %1713 = vmatmul.mubr.f32.gmra.mrb[0].mxu0 %v427
        %v1714 = vpop.f32.mrb[0].mxu0
        %v1715 = vadd.f32 %v1490, %v1714
        %v1716 = vpop.f32.mrb[0].mxu0
        %1717 = vmatprep.mubr.f32.mxu0 %v550
        %1718 = vmatmul.mubr.f32.gmra.mrb[0].mxu0 %v429
        %v1719 = vpop.f32.mrb[0].mxu0
        %v1720 = vadd.f32 %v1495, %v1719
        %v1721 = vpop.f32.mrb[0].mxu0
        %1722 = vmatprep.mubr.f32.mxu0 %v552
        %1723 = vmatmul.mubr.f32.gmra.mrb[0].mxu0 %v430
        %v1724 = vpop.f32.mrb[0].mxu0
        %v1725 = vadd.f32 %v1500, %v1724
        %v1726 = vpop.f32.mrb[0].mxu0
        %1727 = vmatprep.mubr.f32.mxu0 %v555
        %1728 = vmatmul.mubr.f32.gmra.mrb[0].mxu0 %v432
        %v1729 = vpop.f32.mrb[0].mxu0
        %v1730 = vadd.f32 %v1505, %v1729
        %v1731 = vpop.f32.mrb[0].mxu0
        %1732 = vmatprep.mubr.f32.mxu0 %v557
        %1733 = vmatmul.mubr.f32.gmra.mrb[0].mxu0 %v433
        %v1734 = vpop.f32.mrb[0].mxu0
        %v1735 = vadd.f32 %v1510, %v1734
        %v1736 = vpop.f32.mrb[0].mxu0
        %1737 = vmatprep.mubr.f32.mxu0 %v560
        %1738 = vmatmul.mubr.f32.gmra.mrb[0].mxu0 %v435
        %v1739 = vpop.f32.mrb[0].mxu0
        %v1740 = vadd.f32 %v1515, %v1739
        %v1741 = vpop.f32.mrb[0].mxu0
        %1742 = vmatprep.mubr.f32.mxu0 %v562
        %1743 = vmatmul.mubr.f32.gmra.mrb[0].mxu0 %v436
        %v1744 = vpop.f32.mrb[0].mxu0
        %v1745 = vadd.f32 %v1520, %v1744
        %v1746 = vpop.f32.mrb[0].mxu0
        %1747 = vmatprep.mubr.f32.mxu0 %v565
        %1748 = vmatmul.mubr.f32.gmra.mrb[0].mxu0 %v438
        %v1749 = vpop.f32.mrb[0].mxu0
        %v1750 = vadd.f32 %v1525, %v1749
        %v1751 = vpop.f32.mrb[0].mxu0
        %1752 = vmatprep.mubr.f32.mxu0 %v567
        %1753 = vmatmul.mubr.f32.gmra.mrb[0].mxu0 %v439
        %v1754 = vpop.f32.mrb[0].mxu0
        %v1755 = vadd.f32 %v1530, %v1754
        %v1756 = vpop.f32.mrb[0].mxu0
        %1757 = vmatprep.mubr.f32.mxu0 %v570
        %1758 = vmatmul.mubr.f32.gmra.mrb[0].mxu0 %v441
        %v1759 = vpop.f32.mrb[0].mxu0
        %v1760 = vadd.f32 %v1535, %v1759
        %v1761 = vpop.f32.mrb[0].mxu0
        %1762 = vmatprep.mubr.f32.mxu0 %v572
        %1763 = vmatmul.mubr.f32.gmra.mrb[0].mxu0 %v442
        %v1764 = vpop.f32.mrb[0].mxu0
        %v1765 = vadd.f32 %v1540, %v1764
        %v1766 = vpop.f32.mrb[0].mxu0
        %1767 = vmatprep.mubr.f32.mxu0 %v575
        %1768 = vmatmul.mubr.f32.gmra.mrb[0].mxu0 %v444
        %v1769 = vpop.f32.mrb[0].mxu0
        %v1770 = vadd.f32 %v1545, %v1769
        %v1771 = vpop.f32.mrb[0].mxu0
        %1772 = vmatprep.mubr.f32.mxu0 %v577
        %1773 = vmatmul.mubr.f32.gmra.mrb[0].mxu0 %v445
        %v1774 = vpop.f32.mrb[0].mxu0
        %v1775 = vadd.f32 %v1550, %v1774
        %v1776 = vpop.f32.mrb[0].mxu0
        %1777 = vmatprep.mubr.f32.mxu0 %v580
        %1778 = vmatmul.mubr.f32.gmra.mrb[0].mxu0 %v447
        %v1779 = vpop.f32.mrb[0].mxu0
        %v1780 = vadd.f32 %v1555, %v1779
        %v1781 = vpop.f32.mrb[0].mxu0
        %1782 = vmatprep.mubr.f32.mxu0 %v582
        %1783 = vmatmul.mubr.f32.gmra.mrb[0].mxu0 %v448
        %v1784 = vpop.f32.mrb[0].mxu0
        %v1785 = vadd.f32 %v1560, %v1784
        %v1786 = vpop.f32.mrb[0].mxu0
        %1787 = vmatprep.mubr.f32.mxu0 %v585
        %1788 = vmatmul.mubr.f32.gmra.mrb[0].mxu0 %v450
        %v1789 = vpop.f32.mrb[0].mxu0
        %v1790 = vadd.f32 %v1565, %v1789
        %v1791 = vpop.f32.mrb[0].mxu0
        %1792 = vmatprep.mubr.f32.mxu0 %v587
        %1793 = vmatmul.mubr.f32.gmra.mrb[0].mxu0 %v451
        %v1794 = vpop.f32.mrb[0].mxu0
        %v1795 = vadd.f32 %v1570, %v1794
        %v1796 = vpop.f32.mrb[0].mxu0
        %1797 = vmatprep.mubr.f32.mxu0 %v738
        %1798 = vmatmul.mubr.f32.gmra.mrb[0].mxu0 %v453
        %v1799 = vpop.f32.mrb[0].mxu0
        %v1800 = vadd.f32 %v1575, %v1799
        %v1801 = vpop.f32.mrb[0].mxu0
        %1802 = vmatprep.mubr.f32.mxu0 %v740
        %1803 = vmatmul.mubr.f32.gmra.mrb[0].mxu0 %v454
        %v1804 = vpop.f32.mrb[0].mxu0
        %v1805 = vadd.f32 %v1580, %v1804
        %v1806 = vpop.f32.mrb[0].mxu0
        %1807 = vmatprep.mubr.f32.mxu0 %v755
        %1808 = vmatmul.mubr.f32.gmra.mrb[0].mxu0 %v456
        %v1809 = vpop.f32.mrb[0].mxu0
        %v1810 = vadd.f32 %v1585, %v1809
        %v1811 = vpop.f32.mrb[0].mxu0
        %1812 = vmatprep.mubr.f32.mxu0 %v757
        %1813 = vmatmul.mubr.f32.gmra.mrb[0].mxu0 %v457
        %v1814 = vpop.f32.mrb[0].mxu0
        %v1815 = vadd.f32 %v1590, %v1814
        %v1816 = vpop.f32.mrb[0].mxu0
        %1817 = vdwg.mxu0
        %1818 = vmatprep.subr.mxu0 0.0
        %1819 = vmatpush1.msra.mxu0 %v895
        %1820 = vmatprep.subr.mxu0 0.0
        %1821 = vmatpush1.msra.mxu0 %v896
        %1822 = vmatprep.subr.mxu0 0.0
        %1823 = vmatpush1.msra.mxu0 %v897
        %1824 = vmatprep.subr.mxu0 0.0
        %1825 = vmatpush1.msra.mxu0 %v898
        %1826 = vmatprep.subr.mxu0 0.0
        %1827 = vmatpush1.msra.mxu0 %v899
        %1828 = vmatprep.subr.mxu0 0.0
        %1829 = vmatpush1.msra.mxu0 %v900
        %1830 = vmatprep.subr.mxu0 0.0
        %1831 = vmatpush1.msra.mxu0 %v901
        %1832 = vmatprep.subr.mxu0 0.0
        %1833 = vmatpush1.msra.mxu0 %v902
        %1834 = vmatprep.subr.mxu0 0.0
        %1835 = vmatpush1.msra.mxu0 %v903
        %1836 = vmatprep.subr.mxu0 0.0
        %1837 = vmatpush1.msra.mxu0 %v904
        %1838 = vmatprep.subr.mxu0 0.0
        %1839 = vmatpush1.msra.mxu0 %v905
        %1840 = vmatprep.subr.mxu0 0.0
        %1841 = vmatpush1.msra.mxu0 %v906
        %1842 = vmatprep.subr.mxu0 0.0
        %1843 = vmatpush1.msra.mxu0 %v907
        %1844 = vmatprep.subr.mxu0 0.0
        %1845 = vmatpush1.msra.mxu0 %v908
        %1846 = vmatprep.subr.mxu0 0.0
        %1847 = vmatpush1.msra.mxu0 %v909
        %1848 = vmatprep.subr.mxu0 0.0
        %1849 = vmatpush1.msra.mxu0 %v910
        %1850 = vmatprep.subr.mxu0 0.0
        %1851 = vmatpush1.msra.mxu0 0.0
        %1852 = vmatprep.subr.mxu0 0.0
        %1853 = vmatpush1.msra.mxu0 0.0
        %1854 = vmatprep.subr.mxu0 0.0
        %1855 = vmatpush1.msra.mxu0 0.0
        %1856 = vmatprep.subr.mxu0 0.0
        %1857 = vmatpush1.msra.mxu0 0.0
        %1858 = vmatprep.subr.mxu0 0.0
        %1859 = vmatpush1.msra.mxu0 0.0
        %1860 = vmatprep.subr.mxu0 0.0
        %1861 = vmatpush1.msra.mxu0 0.0
        %1862 = vmatprep.subr.mxu0 0.0
        %1863 = vmatpush1.msra.mxu0 0.0
        %1864 = vmatprep.subr.mxu0 0.0
        %1865 = vmatpush1.msra.mxu0 0.0
        %1866 = vmatprep.subr.mxu0 0.0
        %1867 = vmatpush1.msra.mxu0 0.0
        %1868 = vmatprep.subr.mxu0 0.0
        %1869 = vmatpush1.msra.mxu0 0.0
        %1870 = vmatprep.subr.mxu0 0.0
        %1871 = vmatpush1.msra.mxu0 0.0
        %1872 = vmatprep.subr.mxu0 0.0
        %1873 = vmatpush1.msra.mxu0 0.0
        %1874 = vmatprep.subr.mxu0 0.0
        %1875 = vmatpush1.msra.mxu0 0.0
        %1876 = vmatprep.subr.mxu0 0.0
        %1877 = vmatpush1.msra.mxu0 0.0
        %1878 = vmatprep.subr.mxu0 0.0
        %1879 = vmatpush1.msra.mxu0 0.0
        %1880 = vmatprep.subr.mxu0 0.0
        %1881 = vmatpush1.msra.mxu0 0.0
        %1882 = vmatprep.mubr.f32.mxu0 0.0
        %1883 = vmatmul.mubr.f32.gmra.mrb[0].mxu0 %v633
        %v1884 = vpop.f32.mrb[0].mxu0
        %v1885 = vadd.f32 %v1660, %v1884
        %v1886 = vpop.f32.mrb[0].mxu0
        %1887 = vmatprep.mubr.f32.mxu0 0.0
        %1888 = vmatmul.mubr.f32.gmra.mrb[0].mxu0 %v635
        %v1889 = vpop.f32.mrb[0].mxu0
        %v1890 = vadd.f32 %v1665, %v1889
        %v1891 = vpop.f32.mrb[0].mxu0
        %1892 = vmatprep.mubr.f32.mxu0 0.0
        %1893 = vmatmul.mubr.f32.gmra.mrb[0].mxu0 %v638
        %v1894 = vpop.f32.mrb[0].mxu0
        %v1895 = vadd.f32 %v1670, %v1894
        %v1896 = vpop.f32.mrb[0].mxu0
        %1897 = vmatprep.mubr.f32.mxu0 0.0
        %1898 = vmatmul.mubr.f32.gmra.mrb[0].mxu0 %v640
        %v1899 = vpop.f32.mrb[0].mxu0
        %v1900 = vadd.f32 %v1675, %v1899
        %v1901 = vpop.f32.mrb[0].mxu0
        %1902 = vmatprep.mubr.f32.mxu0 0.0
        %1903 = vmatmul.mubr.f32.gmra.mrb[0].mxu0 %v643
        %v1904 = vpop.f32.mrb[0].mxu0
        %v1905 = vadd.f32 %v1680, %v1904
        %v1906 = vpop.f32.mrb[0].mxu0
        %1907 = vmatprep.mubr.f32.mxu0 0.0
        %1908 = vmatmul.mubr.f32.gmra.mrb[0].mxu0 %v645
        %v1909 = vpop.f32.mrb[0].mxu0
        %v1910 = vadd.f32 %v1685, %v1909
        %v1911 = vpop.f32.mrb[0].mxu0
        %1912 = vmatprep.mubr.f32.mxu0 0.0
        %1913 = vmatmul.mubr.f32.gmra.mrb[0].mxu0 %v648
        %v1914 = vpop.f32.mrb[0].mxu0
        %v1915 = vadd.f32 %v1690, %v1914
        %v1916 = vpop.f32.mrb[0].mxu0
        %1917 = vmatprep.mubr.f32.mxu0 0.0
        %1918 = vmatmul.mubr.f32.gmra.mrb[0].mxu0 %v650
        %v1919 = vpop.f32.mrb[0].mxu0
        %v1920 = vadd.f32 %v1695, %v1919
        %v1921 = vpop.f32.mrb[0].mxu0
        %1922 = vmatprep.mubr.f32.mxu0 0.0
        %1923 = vmatmul.mubr.f32.gmra.mrb[0].mxu0 %v653
        %v1924 = vpop.f32.mrb[0].mxu0
        %v1925 = vadd.f32 %v1700, %v1924
        %v1926 = vpop.f32.mrb[0].mxu0
        %1927 = vmatprep.mubr.f32.mxu0 0.0
        %1928 = vmatmul.mubr.f32.gmra.mrb[0].mxu0 %v655
        %v1929 = vpop.f32.mrb[0].mxu0
        %v1930 = vadd.f32 %v1705, %v1929
        %v1931 = vpop.f32.mrb[0].mxu0
        %1932 = vmatprep.mubr.f32.mxu0 0.0
        %1933 = vmatmul.mubr.f32.gmra.mrb[0].mxu0 %v658
        %v1934 = vpop.f32.mrb[0].mxu0
        %v1935 = vadd.f32 %v1710, %v1934
        %v1936 = vpop.f32.mrb[0].mxu0
        %1937 = vmatprep.mubr.f32.mxu0 0.0
        %1938 = vmatmul.mubr.f32.gmra.mrb[0].mxu0 %v660
        %v1939 = vpop.f32.mrb[0].mxu0
        %v1940 = vadd.f32 %v1715, %v1939
        %v1941 = vpop.f32.mrb[0].mxu0
        %1942 = vmatprep.mubr.f32.mxu0 0.0
        %1943 = vmatmul.mubr.f32.gmra.mrb[0].mxu0 %v663
        %v1944 = vpop.f32.mrb[0].mxu0
        %v1945 = vadd.f32 %v1720, %v1944
        %v1946 = vpop.f32.mrb[0].mxu0
        %1947 = vmatprep.mubr.f32.mxu0 0.0
        %1948 = vmatmul.mubr.f32.gmra.mrb[0].mxu0 %v665
        %v1949 = vpop.f32.mrb[0].mxu0
        %v1950 = vadd.f32 %v1725, %v1949
        %v1951 = vpop.f32.mrb[0].mxu0
        %1952 = vmatprep.mubr.f32.mxu0 0.0
        %1953 = vmatmul.mubr.f32.gmra.mrb[0].mxu0 %v668
        %v1954 = vpop.f32.mrb[0].mxu0
        %v1955 = vadd.f32 %v1730, %v1954
        %v1956 = vpop.f32.mrb[0].mxu0
        %1957 = vmatprep.mubr.f32.mxu0 0.0
        %1958 = vmatmul.mubr.f32.gmra.mrb[0].mxu0 %v670
        %v1959 = vpop.f32.mrb[0].mxu0
        %v1960 = vadd.f32 %v1735, %v1959
        %v1961 = vpop.f32.mrb[0].mxu0
        %1962 = vmatprep.mubr.f32.mxu0 0.0
        %1963 = vmatmul.mubr.f32.gmra.mrb[0].mxu0 %v673
        %v1964 = vpop.f32.mrb[0].mxu0
        %v1965 = vadd.f32 %v1740, %v1964
        %v1966 = vpop.f32.mrb[0].mxu0
        %1967 = vmatprep.mubr.f32.mxu0 0.0
        %1968 = vmatmul.mubr.f32.gmra.mrb[0].mxu0 %v675
        %v1969 = vpop.f32.mrb[0].mxu0
        %v1970 = vadd.f32 %v1745, %v1969
        %v1971 = vpop.f32.mrb[0].mxu0
        %1972 = vmatprep.mubr.f32.mxu0 0.0
        %1973 = vmatmul.mubr.f32.gmra.mrb[0].mxu0 %v678
        %v1974 = vpop.f32.mrb[0].mxu0
        %v1975 = vadd.f32 %v1750, %v1974
        %v1976 = vpop.f32.mrb[0].mxu0
        %1977 = vmatprep.mubr.f32.mxu0 0.0
        %1978 = vmatmul.mubr.f32.gmra.mrb[0].mxu0 %v680
        %v1979 = vpop.f32.mrb[0].mxu0
        %v1980 = vadd.f32 %v1755, %v1979
        %v1981 = vpop.f32.mrb[0].mxu0
        %1982 = vmatprep.mubr.f32.mxu0 0.0
        %1983 = vmatmul.mubr.f32.gmra.mrb[0].mxu0 %v683
        %v1984 = vpop.f32.mrb[0].mxu0
        %v1985 = vadd.f32 %v1760, %v1984
        %v1986 = vpop.f32.mrb[0].mxu0
        %1987 = vmatprep.mubr.f32.mxu0 0.0
        %1988 = vmatmul.mubr.f32.gmra.mrb[0].mxu0 %v685
        %v1989 = vpop.f32.mrb[0].mxu0
        %v1990 = vadd.f32 %v1765, %v1989
        %v1991 = vpop.f32.mrb[0].mxu0
        %1992 = vmatprep.mubr.f32.mxu0 0.0
        %1993 = vmatmul.mubr.f32.gmra.mrb[0].mxu0 %v688
        %v1994 = vpop.f32.mrb[0].mxu0
        %v1995 = vadd.f32 %v1770, %v1994
        %v1996 = vpop.f32.mrb[0].mxu0
        %1997 = vmatprep.mubr.f32.mxu0 0.0
        %1998 = vmatmul.mubr.f32.gmra.mrb[0].mxu0 %v690
        %v1999 = vpop.f32.mrb[0].mxu0
        %v2000 = vadd.f32 %v1775, %v1999
        %v2001 = vpop.f32.mrb[0].mxu0
        %2002 = vmatprep.mubr.f32.mxu0 0.0
        %2003 = vmatmul.mubr.f32.gmra.mrb[0].mxu0 %v693
        %v2004 = vpop.f32.mrb[0].mxu0
        %v2005 = vadd.f32 %v1780, %v2004
        %v2006 = vpop.f32.mrb[0].mxu0
        %2007 = vmatprep.mubr.f32.mxu0 0.0
        %2008 = vmatmul.mubr.f32.gmra.mrb[0].mxu0 %v695
        %v2009 = vpop.f32.mrb[0].mxu0
        %v2010 = vadd.f32 %v1785, %v2009
        %v2011 = vpop.f32.mrb[0].mxu0
        %2012 = vmatprep.mubr.f32.mxu0 0.0
        %2013 = vmatmul.mubr.f32.gmra.mrb[0].mxu0 %v698
        %v2014 = vpop.f32.mrb[0].mxu0
        %v2015 = vadd.f32 %v1790, %v2014
        %v2016 = vpop.f32.mrb[0].mxu0
        %2017 = vmatprep.mubr.f32.mxu0 0.0
        %2018 = vmatmul.mubr.f32.gmra.mrb[0].mxu0 %v700
        %v2019 = vpop.f32.mrb[0].mxu0
        %v2020 = vadd.f32 %v1795, %v2019
        %v2021 = vpop.f32.mrb[0].mxu0
        %2022 = vmatprep.mubr.f32.mxu0 0.0
        %2023 = vmatmul.mubr.f32.gmra.mrb[0].mxu0 %v745
        %v2024 = vpop.f32.mrb[0].mxu0
        %v2025 = vadd.f32 %v1800, %v2024
        %v2026 = vpop.f32.mrb[0].mxu0
        %2027 = vmatprep.mubr.f32.mxu0 0.0
        %2028 = vmatmul.mubr.f32.gmra.mrb[0].mxu0 %v747
        %v2029 = vpop.f32.mrb[0].mxu0
        %v2030 = vadd.f32 %v1805, %v2029
        %v2031 = vpop.f32.mrb[0].mxu0
        %2032 = vmatprep.mubr.f32.mxu0 0.0
        %2033 = vmatmul.mubr.f32.gmra.mrb[0].mxu0 %v762
        %v2034 = vpop.f32.mrb[0].mxu0
        %v2035 = vadd.f32 %v1810, %v2034
        %v2036 = vpop.f32.mrb[0].mxu0
        %2037 = vmatprep.mubr.f32.mxu0 0.0
        %2038 = vmatmul.mubr.f32.gmra.mrb[0].mxu0 %v764
        %v2039 = vpop.f32.mrb[0].mxu0
        %v2040 = vadd.f32 %v1815, %v2039
        %v2041 = vpop.f32.mrb[0].mxu0
        %2042 = vdwg.mxu0
        %v2043 = vld [vmem:[%s357] sm:$0xff]
        %v2044 = vld [vmem:[%s357 + $0x8] sm:$0x3]
        %v2045 = vld [vmem:[%s357 + $0x10] sm:$0xff]
        %v2046 = vld [vmem:[%s357 + $0x18] sm:$0x3]
        %v2047 = vld [vmem:[%s357 + $0x20] sm:$0xff]
        %v2048 = vld [vmem:[%s357 + $0x28] sm:$0x3]
        %v2049 = vld [vmem:[%s357 + $0x30] sm:$0xff]
        %v2050 = vld [vmem:[%s357 + $0x38] sm:$0x3]
        %v2051 = vld [vmem:[%s357 + $0x40] sm:$0xff]
        %v2052 = vld [vmem:[%s357 + $0x48] sm:$0x3]
        %v2053 = vld [vmem:[%s357 + $0x50] sm:$0xff]
        %v2054 = vld [vmem:[%s357 + $0x58] sm:$0x3]
        %v2055 = vld [vmem:[%s357 + $0x60] sm:$0xff]
        %v2056 = vld [vmem:[%s357 + $0x68] sm:$0x3]
        %v2057 = vld [vmem:[%s357 + $0x70] sm:$0xff]
        %v2058 = vld [vmem:[%s357 + $0x78] sm:$0x3]
        %v2059 = vld [vmem:[%s357 + $0x80] sm:$0xff]
        %v2060 = vld [vmem:[%s357 + $0x88] sm:$0x3]
        %v2061 = vld [vmem:[%s357 + $0x90] sm:$0xff]
        %v2062 = vld [vmem:[%s357 + $0x98] sm:$0x3]
        %v2079 = vrot.slane %v2043, 1
        %v2080 = vrot.slane %v2044, 1
        %v2081 = vsel %vm507, %v2079, %v2080
        %v2082 = vrot.slane %v2045, 1
        %v2083 = vrot.slane %v2046, 1
        %v2084 = vsel %vm507, %v2082, %v2083
        %v2085 = vrot.slane %v2047, 1
        %v2086 = vrot.slane %v2048, 1
        %v2087 = vsel %vm507, %v2085, %v2086
        %v2088 = vrot.slane %v2049, 1
        %v2089 = vrot.slane %v2050, 1
        %v2090 = vsel %vm507, %v2088, %v2089
        %v2091 = vrot.slane %v2051, 1
        %v2092 = vrot.slane %v2052, 1
        %v2093 = vsel %vm507, %v2091, %v2092
        %v2094 = vrot.slane %v2053, 1
        %v2095 = vrot.slane %v2054, 1
        %v2096 = vsel %vm507, %v2094, %v2095
        %v2097 = vrot.slane %v2055, 1
        %v2098 = vrot.slane %v2056, 1
        %v2099 = vsel %vm507, %v2097, %v2098
        %v2100 = vrot.slane %v2057, 1
        %v2101 = vrot.slane %v2058, 1
        %v2102 = vsel %vm507, %v2100, %v2101
        %v2111 = vrot.slane %v2043, 2
        %v2112 = vrot.slane %v2044, 2
        %v2113 = vsel %vm620, %v2111, %v2112
        %v2114 = vrot.slane %v2045, 2
        %v2115 = vrot.slane %v2046, 2
        %v2116 = vsel %vm620, %v2114, %v2115
        %v2117 = vrot.slane %v2047, 2
        %v2118 = vrot.slane %v2048, 2
        %v2119 = vsel %vm620, %v2117, %v2118
        %v2120 = vrot.slane %v2049, 2
        %v2121 = vrot.slane %v2050, 2
        %v2122 = vsel %vm620, %v2120, %v2121
        %v2123 = vrot.slane %v2051, 2
        %v2124 = vrot.slane %v2052, 2
        %v2125 = vsel %vm620, %v2123, %v2124
        %v2126 = vrot.slane %v2053, 2
        %v2127 = vrot.slane %v2054, 2
        %v2128 = vsel %vm620, %v2126, %v2127
        %v2129 = vrot.slane %v2055, 2
        %v2130 = vrot.slane %v2056, 2
        %v2131 = vsel %vm620, %v2129, %v2130
        %v2132 = vrot.slane %v2057, 2
        %v2133 = vrot.slane %v2058, 2
        %v2134 = vsel %vm620, %v2132, %v2133
        %v2145 = vrot.slane %v2059, 1
        %v2146 = vrot.slane %v2060, 1
        %v2147 = vsel %vm507, %v2145, %v2146
        %v2149 = vrot.slane %v2059, 2
        %v2150 = vrot.slane %v2060, 2
        %v2151 = vsel %vm620, %v2149, %v2150
        %v2155 = vrot.slane %v2061, 1
        %v2156 = vrot.slane %v2062, 1
        %v2157 = vsel %vm507, %v2155, %v2156
        %v2159 = vrot.slane %v2061, 2
        %v2160 = vrot.slane %v2062, 2
        %v2161 = vsel %vm620, %v2159, %v2160
        %v2163 = vld [vmem:[#allocation10] sm:$0xff]
        %v2164 = vld [vmem:[#allocation10 + $0x8] sm:$0xff]
        %v2165 = vld [vmem:[#allocation10 + $0x10] sm:$0xff]
        %v2166 = vld [vmem:[#allocation10 + $0x18] sm:$0xff]
        %v2167 = vld [vmem:[#allocation10 + $0x20] sm:$0xff]
        %v2168 = vld [vmem:[#allocation10 + $0x28] sm:$0xff]
        %v2169 = vld [vmem:[#allocation10 + $0x30] sm:$0xff]
        %v2170 = vld [vmem:[#allocation10 + $0x38] sm:$0xff]
        %v2171 = vld [vmem:[#allocation10 + $0x40] sm:$0xff]
        %v2172 = vld [vmem:[#allocation10 + $0x48] sm:$0xff]
        %v2173 = vld [vmem:[#allocation10 + $0x50] sm:$0xff]
        %v2174 = vld [vmem:[#allocation10 + $0x58] sm:$0xff]
        %v2175 = vld [vmem:[#allocation10 + $0x60] sm:$0xff]
        %v2176 = vld [vmem:[#allocation10 + $0x68] sm:$0xff]
        %v2177 = vld [vmem:[#allocation10 + $0x70] sm:$0xff]
        %v2178 = vld [vmem:[#allocation10 + $0x78] sm:$0xff]
        %v2179 = vld [vmem:[#allocation10 + $0x80] sm:$0xff]
        %v2180 = vld [vmem:[#allocation10 + $0x88] sm:$0xff]
        %v2181 = vld [vmem:[#allocation10 + $0x90] sm:$0xff]
        %v2182 = vld [vmem:[#allocation10 + $0x98] sm:$0xff]
        %v2183 = vld [vmem:[#allocation10 + $0xa0] sm:$0xff]
        %v2184 = vld [vmem:[#allocation10 + $0xa8] sm:$0xff]
        %v2185 = vld [vmem:[#allocation10 + $0xb0] sm:$0xff]
        %v2186 = vld [vmem:[#allocation10 + $0xb8] sm:$0xff]
        %v2187 = vld [vmem:[#allocation10 + $0xc0] sm:$0xff]
        %v2188 = vld [vmem:[#allocation10 + $0xc8] sm:$0xff]
        %v2189 = vld [vmem:[#allocation10 + $0xd0] sm:$0xff]
        %v2190 = vld [vmem:[#allocation10 + $0xd8] sm:$0xff]
        %v2191 = vld [vmem:[#allocation10 + $0xe0] sm:$0xff]
        %v2192 = vld [vmem:[#allocation10 + $0xe8] sm:$0xff]
        %v2193 = vld [vmem:[#allocation10 + $0xf0] sm:$0xff]
        %v2194 = vld [vmem:[#allocation10 + $0xf8] sm:$0xff]
        %v2195 = vld [vmem:[#allocation10 + $0x100] sm:$0xff]
        %v2196 = vld [vmem:[#allocation10 + $0x108] sm:$0xff]
        %v2197 = vld [vmem:[#allocation10 + $0x110] sm:$0xff]
        %v2198 = vld [vmem:[#allocation10 + $0x118] sm:$0xff]
        %v2199 = vld [vmem:[#allocation10 + $0x120] sm:$0xff]
        %v2200 = vld [vmem:[#allocation10 + $0x128] sm:$0xff]
        %v2201 = vld [vmem:[#allocation10 + $0x130] sm:$0xff]
        %v2202 = vld [vmem:[#allocation10 + $0x138] sm:$0xff]
        %v2203 = vld [vmem:[#allocation10 + $0x140] sm:$0xff]
        %v2204 = vld [vmem:[#allocation10 + $0x148] sm:$0xff]
        %v2205 = vld [vmem:[#allocation10 + $0x150] sm:$0xff]
        %v2206 = vld [vmem:[#allocation10 + $0x158] sm:$0xff]
        %v2207 = vld [vmem:[#allocation10 + $0x160] sm:$0xff]
        %v2208 = vld [vmem:[#allocation10 + $0x168] sm:$0xff]
        %v2209 = vld [vmem:[#allocation10 + $0x170] sm:$0xff]
        %v2210 = vld [vmem:[#allocation10 + $0x178] sm:$0xff]
        %v2211 = vld [vmem:[#allocation10 + $0x180] sm:$0xff]
        %v2212 = vld [vmem:[#allocation10 + $0x188] sm:$0xff]
        %v2213 = vld [vmem:[#allocation10 + $0x190] sm:$0xff]
        %v2214 = vld [vmem:[#allocation10 + $0x198] sm:$0xff]
        %v2215 = vld [vmem:[#allocation10 + $0x1a0] sm:$0xff]
        %v2216 = vld [vmem:[#allocation10 + $0x1a8] sm:$0xff]
        %v2217 = vld [vmem:[#allocation10 + $0x1b0] sm:$0xff]
        %v2218 = vld [vmem:[#allocation10 + $0x1b8] sm:$0xff]
        %v2219 = vld [vmem:[#allocation10 + $0x1c0] sm:$0xff]
        %v2220 = vld [vmem:[#allocation10 + $0x1c8] sm:$0xff]
        %v2221 = vld [vmem:[#allocation10 + $0x1d0] sm:$0xff]
        %v2222 = vld [vmem:[#allocation10 + $0x1d8] sm:$0xff]
        %v2223 = vld [vmem:[#allocation10 + $0x1e0] sm:$0xff]
        %v2224 = vld [vmem:[#allocation10 + $0x1e8] sm:$0xff]
        %v2225 = vld [vmem:[#allocation10 + $0x1f0] sm:$0xff]
        %v2226 = vld [vmem:[#allocation10 + $0x1f8] sm:$0xff]
        %v2227 = vld [vmem:[#allocation10 + $0x200] sm:$0xff]
        %v2228 = vld [vmem:[#allocation10 + $0x208] sm:$0xff]
        %v2229 = vld [vmem:[#allocation10 + $0x210] sm:$0xff]
        %v2230 = vld [vmem:[#allocation10 + $0x218] sm:$0xff]
        %v2231 = vld [vmem:[#allocation10 + $0x220] sm:$0xff]
        %v2232 = vld [vmem:[#allocation10 + $0x228] sm:$0xff]
        %v2233 = vld [vmem:[#allocation10 + $0x230] sm:$0xff]
        %v2234 = vld [vmem:[#allocation10 + $0x238] sm:$0xff]
        %v2235 = vld [vmem:[#allocation10 + $0x240] sm:$0xff]
        %v2236 = vld [vmem:[#allocation10 + $0x248] sm:$0xff]
        %v2237 = vld [vmem:[#allocation10 + $0x250] sm:$0xff]
        %v2238 = vld [vmem:[#allocation10 + $0x258] sm:$0xff]
        %v2239 = vld [vmem:[#allocation10 + $0x260] sm:$0xff]
        %v2240 = vld [vmem:[#allocation10 + $0x268] sm:$0xff]
        %v2241 = vld [vmem:[#allocation10 + $0x270] sm:$0xff]
        %v2242 = vld [vmem:[#allocation10 + $0x278] sm:$0xff]
        %v2243 = vld [vmem:[#allocation10 + $0x280] sm:$0xff]
        %v2244 = vld [vmem:[#allocation10 + $0x288] sm:$0xff]
        %v2245 = vld [vmem:[#allocation10 + $0x290] sm:$0xff]
        %v2246 = vld [vmem:[#allocation10 + $0x298] sm:$0xff]
        %v2247 = vld [vmem:[#allocation10 + $0x2a0] sm:$0xff]
        %v2248 = vld [vmem:[#allocation10 + $0x2a8] sm:$0xff]
        %v2249 = vld [vmem:[#allocation10 + $0x2b0] sm:$0xff]
        %v2250 = vld [vmem:[#allocation10 + $0x2b8] sm:$0xff]
        %v2251 = vld [vmem:[#allocation10 + $0x2c0] sm:$0xff]
        %v2252 = vld [vmem:[#allocation10 + $0x2c8] sm:$0xff]
        %v2253 = vld [vmem:[#allocation10 + $0x2d0] sm:$0xff]
        %v2254 = vld [vmem:[#allocation10 + $0x2d8] sm:$0xff]
        %v2255 = vld [vmem:[#allocation10 + $0x2e0] sm:$0xff]
        %v2256 = vld [vmem:[#allocation10 + $0x2e8] sm:$0xff]
        %v2257 = vld [vmem:[#allocation10 + $0x2f0] sm:$0xff]
        %v2258 = vld [vmem:[#allocation10 + $0x2f8] sm:$0xff]
        %v2259 = vld [vmem:[#allocation10 + $0x300] sm:$0xff]
        %v2260 = vld [vmem:[#allocation10 + $0x308] sm:$0xff]
        %v2261 = vld [vmem:[#allocation10 + $0x310] sm:$0xff]
        %v2262 = vld [vmem:[#allocation10 + $0x318] sm:$0xff]
        %v2263 = vld [vmem:[#allocation10 + $0x320] sm:$0xff]
        %v2264 = vld [vmem:[#allocation10 + $0x328] sm:$0xff]
        %v2265 = vld [vmem:[#allocation10 + $0x330] sm:$0xff]
        %v2266 = vld [vmem:[#allocation10 + $0x338] sm:$0xff]
        %v2267 = vld [vmem:[#allocation10 + $0x340] sm:$0xff]
        %v2268 = vld [vmem:[#allocation10 + $0x348] sm:$0xff]
        %v2269 = vld [vmem:[#allocation10 + $0x350] sm:$0xff]
        %v2270 = vld [vmem:[#allocation10 + $0x358] sm:$0xff]
        %v2271 = vld [vmem:[#allocation10 + $0x360] sm:$0xff]
        %v2272 = vld [vmem:[#allocation10 + $0x368] sm:$0xff]
        %v2273 = vld [vmem:[#allocation10 + $0x370] sm:$0xff]
        %v2274 = vld [vmem:[#allocation10 + $0x378] sm:$0xff]
        %v2275 = vld [vmem:[#allocation10 + $0x380] sm:$0xff]
        %v2276 = vld [vmem:[#allocation10 + $0x388] sm:$0xff]
        %v2277 = vld [vmem:[#allocation10 + $0x390] sm:$0xff]
        %v2278 = vld [vmem:[#allocation10 + $0x398] sm:$0xff]
        %v2279 = vld [vmem:[#allocation10 + $0x3a0] sm:$0xff]
        %v2280 = vld [vmem:[#allocation10 + $0x3a8] sm:$0xff]
        %v2281 = vld [vmem:[#allocation10 + $0x3b0] sm:$0xff]
        %v2282 = vld [vmem:[#allocation10 + $0x3b8] sm:$0xff]
        %v2283 = vld [vmem:[#allocation10 + $0x3c0] sm:$0xff]
        %v2284 = vld [vmem:[#allocation10 + $0x3c8] sm:$0xff]
        %v2285 = vld [vmem:[#allocation10 + $0x3d0] sm:$0xff]
        %v2286 = vld [vmem:[#allocation10 + $0x3d8] sm:$0xff]
        %v2287 = vld [vmem:[#allocation10 + $0x3e0] sm:$0xff]
        %v2288 = vld [vmem:[#allocation10 + $0x3e8] sm:$0xff]
        %v2289 = vld [vmem:[#allocation10 + $0x3f0] sm:$0xff]
        %v2290 = vld [vmem:[#allocation10 + $0x3f8] sm:$0xff]
        %v2291 = vld [vmem:[#allocation10 + $0x400] sm:$0xff]
        %v2292 = vld [vmem:[#allocation10 + $0x408] sm:$0xff]
        %v2293 = vld [vmem:[#allocation10 + $0x410] sm:$0xff]
        %v2294 = vld [vmem:[#allocation10 + $0x418] sm:$0xff]
        %v2295 = vld [vmem:[#allocation10 + $0x420] sm:$0xff]
        %v2296 = vld [vmem:[#allocation10 + $0x428] sm:$0xff]
        %v2297 = vld [vmem:[#allocation10 + $0x430] sm:$0xff]
        %v2298 = vld [vmem:[#allocation10 + $0x438] sm:$0xff]
        %v2299 = vld [vmem:[#allocation10 + $0x440] sm:$0xff]
        %v2300 = vld [vmem:[#allocation10 + $0x448] sm:$0xff]
        %v2301 = vld [vmem:[#allocation10 + $0x450] sm:$0xff]
        %v2302 = vld [vmem:[#allocation10 + $0x458] sm:$0xff]
        %v2303 = vld [vmem:[#allocation10 + $0x460] sm:$0xff]
        %v2304 = vld [vmem:[#allocation10 + $0x468] sm:$0xff]
        %v2305 = vld [vmem:[#allocation10 + $0x470] sm:$0xff]
        %v2306 = vld [vmem:[#allocation10 + $0x478] sm:$0xff]
        %v2307 = vld [vmem:[#allocation11] sm:$0x1]
        %v2309 = vlaneseq
        %v2310 = vshrl.u32 %v2309, 7
        %v2311 = vsub.s32 0, %v2310
        %v2312 = vrot.slane %v2307, %v2311
        %2314 = vmatprep.subr.mxu0 0.0
        %2315 = vmatpush1.msra.mxu0 %v2163
        %2316 = vmatprep.subr.mxu0 0.0
        %2317 = vmatpush1.msra.mxu0 %v2164
        %2318 = vmatprep.subr.mxu0 0.0
        %2319 = vmatpush1.msra.mxu0 %v2165
        %2320 = vmatprep.subr.mxu0 0.0
        %2321 = vmatpush1.msra.mxu0 %v2166
        %2322 = vmatprep.subr.mxu0 0.0
        %2323 = vmatpush1.msra.mxu0 %v2167
        %2324 = vmatprep.subr.mxu0 0.0
        %2325 = vmatpush1.msra.mxu0 %v2168
        %2326 = vmatprep.subr.mxu0 0.0
        %2327 = vmatpush1.msra.mxu0 %v2169
        %2328 = vmatprep.subr.mxu0 0.0
        %2329 = vmatpush1.msra.mxu0 %v2170
        %2330 = vmatprep.subr.mxu0 0.0
        %2331 = vmatpush1.msra.mxu0 %v2171
        %2332 = vmatprep.subr.mxu0 0.0
        %2333 = vmatpush1.msra.mxu0 %v2172
        %2334 = vmatprep.subr.mxu0 0.0
        %2335 = vmatpush1.msra.mxu0 %v2173
        %2336 = vmatprep.subr.mxu0 0.0
        %2337 = vmatpush1.msra.mxu0 %v2174
        %2338 = vmatprep.subr.mxu0 0.0
        %2339 = vmatpush1.msra.mxu0 %v2175
        %2340 = vmatprep.subr.mxu0 0.0
        %2341 = vmatpush1.msra.mxu0 %v2176
        %2342 = vmatprep.subr.mxu0 0.0
        %2343 = vmatpush1.msra.mxu0 %v2177
        %2344 = vmatprep.subr.mxu0 0.0
        %2345 = vmatpush1.msra.mxu0 %v2178
        %2346 = vmatprep.subr.mxu0 0.0
        %2347 = vmatpush1.msra.mxu0 %v2179
        %2348 = vmatprep.subr.mxu0 0.0
        %2349 = vmatpush1.msra.mxu0 %v2180
        %2350 = vmatprep.subr.mxu0 0.0
        %2351 = vmatpush1.msra.mxu0 %v2181
        %2352 = vmatprep.subr.mxu0 0.0
        %2353 = vmatpush1.msra.mxu0 %v2182
        %2354 = vmatprep.subr.mxu0 0.0
        %2355 = vmatpush1.msra.mxu0 %v2183
        %2356 = vmatprep.subr.mxu0 0.0
        %2357 = vmatpush1.msra.mxu0 %v2184
        %2358 = vmatprep.subr.mxu0 0.0
        %2359 = vmatpush1.msra.mxu0 %v2185
        %2360 = vmatprep.subr.mxu0 0.0
        %2361 = vmatpush1.msra.mxu0 %v2186
        %2362 = vmatprep.subr.mxu0 0.0
        %2363 = vmatpush1.msra.mxu0 %v2187
        %2364 = vmatprep.subr.mxu0 0.0
        %2365 = vmatpush1.msra.mxu0 %v2188
        %2366 = vmatprep.subr.mxu0 0.0
        %2367 = vmatpush1.msra.mxu0 %v2189
        %2368 = vmatprep.subr.mxu0 0.0
        %2369 = vmatpush1.msra.mxu0 %v2190
        %2370 = vmatprep.subr.mxu0 0.0
        %2371 = vmatpush1.msra.mxu0 %v2191
        %2372 = vmatprep.subr.mxu0 0.0
        %2373 = vmatpush1.msra.mxu0 %v2192
        %2374 = vmatprep.subr.mxu0 0.0
        %2375 = vmatpush1.msra.mxu0 %v2193
        %2376 = vmatprep.subr.mxu0 0.0
        %2377 = vmatpush1.msra.mxu0 %v2194
        %2378 = vmatprep.mubr.f32.mxu0 %v2081
        %2379 = vmatmul.mubr.f32.gmra.mrb[0].mxu0 %v2043
        %v2380 = vpop.f32.mrb[0].mxu0
        %v2381 = vadd.f32 %v2312, %v2380
        %v2382 = vpop.f32.mrb[0].mxu0
        %2383 = vmatprep.mubr.f32.mxu0 %v2084
        %2384 = vmatmul.mubr.f32.gmra.mrb[0].mxu0 %v2045
        %v2385 = vpop.f32.mrb[0].mxu0
        %v2386 = vadd.f32 %v2312, %v2385
        %v2387 = vpop.f32.mrb[0].mxu0
        %2388 = vmatprep.mubr.f32.mxu0 %v2087
        %2389 = vmatmul.mubr.f32.gmra.mrb[0].mxu0 %v2047
        %v2390 = vpop.f32.mrb[0].mxu0
        %v2391 = vadd.f32 %v2312, %v2390
        %v2392 = vpop.f32.mrb[0].mxu0
        %2393 = vmatprep.mubr.f32.mxu0 %v2090
        %2394 = vmatmul.mubr.f32.gmra.mrb[0].mxu0 %v2049
        %v2395 = vpop.f32.mrb[0].mxu0
        %v2396 = vadd.f32 %v2312, %v2395
        %v2397 = vpop.f32.mrb[0].mxu0
        %2398 = vmatprep.mubr.f32.mxu0 %v2093
        %2399 = vmatmul.mubr.f32.gmra.mrb[0].mxu0 %v2051
        %v2400 = vpop.f32.mrb[0].mxu0
        %v2401 = vadd.f32 %v2312, %v2400
        %v2402 = vpop.f32.mrb[0].mxu0
        %2403 = vmatprep.mubr.f32.mxu0 %v2096
        %2404 = vmatmul.mubr.f32.gmra.mrb[0].mxu0 %v2053
        %v2405 = vpop.f32.mrb[0].mxu0
        %v2406 = vadd.f32 %v2312, %v2405
        %v2407 = vpop.f32.mrb[0].mxu0
        %2408 = vmatprep.mubr.f32.mxu0 %v2099
        %2409 = vmatmul.mubr.f32.gmra.mrb[0].mxu0 %v2055
        %v2410 = vpop.f32.mrb[0].mxu0
        %v2411 = vadd.f32 %v2312, %v2410
        %v2412 = vpop.f32.mrb[0].mxu0
        %2413 = vmatprep.mubr.f32.mxu0 %v2102
        %2414 = vmatmul.mubr.f32.gmra.mrb[0].mxu0 %v2057
        %v2415 = vpop.f32.mrb[0].mxu0
        %v2416 = vadd.f32 %v2312, %v2415
        %v2417 = vpop.f32.mrb[0].mxu0
        %2418 = vdwg.mxu0
        %2419 = vmatprep.subr.mxu0 0.0
        %2420 = vmatpush1.msra.mxu0 %v2195
        %2421 = vmatprep.subr.mxu0 0.0
        %2422 = vmatpush1.msra.mxu0 %v2196
        %2423 = vmatprep.subr.mxu0 0.0
        %2424 = vmatpush1.msra.mxu0 %v2197
        %2425 = vmatprep.subr.mxu0 0.0
        %2426 = vmatpush1.msra.mxu0 %v2198
        %2427 = vmatprep.subr.mxu0 0.0
        %2428 = vmatpush1.msra.mxu0 %v2199
        %2429 = vmatprep.subr.mxu0 0.0
        %2430 = vmatpush1.msra.mxu0 %v2200
        %2431 = vmatprep.subr.mxu0 0.0
        %2432 = vmatpush1.msra.mxu0 %v2201
        %2433 = vmatprep.subr.mxu0 0.0
        %2434 = vmatpush1.msra.mxu0 %v2202
        %2435 = vmatprep.subr.mxu0 0.0
        %2436 = vmatpush1.msra.mxu0 %v2203
        %2437 = vmatprep.subr.mxu0 0.0
        %2438 = vmatpush1.msra.mxu0 %v2204
        %2439 = vmatprep.subr.mxu0 0.0
        %2440 = vmatpush1.msra.mxu0 %v2205
        %2441 = vmatprep.subr.mxu0 0.0
        %2442 = vmatpush1.msra.mxu0 %v2206
        %2443 = vmatprep.subr.mxu0 0.0
        %2444 = vmatpush1.msra.mxu0 %v2207
        %2445 = vmatprep.subr.mxu0 0.0
        %2446 = vmatpush1.msra.mxu0 %v2208
        %2447 = vmatprep.subr.mxu0 0.0
        %2448 = vmatpush1.msra.mxu0 %v2209
        %2449 = vmatprep.subr.mxu0 0.0
        %2450 = vmatpush1.msra.mxu0 %v2210
        %2451 = vmatprep.subr.mxu0 0.0
        %2452 = vmatpush1.msra.mxu0 %v2211
        %2453 = vmatprep.subr.mxu0 0.0
        %2454 = vmatpush1.msra.mxu0 %v2212
        %2455 = vmatprep.subr.mxu0 0.0
        %2456 = vmatpush1.msra.mxu0 %v2213
        %2457 = vmatprep.subr.mxu0 0.0
        %2458 = vmatpush1.msra.mxu0 %v2214
        %2459 = vmatprep.subr.mxu0 0.0
        %2460 = vmatpush1.msra.mxu0 %v2215
        %2461 = vmatprep.subr.mxu0 0.0
        %2462 = vmatpush1.msra.mxu0 %v2216
        %2463 = vmatprep.subr.mxu0 0.0
        %2464 = vmatpush1.msra.mxu0 %v2217
        %2465 = vmatprep.subr.mxu0 0.0
        %2466 = vmatpush1.msra.mxu0 %v2218
        %2467 = vmatprep.subr.mxu0 0.0
        %2468 = vmatpush1.msra.mxu0 %v2219
        %2469 = vmatprep.subr.mxu0 0.0
        %2470 = vmatpush1.msra.mxu0 %v2220
        %2471 = vmatprep.subr.mxu0 0.0
        %2472 = vmatpush1.msra.mxu0 %v2221
        %2473 = vmatprep.subr.mxu0 0.0
        %2474 = vmatpush1.msra.mxu0 %v2222
        %2475 = vmatprep.subr.mxu0 0.0
        %2476 = vmatpush1.msra.mxu0 %v2223
        %2477 = vmatprep.subr.mxu0 0.0
        %2478 = vmatpush1.msra.mxu0 %v2224
        %2479 = vmatprep.subr.mxu0 0.0
        %2480 = vmatpush1.msra.mxu0 %v2225
        %2481 = vmatprep.subr.mxu0 0.0
        %2482 = vmatpush1.msra.mxu0 %v2226
        %2483 = vmatprep.mubr.f32.mxu0 %v2045
        %2484 = vmatmul.mubr.f32.gmra.mrb[0].mxu0 %v2113
        %v2485 = vpop.f32.mrb[0].mxu0
        %v2486 = vadd.f32 %v2381, %v2485
        %v2487 = vpop.f32.mrb[0].mxu0
        %2488 = vmatprep.mubr.f32.mxu0 %v2047
        %2489 = vmatmul.mubr.f32.gmra.mrb[0].mxu0 %v2116
        %v2490 = vpop.f32.mrb[0].mxu0
        %v2491 = vadd.f32 %v2386, %v2490
        %v2492 = vpop.f32.mrb[0].mxu0
        %2493 = vmatprep.mubr.f32.mxu0 %v2049
        %2494 = vmatmul.mubr.f32.gmra.mrb[0].mxu0 %v2119
        %v2495 = vpop.f32.mrb[0].mxu0
        %v2496 = vadd.f32 %v2391, %v2495
        %v2497 = vpop.f32.mrb[0].mxu0
        %2498 = vmatprep.mubr.f32.mxu0 %v2051
        %2499 = vmatmul.mubr.f32.gmra.mrb[0].mxu0 %v2122
        %v2500 = vpop.f32.mrb[0].mxu0
        %v2501 = vadd.f32 %v2396, %v2500
        %v2502 = vpop.f32.mrb[0].mxu0
        %2503 = vmatprep.mubr.f32.mxu0 %v2053
        %2504 = vmatmul.mubr.f32.gmra.mrb[0].mxu0 %v2125
        %v2505 = vpop.f32.mrb[0].mxu0
        %v2506 = vadd.f32 %v2401, %v2505
        %v2507 = vpop.f32.mrb[0].mxu0
        %2508 = vmatprep.mubr.f32.mxu0 %v2055
        %2509 = vmatmul.mubr.f32.gmra.mrb[0].mxu0 %v2128
        %v2510 = vpop.f32.mrb[0].mxu0
        %v2511 = vadd.f32 %v2406, %v2510
        %v2512 = vpop.f32.mrb[0].mxu0
        %2513 = vmatprep.mubr.f32.mxu0 %v2057
        %2514 = vmatmul.mubr.f32.gmra.mrb[0].mxu0 %v2131
        %v2515 = vpop.f32.mrb[0].mxu0
        %v2516 = vadd.f32 %v2411, %v2515
        %v2517 = vpop.f32.mrb[0].mxu0
        %2518 = vmatprep.mubr.f32.mxu0 %v2059
        %2519 = vmatmul.mubr.f32.gmra.mrb[0].mxu0 %v2134
        %v2520 = vpop.f32.mrb[0].mxu0
        %v2521 = vadd.f32 %v2416, %v2520
        %v2522 = vpop.f32.mrb[0].mxu0
        %2523 = vdwg.mxu0
        %2524 = vmatprep.subr.mxu0 0.0
        %2525 = vmatpush1.msra.mxu0 %v2227
        %2526 = vmatprep.subr.mxu0 0.0
        %2527 = vmatpush1.msra.mxu0 %v2228
        %2528 = vmatprep.subr.mxu0 0.0
        %2529 = vmatpush1.msra.mxu0 %v2229
        %2530 = vmatprep.subr.mxu0 0.0
        %2531 = vmatpush1.msra.mxu0 %v2230
        %2532 = vmatprep.subr.mxu0 0.0
        %2533 = vmatpush1.msra.mxu0 %v2231
        %2534 = vmatprep.subr.mxu0 0.0
        %2535 = vmatpush1.msra.mxu0 %v2232
        %2536 = vmatprep.subr.mxu0 0.0
        %2537 = vmatpush1.msra.mxu0 %v2233
        %2538 = vmatprep.subr.mxu0 0.0
        %2539 = vmatpush1.msra.mxu0 %v2234
        %2540 = vmatprep.subr.mxu0 0.0
        %2541 = vmatpush1.msra.mxu0 %v2235
        %2542 = vmatprep.subr.mxu0 0.0
        %2543 = vmatpush1.msra.mxu0 %v2236
        %2544 = vmatprep.subr.mxu0 0.0
        %2545 = vmatpush1.msra.mxu0 %v2237
        %2546 = vmatprep.subr.mxu0 0.0
        %2547 = vmatpush1.msra.mxu0 %v2238
        %2548 = vmatprep.subr.mxu0 0.0
        %2549 = vmatpush1.msra.mxu0 %v2239
        %2550 = vmatprep.subr.mxu0 0.0
        %2551 = vmatpush1.msra.mxu0 %v2240
        %2552 = vmatprep.subr.mxu0 0.0
        %2553 = vmatpush1.msra.mxu0 %v2241
        %2554 = vmatprep.subr.mxu0 0.0
        %2555 = vmatpush1.msra.mxu0 %v2242
        %2556 = vmatprep.subr.mxu0 0.0
        %2557 = vmatpush1.msra.mxu0 %v2243
        %2558 = vmatprep.subr.mxu0 0.0
        %2559 = vmatpush1.msra.mxu0 %v2244
        %2560 = vmatprep.subr.mxu0 0.0
        %2561 = vmatpush1.msra.mxu0 %v2245
        %2562 = vmatprep.subr.mxu0 0.0
        %2563 = vmatpush1.msra.mxu0 %v2246
        %2564 = vmatprep.subr.mxu0 0.0
        %2565 = vmatpush1.msra.mxu0 %v2247
        %2566 = vmatprep.subr.mxu0 0.0
        %2567 = vmatpush1.msra.mxu0 %v2248
        %2568 = vmatprep.subr.mxu0 0.0
        %2569 = vmatpush1.msra.mxu0 %v2249
        %2570 = vmatprep.subr.mxu0 0.0
        %2571 = vmatpush1.msra.mxu0 %v2250
        %2572 = vmatprep.subr.mxu0 0.0
        %2573 = vmatpush1.msra.mxu0 %v2251
        %2574 = vmatprep.subr.mxu0 0.0
        %2575 = vmatpush1.msra.mxu0 %v2252
        %2576 = vmatprep.subr.mxu0 0.0
        %2577 = vmatpush1.msra.mxu0 %v2253
        %2578 = vmatprep.subr.mxu0 0.0
        %2579 = vmatpush1.msra.mxu0 %v2254
        %2580 = vmatprep.subr.mxu0 0.0
        %2581 = vmatpush1.msra.mxu0 %v2255
        %2582 = vmatprep.subr.mxu0 0.0
        %2583 = vmatpush1.msra.mxu0 %v2256
        %2584 = vmatprep.subr.mxu0 0.0
        %2585 = vmatpush1.msra.mxu0 %v2257
        %2586 = vmatprep.subr.mxu0 0.0
        %2587 = vmatpush1.msra.mxu0 %v2258
        %2588 = vmatprep.mubr.f32.mxu0 %v2116
        %2589 = vmatmul.mubr.f32.gmra.mrb[0].mxu0 %v2084
        %v2590 = vpop.f32.mrb[0].mxu0
        %v2591 = vadd.f32 %v2486, %v2590
        %v2592 = vpop.f32.mrb[0].mxu0
        %2593 = vmatprep.mubr.f32.mxu0 %v2119
        %2594 = vmatmul.mubr.f32.gmra.mrb[0].mxu0 %v2087
        %v2595 = vpop.f32.mrb[0].mxu0
        %v2596 = vadd.f32 %v2491, %v2595
        %v2597 = vpop.f32.mrb[0].mxu0
        %2598 = vmatprep.mubr.f32.mxu0 %v2122
        %2599 = vmatmul.mubr.f32.gmra.mrb[0].mxu0 %v2090
        %v2600 = vpop.f32.mrb[0].mxu0
        %v2601 = vadd.f32 %v2496, %v2600
        %v2602 = vpop.f32.mrb[0].mxu0
        %2603 = vmatprep.mubr.f32.mxu0 %v2125
        %2604 = vmatmul.mubr.f32.gmra.mrb[0].mxu0 %v2093
        %v2605 = vpop.f32.mrb[0].mxu0
        %v2606 = vadd.f32 %v2501, %v2605
        %v2607 = vpop.f32.mrb[0].mxu0
        %2608 = vmatprep.mubr.f32.mxu0 %v2128
        %2609 = vmatmul.mubr.f32.gmra.mrb[0].mxu0 %v2096
        %v2610 = vpop.f32.mrb[0].mxu0
        %v2611 = vadd.f32 %v2506, %v2610
        %v2612 = vpop.f32.mrb[0].mxu0
        %2613 = vmatprep.mubr.f32.mxu0 %v2131
        %2614 = vmatmul.mubr.f32.gmra.mrb[0].mxu0 %v2099
        %v2615 = vpop.f32.mrb[0].mxu0
        %v2616 = vadd.f32 %v2511, %v2615
        %v2617 = vpop.f32.mrb[0].mxu0
        %2618 = vmatprep.mubr.f32.mxu0 %v2134
        %2619 = vmatmul.mubr.f32.gmra.mrb[0].mxu0 %v2102
        %v2620 = vpop.f32.mrb[0].mxu0
        %v2621 = vadd.f32 %v2516, %v2620
        %v2622 = vpop.f32.mrb[0].mxu0
        %2623 = vmatprep.mubr.f32.mxu0 %v2151
        %2624 = vmatmul.mubr.f32.gmra.mrb[0].mxu0 %v2147
        %v2625 = vpop.f32.mrb[0].mxu0
        %v2626 = vadd.f32 %v2521, %v2625
        %v2627 = vpop.f32.mrb[0].mxu0
        %2628 = vdwg.mxu0
        %2629 = vmatprep.subr.mxu0 0.0
        %2630 = vmatpush1.msra.mxu0 %v2259
        %2631 = vmatprep.subr.mxu0 0.0
        %2632 = vmatpush1.msra.mxu0 %v2260
        %2633 = vmatprep.subr.mxu0 0.0
        %2634 = vmatpush1.msra.mxu0 %v2261
        %2635 = vmatprep.subr.mxu0 0.0
        %2636 = vmatpush1.msra.mxu0 %v2262
        %2637 = vmatprep.subr.mxu0 0.0
        %2638 = vmatpush1.msra.mxu0 %v2263
        %2639 = vmatprep.subr.mxu0 0.0
        %2640 = vmatpush1.msra.mxu0 %v2264
        %2641 = vmatprep.subr.mxu0 0.0
        %2642 = vmatpush1.msra.mxu0 %v2265
        %2643 = vmatprep.subr.mxu0 0.0
        %2644 = vmatpush1.msra.mxu0 %v2266
        %2645 = vmatprep.subr.mxu0 0.0
        %2646 = vmatpush1.msra.mxu0 %v2267
        %2647 = vmatprep.subr.mxu0 0.0
        %2648 = vmatpush1.msra.mxu0 %v2268
        %2649 = vmatprep.subr.mxu0 0.0
        %2650 = vmatpush1.msra.mxu0 %v2269
        %2651 = vmatprep.subr.mxu0 0.0
        %2652 = vmatpush1.msra.mxu0 %v2270
        %2653 = vmatprep.subr.mxu0 0.0
        %2654 = vmatpush1.msra.mxu0 %v2271
        %2655 = vmatprep.subr.mxu0 0.0
        %2656 = vmatpush1.msra.mxu0 %v2272
        %2657 = vmatprep.subr.mxu0 0.0
        %2658 = vmatpush1.msra.mxu0 %v2273
        %2659 = vmatprep.subr.mxu0 0.0
        %2660 = vmatpush1.msra.mxu0 %v2274
        %2661 = vmatprep.subr.mxu0 0.0
        %2662 = vmatpush1.msra.mxu0 %v2275
        %2663 = vmatprep.subr.mxu0 0.0
        %2664 = vmatpush1.msra.mxu0 %v2276
        %2665 = vmatprep.subr.mxu0 0.0
        %2666 = vmatpush1.msra.mxu0 %v2277
        %2667 = vmatprep.subr.mxu0 0.0
        %2668 = vmatpush1.msra.mxu0 %v2278
        %2669 = vmatprep.subr.mxu0 0.0
        %2670 = vmatpush1.msra.mxu0 %v2279
        %2671 = vmatprep.subr.mxu0 0.0
        %2672 = vmatpush1.msra.mxu0 %v2280
        %2673 = vmatprep.subr.mxu0 0.0
        %2674 = vmatpush1.msra.mxu0 %v2281
        %2675 = vmatprep.subr.mxu0 0.0
        %2676 = vmatpush1.msra.mxu0 %v2282
        %2677 = vmatprep.subr.mxu0 0.0
        %2678 = vmatpush1.msra.mxu0 %v2283
        %2679 = vmatprep.subr.mxu0 0.0
        %2680 = vmatpush1.msra.mxu0 %v2284
        %2681 = vmatprep.subr.mxu0 0.0
        %2682 = vmatpush1.msra.mxu0 %v2285
        %2683 = vmatprep.subr.mxu0 0.0
        %2684 = vmatpush1.msra.mxu0 %v2286
        %2685 = vmatprep.subr.mxu0 0.0
        %2686 = vmatpush1.msra.mxu0 %v2287
        %2687 = vmatprep.subr.mxu0 0.0
        %2688 = vmatpush1.msra.mxu0 %v2288
        %2689 = vmatprep.subr.mxu0 0.0
        %2690 = vmatpush1.msra.mxu0 %v2289
        %2691 = vmatprep.subr.mxu0 0.0
        %2692 = vmatpush1.msra.mxu0 %v2290
        %2693 = vmatprep.mubr.f32.mxu0 %v2087
        %2694 = vmatmul.mubr.f32.gmra.mrb[0].mxu0 %v2047
        %v2695 = vpop.f32.mrb[0].mxu0
        %v2696 = vadd.f32 %v2591, %v2695
        %v2697 = vpop.f32.mrb[0].mxu0
        %2698 = vmatprep.mubr.f32.mxu0 %v2090
        %2699 = vmatmul.mubr.f32.gmra.mrb[0].mxu0 %v2049
        %v2700 = vpop.f32.mrb[0].mxu0
        %v2701 = vadd.f32 %v2596, %v2700
        %v2702 = vpop.f32.mrb[0].mxu0
        %2703 = vmatprep.mubr.f32.mxu0 %v2093
        %2704 = vmatmul.mubr.f32.gmra.mrb[0].mxu0 %v2051
        %v2705 = vpop.f32.mrb[0].mxu0
        %v2706 = vadd.f32 %v2601, %v2705
        %v2707 = vpop.f32.mrb[0].mxu0
        %2708 = vmatprep.mubr.f32.mxu0 %v2096
        %2709 = vmatmul.mubr.f32.gmra.mrb[0].mxu0 %v2053
        %v2710 = vpop.f32.mrb[0].mxu0
        %v2711 = vadd.f32 %v2606, %v2710
        %v2712 = vpop.f32.mrb[0].mxu0
        %2713 = vmatprep.mubr.f32.mxu0 %v2099
        %2714 = vmatmul.mubr.f32.gmra.mrb[0].mxu0 %v2055
        %v2715 = vpop.f32.mrb[0].mxu0
        %v2716 = vadd.f32 %v2611, %v2715
        %v2717 = vpop.f32.mrb[0].mxu0
        %2718 = vmatprep.mubr.f32.mxu0 %v2102
        %2719 = vmatmul.mubr.f32.gmra.mrb[0].mxu0 %v2057
        %v2720 = vpop.f32.mrb[0].mxu0
        %v2721 = vadd.f32 %v2616, %v2720
        %v2722 = vpop.f32.mrb[0].mxu0
        %2723 = vmatprep.mubr.f32.mxu0 %v2147
        %2724 = vmatmul.mubr.f32.gmra.mrb[0].mxu0 %v2059
        %v2725 = vpop.f32.mrb[0].mxu0
        %v2726 = vadd.f32 %v2621, %v2725
        %v2727 = vpop.f32.mrb[0].mxu0
        %2728 = vmatprep.mubr.f32.mxu0 %v2157
        %2729 = vmatmul.mubr.f32.gmra.mrb[0].mxu0 %v2061
        %v2730 = vpop.f32.mrb[0].mxu0
        %v2731 = vadd.f32 %v2626, %v2730
        %v2732 = vpop.f32.mrb[0].mxu0
        %2733 = vdwg.mxu0
        %2734 = vmatprep.subr.mxu0 0.0
        %2735 = vmatpush1.msra.mxu0 %v2291
        %2736 = vmatprep.subr.mxu0 0.0
        %2737 = vmatpush1.msra.mxu0 %v2292
        %2738 = vmatprep.subr.mxu0 0.0
        %2739 = vmatpush1.msra.mxu0 %v2293
        %2740 = vmatprep.subr.mxu0 0.0
        %2741 = vmatpush1.msra.mxu0 %v2294
        %2742 = vmatprep.subr.mxu0 0.0
        %2743 = vmatpush1.msra.mxu0 %v2295
        %2744 = vmatprep.subr.mxu0 0.0
        %2745 = vmatpush1.msra.mxu0 %v2296
        %2746 = vmatprep.subr.mxu0 0.0
        %2747 = vmatpush1.msra.mxu0 %v2297
        %2748 = vmatprep.subr.mxu0 0.0
        %2749 = vmatpush1.msra.mxu0 %v2298
        %2750 = vmatprep.subr.mxu0 0.0
        %2751 = vmatpush1.msra.mxu0 %v2299
        %2752 = vmatprep.subr.mxu0 0.0
        %2753 = vmatpush1.msra.mxu0 %v2300
        %2754 = vmatprep.subr.mxu0 0.0
        %2755 = vmatpush1.msra.mxu0 %v2301
        %2756 = vmatprep.subr.mxu0 0.0
        %2757 = vmatpush1.msra.mxu0 %v2302
        %2758 = vmatprep.subr.mxu0 0.0
        %2759 = vmatpush1.msra.mxu0 %v2303
        %2760 = vmatprep.subr.mxu0 0.0
        %2761 = vmatpush1.msra.mxu0 %v2304
        %2762 = vmatprep.subr.mxu0 0.0
        %2763 = vmatpush1.msra.mxu0 %v2305
        %2764 = vmatprep.subr.mxu0 0.0
        %2765 = vmatpush1.msra.mxu0 %v2306
        %2766 = vmatprep.subr.mxu0 0.0
        %2767 = vmatpush1.msra.mxu0 0.0
        %2768 = vmatprep.subr.mxu0 0.0
        %2769 = vmatpush1.msra.mxu0 0.0
        %2770 = vmatprep.subr.mxu0 0.0
        %2771 = vmatpush1.msra.mxu0 0.0
        %2772 = vmatprep.subr.mxu0 0.0
        %2773 = vmatpush1.msra.mxu0 0.0
        %2774 = vmatprep.subr.mxu0 0.0
        %2775 = vmatpush1.msra.mxu0 0.0
        %2776 = vmatprep.subr.mxu0 0.0
        %2777 = vmatpush1.msra.mxu0 0.0
        %2778 = vmatprep.subr.mxu0 0.0
        %2779 = vmatpush1.msra.mxu0 0.0
        %2780 = vmatprep.subr.mxu0 0.0
        %2781 = vmatpush1.msra.mxu0 0.0
        %2782 = vmatprep.subr.mxu0 0.0
        %2783 = vmatpush1.msra.mxu0 0.0
        %2784 = vmatprep.subr.mxu0 0.0
        %2785 = vmatpush1.msra.mxu0 0.0
        %2786 = vmatprep.subr.mxu0 0.0
        %2787 = vmatpush1.msra.mxu0 0.0
        %2788 = vmatprep.subr.mxu0 0.0
        %2789 = vmatpush1.msra.mxu0 0.0
        %2790 = vmatprep.subr.mxu0 0.0
        %2791 = vmatpush1.msra.mxu0 0.0
        %2792 = vmatprep.subr.mxu0 0.0
        %2793 = vmatpush1.msra.mxu0 0.0
        %2794 = vmatprep.subr.mxu0 0.0
        %2795 = vmatpush1.msra.mxu0 0.0
        %2796 = vmatprep.subr.mxu0 0.0
        %2797 = vmatpush1.msra.mxu0 0.0
        %2798 = vmatprep.mubr.f32.mxu0 0.0
        %2799 = vmatmul.mubr.f32.gmra.mrb[0].mxu0 %v2119
        %v2800 = vpop.f32.mrb[0].mxu0
        %v2801 = vadd.f32 %v2696, %v2800
        %v2802 = vpop.f32.mrb[0].mxu0
        %2803 = vmatprep.mubr.f32.mxu0 0.0
        %2804 = vmatmul.mubr.f32.gmra.mrb[0].mxu0 %v2122
        %v2805 = vpop.f32.mrb[0].mxu0
        %v2806 = vadd.f32 %v2701, %v2805
        %v2807 = vpop.f32.mrb[0].mxu0
        %2808 = vmatprep.mubr.f32.mxu0 0.0
        %2809 = vmatmul.mubr.f32.gmra.mrb[0].mxu0 %v2125
        %v2810 = vpop.f32.mrb[0].mxu0
        %v2811 = vadd.f32 %v2706, %v2810
        %v2812 = vpop.f32.mrb[0].mxu0
        %2813 = vmatprep.mubr.f32.mxu0 0.0
        %2814 = vmatmul.mubr.f32.gmra.mrb[0].mxu0 %v2128
        %v2815 = vpop.f32.mrb[0].mxu0
        %v2816 = vadd.f32 %v2711, %v2815
        %v2817 = vpop.f32.mrb[0].mxu0
        %2818 = vmatprep.mubr.f32.mxu0 0.0
        %2819 = vmatmul.mubr.f32.gmra.mrb[0].mxu0 %v2131
        %v2820 = vpop.f32.mrb[0].mxu0
        %v2821 = vadd.f32 %v2716, %v2820
        %v2822 = vpop.f32.mrb[0].mxu0
        %2823 = vmatprep.mubr.f32.mxu0 0.0
        %2824 = vmatmul.mubr.f32.gmra.mrb[0].mxu0 %v2134
        %v2825 = vpop.f32.mrb[0].mxu0
        %v2826 = vadd.f32 %v2721, %v2825
        %v2827 = vpop.f32.mrb[0].mxu0
        %2828 = vmatprep.mubr.f32.mxu0 0.0
        %2829 = vmatmul.mubr.f32.gmra.mrb[0].mxu0 %v2151
        %v2830 = vpop.f32.mrb[0].mxu0
        %v2831 = vadd.f32 %v2726, %v2830
        %v2832 = vpop.f32.mrb[0].mxu0
        %2833 = vmatprep.mubr.f32.mxu0 0.0
        %2834 = vmatmul.mubr.f32.gmra.mrb[0].mxu0 %v2161
        %v2835 = vpop.f32.mrb[0].mxu0
        %v2836 = vadd.f32 %v2731, %v2835
        %v2837 = vpop.f32.mrb[0].mxu0
        %2838 = vdwg.mxu0
        %v2839 = vmul.f32 %v2801, 0.53333336
        %v2840 = vmul.f32 %v2806, 0.53333336
        %v2841 = vmul.f32 %v2811, 0.53333336
        %v2842 = vmul.f32 %v2816, 0.53333336
        %v2843 = vmul.f32 %v2821, 0.53333336
        %v2844 = vmul.f32 %v2826, 0.53333336
        %v2845 = vmul.f32 %v2831, 0.53333336
        %v2846 = vmul.f32 %v2836, 0.53333336
        %v2847 = vmul.f32 %v2801, 0.46666667
        %v2848 = vmul.f32 %v2806, 0.46666667
        %v2849 = vmul.f32 %v2811, 0.46666667
        %v2850 = vmul.f32 %v2816, 0.46666667
        %v2851 = vmul.f32 %v2821, 0.46666667
        %v2852 = vmul.f32 %v2826, 0.46666667
        %v2853 = vmul.f32 %v2831, 0.46666667
        %v2854 = vmul.f32 %v2836, 0.46666667
        %v2863 = vrot.slane %v2847, 1
        %v2864 = vrot.slane %v2848, 1
        %v2865 = vrot.slane %v2849, 1
        %v2866 = vrot.slane %v2850, 1
        %v2867 = vrot.slane %v2851, 1
        %v2868 = vrot.slane %v2852, 1
        %v2869 = vrot.slane %v2853, 1
        %v2870 = vrot.slane %v2854, 1
        %v2879 = vadd.f32 %v2839, %v2863
        %v2880 = vadd.f32 %v2840, %v2864
        %v2881 = vadd.f32 %v2841, %v2865
        %v2882 = vadd.f32 %v2842, %v2866
        %v2883 = vadd.f32 %v2843, %v2867
        %v2884 = vadd.f32 %v2844, %v2868
        %v2885 = vadd.f32 %v2845, %v2869
        %v2886 = vadd.f32 %v2846, %v2870
        %v2887 = vmul.f32 %v2801, 0.06666667
        %v2888 = vmul.f32 %v2806, 0.06666667
        %v2889 = vmul.f32 %v2811, 0.06666667
        %v2890 = vmul.f32 %v2816, 0.06666667
        %v2891 = vmul.f32 %v2821, 0.06666667
        %v2892 = vmul.f32 %v2826, 0.06666667
        %v2893 = vmul.f32 %v2831, 0.06666667
        %v2894 = vmul.f32 %v2836, 0.06666667
        %v2895 = vmul.f32 %v2801, 0.93333334
        %v2896 = vmul.f32 %v2806, 0.93333334
        %v2897 = vmul.f32 %v2811, 0.93333334
        %v2898 = vmul.f32 %v2816, 0.93333334
        %v2899 = vmul.f32 %v2821, 0.93333334
        %v2900 = vmul.f32 %v2826, 0.93333334
        %v2901 = vmul.f32 %v2831, 0.93333334
        %v2902 = vmul.f32 %v2836, 0.93333334
        %v2911 = vrot.slane %v2895, 1
        %v2912 = vrot.slane %v2896, 1
        %v2913 = vrot.slane %v2897, 1
        %v2914 = vrot.slane %v2898, 1
        %v2915 = vrot.slane %v2899, 1
        %v2916 = vrot.slane %v2900, 1
        %v2917 = vrot.slane %v2901, 1
        %v2918 = vrot.slane %v2902, 1
        %v2927 = vadd.f32 %v2887, %v2911
        %v2928 = vadd.f32 %v2888, %v2912
        %v2929 = vadd.f32 %v2889, %v2913
        %v2930 = vadd.f32 %v2890, %v2914
        %v2931 = vadd.f32 %v2891, %v2915
        %v2932 = vadd.f32 %v2892, %v2916
        %v2933 = vadd.f32 %v2893, %v2917
        %v2934 = vadd.f32 %v2894, %v2918
        %v2935 = vmul.f32 %v2801, 0.6
        %v2936 = vmul.f32 %v2806, 0.6
        %v2937 = vmul.f32 %v2811, 0.6
        %v2938 = vmul.f32 %v2816, 0.6
        %v2939 = vmul.f32 %v2821, 0.6
        %v2940 = vmul.f32 %v2826, 0.6
        %v2941 = vmul.f32 %v2831, 0.6
        %v2942 = vmul.f32 %v2836, 0.6
        %v2943 = vmul.f32 %v2801, 0.4
        %v2944 = vmul.f32 %v2806, 0.4
        %v2945 = vmul.f32 %v2811, 0.4
        %v2946 = vmul.f32 %v2816, 0.4
        %v2947 = vmul.f32 %v2821, 0.4
        %v2948 = vmul.f32 %v2826, 0.4
        %v2949 = vmul.f32 %v2831, 0.4
        %v2950 = vmul.f32 %v2836, 0.4
        %v2959 = vrot.slane %v2943, 1
        %v2960 = vrot.slane %v2944, 1
        %v2961 = vrot.slane %v2945, 1
        %v2962 = vrot.slane %v2946, 1
        %v2963 = vrot.slane %v2947, 1
        %v2964 = vrot.slane %v2948, 1
        %v2965 = vrot.slane %v2949, 1
        %v2966 = vrot.slane %v2950, 1
        %v2975 = vadd.f32 %v2935, %v2959
        %v2976 = vadd.f32 %v2936, %v2960
        %v2977 = vadd.f32 %v2937, %v2961
        %v2978 = vadd.f32 %v2938, %v2962
        %v2979 = vadd.f32 %v2939, %v2963
        %v2980 = vadd.f32 %v2940, %v2964
        %v2981 = vadd.f32 %v2941, %v2965
        %v2982 = vadd.f32 %v2942, %v2966
        %v2983 = vmul.f32 %v2801, 0.13333334
        %v2984 = vmul.f32 %v2806, 0.13333334
        %v2985 = vmul.f32 %v2811, 0.13333334
        %v2986 = vmul.f32 %v2816, 0.13333334
        %v2987 = vmul.f32 %v2821, 0.13333334
        %v2988 = vmul.f32 %v2826, 0.13333334
        %v2989 = vmul.f32 %v2831, 0.13333334
        %v2990 = vmul.f32 %v2836, 0.13333334
        %v2991 = vmul.f32 %v2801, 0.8666667
        %v2992 = vmul.f32 %v2806, 0.8666667
        %v2993 = vmul.f32 %v2811, 0.8666667
        %v2994 = vmul.f32 %v2816, 0.8666667
        %v2995 = vmul.f32 %v2821, 0.8666667
        %v2996 = vmul.f32 %v2826, 0.8666667
        %v2997 = vmul.f32 %v2831, 0.8666667
        %v2998 = vmul.f32 %v2836, 0.8666667
        %v3007 = vrot.slane %v2991, 1
        %v3008 = vrot.slane %v2992, 1
        %v3009 = vrot.slane %v2993, 1
        %v3010 = vrot.slane %v2994, 1
        %v3011 = vrot.slane %v2995, 1
        %v3012 = vrot.slane %v2996, 1
        %v3013 = vrot.slane %v2997, 1
        %v3014 = vrot.slane %v2998, 1
        %v3023 = vadd.f32 %v2983, %v3007
        %v3024 = vadd.f32 %v2984, %v3008
        %v3025 = vadd.f32 %v2985, %v3009
        %v3026 = vadd.f32 %v2986, %v3010
        %v3027 = vadd.f32 %v2987, %v3011
        %v3028 = vadd.f32 %v2988, %v3012
        %v3029 = vadd.f32 %v2989, %v3013
        %v3030 = vadd.f32 %v2990, %v3014
        %v3031 = vmul.f32 %v2801, 0.6666667
        %v3032 = vmul.f32 %v2806, 0.6666667
        %v3033 = vmul.f32 %v2811, 0.6666667
        %v3034 = vmul.f32 %v2816, 0.6666667
        %v3035 = vmul.f32 %v2821, 0.6666667
        %v3036 = vmul.f32 %v2826, 0.6666667
        %v3037 = vmul.f32 %v2831, 0.6666667
        %v3038 = vmul.f32 %v2836, 0.6666667
        %v3039 = vmul.f32 %v2801, 0.33333334
        %v3040 = vmul.f32 %v2806, 0.33333334
        %v3041 = vmul.f32 %v2811, 0.33333334
        %v3042 = vmul.f32 %v2816, 0.33333334
        %v3043 = vmul.f32 %v2821, 0.33333334
        %v3044 = vmul.f32 %v2826, 0.33333334
        %v3045 = vmul.f32 %v2831, 0.33333334
        %v3046 = vmul.f32 %v2836, 0.33333334
        %v3055 = vrot.slane %v3039, 1
        %v3056 = vrot.slane %v3040, 1
        %v3057 = vrot.slane %v3041, 1
        %v3058 = vrot.slane %v3042, 1
        %v3059 = vrot.slane %v3043, 1
        %v3060 = vrot.slane %v3044, 1
        %v3061 = vrot.slane %v3045, 1
        %v3062 = vrot.slane %v3046, 1
        %v3071 = vadd.f32 %v3031, %v3055
        %v3072 = vadd.f32 %v3032, %v3056
        %v3073 = vadd.f32 %v3033, %v3057
        %v3074 = vadd.f32 %v3034, %v3058
        %v3075 = vadd.f32 %v3035, %v3059
        %v3076 = vadd.f32 %v3036, %v3060
        %v3077 = vadd.f32 %v3037, %v3061
        %v3078 = vadd.f32 %v3038, %v3062
        %v3079 = vmul.f32 %v2801, 0.2
        %v3080 = vmul.f32 %v2806, 0.2
        %v3081 = vmul.f32 %v2811, 0.2
        %v3082 = vmul.f32 %v2816, 0.2
        %v3083 = vmul.f32 %v2821, 0.2
        %v3084 = vmul.f32 %v2826, 0.2
        %v3085 = vmul.f32 %v2831, 0.2
        %v3086 = vmul.f32 %v2836, 0.2
        %v3087 = vmul.f32 %v2801, 0.8
        %v3088 = vmul.f32 %v2806, 0.8
        %v3089 = vmul.f32 %v2811, 0.8
        %v3090 = vmul.f32 %v2816, 0.8
        %v3091 = vmul.f32 %v2821, 0.8
        %v3092 = vmul.f32 %v2826, 0.8
        %v3093 = vmul.f32 %v2831, 0.8
        %v3094 = vmul.f32 %v2836, 0.8
        %v3103 = vrot.slane %v3087, 1
        %v3104 = vrot.slane %v3088, 1
        %v3105 = vrot.slane %v3089, 1
        %v3106 = vrot.slane %v3090, 1
        %v3107 = vrot.slane %v3091, 1
        %v3108 = vrot.slane %v3092, 1
        %v3109 = vrot.slane %v3093, 1
        %v3110 = vrot.slane %v3094, 1
        %v3119 = vadd.f32 %v3079, %v3103
        %v3120 = vadd.f32 %v3080, %v3104
        %v3121 = vadd.f32 %v3081, %v3105
        %v3122 = vadd.f32 %v3082, %v3106
        %v3123 = vadd.f32 %v3083, %v3107
        %v3124 = vadd.f32 %v3084, %v3108
        %v3125 = vadd.f32 %v3085, %v3109
        %v3126 = vadd.f32 %v3086, %v3110
        %v3127 = vmul.f32 %v2801, 0.73333335
        %v3128 = vmul.f32 %v2806, 0.73333335
        %v3129 = vmul.f32 %v2811, 0.73333335
        %v3130 = vmul.f32 %v2816, 0.73333335
        %v3131 = vmul.f32 %v2821, 0.73333335
        %v3132 = vmul.f32 %v2826, 0.73333335
        %v3133 = vmul.f32 %v2831, 0.73333335
        %v3134 = vmul.f32 %v2836, 0.73333335
        %v3135 = vmul.f32 %v2801, 0.26666668
        %v3136 = vmul.f32 %v2806, 0.26666668
        %v3137 = vmul.f32 %v2811, 0.26666668
        %v3138 = vmul.f32 %v2816, 0.26666668
        %v3139 = vmul.f32 %v2821, 0.26666668
        %v3140 = vmul.f32 %v2826, 0.26666668
        %v3141 = vmul.f32 %v2831, 0.26666668
        %v3142 = vmul.f32 %v2836, 0.26666668
        %v3151 = vrot.slane %v3135, 1
        %v3152 = vrot.slane %v3136, 1
        %v3153 = vrot.slane %v3137, 1
        %v3154 = vrot.slane %v3138, 1
        %v3155 = vrot.slane %v3139, 1
        %v3156 = vrot.slane %v3140, 1
        %v3157 = vrot.slane %v3141, 1
        %v3158 = vrot.slane %v3142, 1
        %v3167 = vadd.f32 %v3127, %v3151
        %v3168 = vadd.f32 %v3128, %v3152
        %v3169 = vadd.f32 %v3129, %v3153
        %v3170 = vadd.f32 %v3130, %v3154
        %v3171 = vadd.f32 %v3131, %v3155
        %v3172 = vadd.f32 %v3132, %v3156
        %v3173 = vadd.f32 %v3133, %v3157
        %v3174 = vadd.f32 %v3134, %v3158
        %v3183 = vrot.slane %v3127, 1
        %v3184 = vrot.slane %v3128, 1
        %v3185 = vrot.slane %v3129, 1
        %v3186 = vrot.slane %v3130, 1
        %v3187 = vrot.slane %v3131, 1
        %v3188 = vrot.slane %v3132, 1
        %v3189 = vrot.slane %v3133, 1
        %v3190 = vrot.slane %v3134, 1
        %v3199 = vadd.f32 %v3135, %v3183
        %v3200 = vadd.f32 %v3136, %v3184
        %v3201 = vadd.f32 %v3137, %v3185
        %v3202 = vadd.f32 %v3138, %v3186
        %v3203 = vadd.f32 %v3139, %v3187
        %v3204 = vadd.f32 %v3140, %v3188
        %v3205 = vadd.f32 %v3141, %v3189
        %v3206 = vadd.f32 %v3142, %v3190
        %v3215 = vrot.slane %v3079, 1
        %v3216 = vrot.slane %v3080, 1
        %v3217 = vrot.slane %v3081, 1
        %v3218 = vrot.slane %v3082, 1
        %v3219 = vrot.slane %v3083, 1
        %v3220 = vrot.slane %v3084, 1
        %v3221 = vrot.slane %v3085, 1
        %v3222 = vrot.slane %v3086, 1
        %v3231 = vadd.f32 %v3087, %v3215
        %v3232 = vadd.f32 %v3088, %v3216
        %v3233 = vadd.f32 %v3089, %v3217
        %v3234 = vadd.f32 %v3090, %v3218
        %v3235 = vadd.f32 %v3091, %v3219
        %v3236 = vadd.f32 %v3092, %v3220
        %v3237 = vadd.f32 %v3093, %v3221
        %v3238 = vadd.f32 %v3094, %v3222
        %v3247 = vrot.slane %v3031, 1
        %v3248 = vrot.slane %v3032, 1
        %v3249 = vrot.slane %v3033, 1
        %v3250 = vrot.slane %v3034, 1
        %v3251 = vrot.slane %v3035, 1
        %v3252 = vrot.slane %v3036, 1
        %v3253 = vrot.slane %v3037, 1
        %v3254 = vrot.slane %v3038, 1
        %v3263 = vadd.f32 %v3039, %v3247
        %v3264 = vadd.f32 %v3040, %v3248
        %v3265 = vadd.f32 %v3041, %v3249
        %v3266 = vadd.f32 %v3042, %v3250
        %v3267 = vadd.f32 %v3043, %v3251
        %v3268 = vadd.f32 %v3044, %v3252
        %v3269 = vadd.f32 %v3045, %v3253
        %v3270 = vadd.f32 %v3046, %v3254
        %v3279 = vrot.slane %v2983, 1
        %v3280 = vrot.slane %v2984, 1
        %v3281 = vrot.slane %v2985, 1
        %v3282 = vrot.slane %v2986, 1
        %v3283 = vrot.slane %v2987, 1
        %v3284 = vrot.slane %v2988, 1
        %v3285 = vrot.slane %v2989, 1
        %v3286 = vrot.slane %v2990, 1
        %v3295 = vadd.f32 %v2991, %v3279
        %v3296 = vadd.f32 %v2992, %v3280
        %v3297 = vadd.f32 %v2993, %v3281
        %v3298 = vadd.f32 %v2994, %v3282
        %v3299 = vadd.f32 %v2995, %v3283
        %v3300 = vadd.f32 %v2996, %v3284
        %v3301 = vadd.f32 %v2997, %v3285
        %v3302 = vadd.f32 %v2998, %v3286
        %v3311 = vrot.slane %v2935, 1
        %v3312 = vrot.slane %v2936, 1
        %v3313 = vrot.slane %v2937, 1
        %v3314 = vrot.slane %v2938, 1
        %v3315 = vrot.slane %v2939, 1
        %v3316 = vrot.slane %v2940, 1
        %v3317 = vrot.slane %v2941, 1
        %v3318 = vrot.slane %v2942, 1
        %v3327 = vadd.f32 %v2943, %v3311
        %v3328 = vadd.f32 %v2944, %v3312
        %v3329 = vadd.f32 %v2945, %v3313
        %v3330 = vadd.f32 %v2946, %v3314
        %v3331 = vadd.f32 %v2947, %v3315
        %v3332 = vadd.f32 %v2948, %v3316
        %v3333 = vadd.f32 %v2949, %v3317
        %v3334 = vadd.f32 %v2950, %v3318
        %v3343 = vrot.slane %v2887, 1
        %v3344 = vrot.slane %v2888, 1
        %v3345 = vrot.slane %v2889, 1
        %v3346 = vrot.slane %v2890, 1
        %v3347 = vrot.slane %v2891, 1
        %v3348 = vrot.slane %v2892, 1
        %v3349 = vrot.slane %v2893, 1
        %v3350 = vrot.slane %v2894, 1
        %v3359 = vadd.f32 %v2895, %v3343
        %v3360 = vadd.f32 %v2896, %v3344
        %v3361 = vadd.f32 %v2897, %v3345
        %v3362 = vadd.f32 %v2898, %v3346
        %v3363 = vadd.f32 %v2899, %v3347
        %v3364 = vadd.f32 %v2900, %v3348
        %v3365 = vadd.f32 %v2901, %v3349
        %v3366 = vadd.f32 %v2902, %v3350
        %v3375 = vrot.slane %v2839, 1
        %v3376 = vrot.slane %v2840, 1
        %v3377 = vrot.slane %v2841, 1
        %v3378 = vrot.slane %v2842, 1
        %v3379 = vrot.slane %v2843, 1
        %v3380 = vrot.slane %v2844, 1
        %v3381 = vrot.slane %v2845, 1
        %v3382 = vrot.slane %v2846, 1
        %v3391 = vadd.f32 %v2847, %v3375
        %v3392 = vadd.f32 %v2848, %v3376
        %v3393 = vadd.f32 %v2849, %v3377
        %v3394 = vadd.f32 %v2850, %v3378
        %v3395 = vadd.f32 %v2851, %v3379
        %v3396 = vadd.f32 %v2852, %v3380
        %v3397 = vadd.f32 %v2853, %v3381
        %v3398 = vadd.f32 %v2854, %v3382
        %v3407 = vrot.slane %v2879, 7
        %v3408 = vrot.slane %v2880, 7
        %v3409 = vrot.slane %v2881, 7
        %v3410 = vrot.slane %v2882, 7
        %v3411 = vrot.slane %v2883, 7
        %v3412 = vrot.slane %v2884, 7
        %v3413 = vrot.slane %v2885, 7
        %v3414 = vrot.slane %v2886, 7
        %v3431 = vrot.slane %v2927, 6
        %v3432 = vrot.slane %v2928, 6
        %v3433 = vrot.slane %v2929, 6
        %v3434 = vrot.slane %v2930, 6
        %v3435 = vrot.slane %v2931, 6
        %v3436 = vrot.slane %v2932, 6
        %v3437 = vrot.slane %v2933, 6
        %v3438 = vrot.slane %v2934, 6
        %v3455 = vrot.slane %v2975, 6
        %v3456 = vrot.slane %v2976, 6
        %v3457 = vrot.slane %v2977, 6
        %v3458 = vrot.slane %v2978, 6
        %v3459 = vrot.slane %v2979, 6
        %v3460 = vrot.slane %v2980, 6
        %v3461 = vrot.slane %v2981, 6
        %v3462 = vrot.slane %v2982, 6
        %v3479 = vrot.slane %v3023, 5
        %v3480 = vrot.slane %v3024, 5
        %v3481 = vrot.slane %v3025, 5
        %v3482 = vrot.slane %v3026, 5
        %v3483 = vrot.slane %v3027, 5
        %v3484 = vrot.slane %v3028, 5
        %v3485 = vrot.slane %v3029, 5
        %v3486 = vrot.slane %v3030, 5
        %v3503 = vrot.slane %v3071, 5
        %v3504 = vrot.slane %v3072, 5
        %v3505 = vrot.slane %v3073, 5
        %v3506 = vrot.slane %v3074, 5
        %v3507 = vrot.slane %v3075, 5
        %v3508 = vrot.slane %v3076, 5
        %v3509 = vrot.slane %v3077, 5
        %v3510 = vrot.slane %v3078, 5
        %v3527 = vrot.slane %v3119, 4
        %v3528 = vrot.slane %v3120, 4
        %v3529 = vrot.slane %v3121, 4
        %v3530 = vrot.slane %v3122, 4
        %v3531 = vrot.slane %v3123, 4
        %v3532 = vrot.slane %v3124, 4
        %v3533 = vrot.slane %v3125, 4
        %v3534 = vrot.slane %v3126, 4
        %v3551 = vrot.slane %v3167, 4
        %v3552 = vrot.slane %v3168, 4
        %v3553 = vrot.slane %v3169, 4
        %v3554 = vrot.slane %v3170, 4
        %v3555 = vrot.slane %v3171, 4
        %v3556 = vrot.slane %v3172, 4
        %v3557 = vrot.slane %v3173, 4
        %v3558 = vrot.slane %v3174, 4
        %v3575 = vrot.slane %v3199, 3
        %v3576 = vrot.slane %v3200, 3
        %v3577 = vrot.slane %v3201, 3
        %v3578 = vrot.slane %v3202, 3
        %v3579 = vrot.slane %v3203, 3
        %v3580 = vrot.slane %v3204, 3
        %v3581 = vrot.slane %v3205, 3
        %v3582 = vrot.slane %v3206, 3
        %v3599 = vrot.slane %v3231, 3
        %v3600 = vrot.slane %v3232, 3
        %v3601 = vrot.slane %v3233, 3
        %v3602 = vrot.slane %v3234, 3
        %v3603 = vrot.slane %v3235, 3
        %v3604 = vrot.slane %v3236, 3
        %v3605 = vrot.slane %v3237, 3
        %v3606 = vrot.slane %v3238, 3
        %v3623 = vrot.slane %v3263, 2
        %v3624 = vrot.slane %v3264, 2
        %v3625 = vrot.slane %v3265, 2
        %v3626 = vrot.slane %v3266, 2
        %v3627 = vrot.slane %v3267, 2
        %v3628 = vrot.slane %v3268, 2
        %v3629 = vrot.slane %v3269, 2
        %v3630 = vrot.slane %v3270, 2
        %v3647 = vrot.slane %v3295, 2
        %v3648 = vrot.slane %v3296, 2
        %v3649 = vrot.slane %v3297, 2
        %v3650 = vrot.slane %v3298, 2
        %v3651 = vrot.slane %v3299, 2
        %v3652 = vrot.slane %v3300, 2
        %v3653 = vrot.slane %v3301, 2
        %v3654 = vrot.slane %v3302, 2
        %v3671 = vrot.slane %v3327, 1
        %v3672 = vrot.slane %v3328, 1
        %v3673 = vrot.slane %v3329, 1
        %v3674 = vrot.slane %v3330, 1
        %v3675 = vrot.slane %v3331, 1
        %v3676 = vrot.slane %v3332, 1
        %v3677 = vrot.slane %v3333, 1
        %v3678 = vrot.slane %v3334, 1
        %v3695 = vrot.slane %v3359, 1
        %v3696 = vrot.slane %v3360, 1
        %v3697 = vrot.slane %v3361, 1
        %v3698 = vrot.slane %v3362, 1
        %v3699 = vrot.slane %v3363, 1
        %v3700 = vrot.slane %v3364, 1
        %v3701 = vrot.slane %v3365, 1
        %v3702 = vrot.slane %v3366, 1
        %vm3711 = vcmask 1040384
        %v3712 = vsel %vm3711, %v2801, %v3407
        %v3713 = vsel %vm3711, %v2806, %v3408
        %v3714 = vsel %vm3711, %v2811, %v3409
        %v3715 = vsel %vm3711, %v2816, %v3410
        %v3716 = vsel %vm3711, %v2821, %v3411
        %v3717 = vsel %vm3711, %v2826, %v3412
        %v3718 = vsel %vm3711, %v2831, %v3413
        %v3719 = vsel %vm3711, %v2836, %v3414
        %vm3720 = vcmask 1041408
        %v3721 = vsel %vm3720, %v3712, %v3431
        %v3722 = vsel %vm3720, %v3713, %v3432
        %v3723 = vsel %vm3720, %v3714, %v3433
        %v3724 = vsel %vm3720, %v3715, %v3434
        %v3725 = vsel %vm3720, %v3716, %v3435
        %v3726 = vsel %vm3720, %v3717, %v3436
        %v3727 = vsel %vm3720, %v3718, %v3437
        %v3728 = vsel %vm3720, %v3719, %v3438
        %vm3729 = vcmask 1042432
        %v3730 = vsel %vm3729, %v3721, %v3455
        %v3731 = vsel %vm3729, %v3722, %v3456
        %v3732 = vsel %vm3729, %v3723, %v3457
        %v3733 = vsel %vm3729, %v3724, %v3458
        %v3734 = vsel %vm3729, %v3725, %v3459
        %v3735 = vsel %vm3729, %v3726, %v3460
        %v3736 = vsel %vm3729, %v3727, %v3461
        %v3737 = vsel %vm3729, %v3728, %v3462
        %vm3738 = vcmask 1043456
        %v3739 = vsel %vm3738, %v3730, %v3479
        %v3740 = vsel %vm3738, %v3731, %v3480
        %v3741 = vsel %vm3738, %v3732, %v3481
        %v3742 = vsel %vm3738, %v3733, %v3482
        %v3743 = vsel %vm3738, %v3734, %v3483
        %v3744 = vsel %vm3738, %v3735, %v3484
        %v3745 = vsel %vm3738, %v3736, %v3485
        %v3746 = vsel %vm3738, %v3737, %v3486
        %vm3747 = vcmask 1044480
        %v3748 = vsel %vm3747, %v3739, %v3503
        %v3749 = vsel %vm3747, %v3740, %v3504
        %v3750 = vsel %vm3747, %v3741, %v3505
        %v3751 = vsel %vm3747, %v3742, %v3506
        %v3752 = vsel %vm3747, %v3743, %v3507
        %v3753 = vsel %vm3747, %v3744, %v3508
        %v3754 = vsel %vm3747, %v3745, %v3509
        %v3755 = vsel %vm3747, %v3746, %v3510
        %v3756 = vsel %vm620, %v3748, %v3527
        %v3757 = vsel %vm620, %v3749, %v3528
        %v3758 = vsel %vm620, %v3750, %v3529
        %v3759 = vsel %vm620, %v3751, %v3530
        %v3760 = vsel %vm620, %v3752, %v3531
        %v3761 = vsel %vm620, %v3753, %v3532
        %v3762 = vsel %vm620, %v3754, %v3533
        %v3763 = vsel %vm620, %v3755, %v3534
        %v3764 = vsel %vm507, %v3756, %v3551
        %v3765 = vsel %vm507, %v3757, %v3552
        %v3766 = vsel %vm507, %v3758, %v3553
        %v3767 = vsel %vm507, %v3759, %v3554
        %v3768 = vsel %vm507, %v3760, %v3555
        %v3769 = vsel %vm507, %v3761, %v3556
        %v3770 = vsel %vm507, %v3762, %v3557
        %v3771 = vsel %vm507, %v3763, %v3558
        %v3772 = vsel %vm3711, %v3575, %v3599
        %v3773 = vsel %vm3711, %v3576, %v3600
        %v3774 = vsel %vm3711, %v3577, %v3601
        %v3775 = vsel %vm3711, %v3578, %v3602
        %v3776 = vsel %vm3711, %v3579, %v3603
        %v3777 = vsel %vm3711, %v3580, %v3604
        %v3778 = vsel %vm3711, %v3581, %v3605
        %v3779 = vsel %vm3711, %v3582, %v3606
        %v3780 = vsel %vm3720, %v3772, %v3623
        %v3781 = vsel %vm3720, %v3773, %v3624
        %v3782 = vsel %vm3720, %v3774, %v3625
        %v3783 = vsel %vm3720, %v3775, %v3626
        %v3784 = vsel %vm3720, %v3776, %v3627
        %v3785 = vsel %vm3720, %v3777, %v3628
        %v3786 = vsel %vm3720, %v3778, %v3629
        %v3787 = vsel %vm3720, %v3779, %v3630
        %v3788 = vsel %vm3729, %v3780, %v3647
        %v3789 = vsel %vm3729, %v3781, %v3648
        %v3790 = vsel %vm3729, %v3782, %v3649
        %v3791 = vsel %vm3729, %v3783, %v3650
        %v3792 = vsel %vm3729, %v3784, %v3651
        %v3793 = vsel %vm3729, %v3785, %v3652
        %v3794 = vsel %vm3729, %v3786, %v3653
        %v3795 = vsel %vm3729, %v3787, %v3654
        %v3796 = vsel %vm3738, %v3788, %v3671
        %v3797 = vsel %vm3738, %v3789, %v3672
        %v3798 = vsel %vm3738, %v3790, %v3673
        %v3799 = vsel %vm3738, %v3791, %v3674
        %v3800 = vsel %vm3738, %v3792, %v3675
        %v3801 = vsel %vm3738, %v3793, %v3676
        %v3802 = vsel %vm3738, %v3794, %v3677
        %v3803 = vsel %vm3738, %v3795, %v3678
        %v3804 = vsel %vm3747, %v3796, %v3695
        %v3805 = vsel %vm3747, %v3797, %v3696
        %v3806 = vsel %vm3747, %v3798, %v3697
        %v3807 = vsel %vm3747, %v3799, %v3698
        %v3808 = vsel %vm3747, %v3800, %v3699
        %v3809 = vsel %vm3747, %v3801, %v3700
        %v3810 = vsel %vm3747, %v3802, %v3701
        %v3811 = vsel %vm3747, %v3803, %v3702
        %v3812 = vsel %vm620, %v3804, %v3391
        %v3813 = vsel %vm620, %v3805, %v3392
        %v3814 = vsel %vm620, %v3806, %v3393
        %v3815 = vsel %vm620, %v3807, %v3394
        %v3816 = vsel %vm620, %v3808, %v3395
        %v3817 = vsel %vm620, %v3809, %v3396
        %v3818 = vsel %vm620, %v3810, %v3397
        %v3819 = vsel %vm620, %v3811, %v3398
        %v3820 = vsel %vm507, %v3812, %v2801
        %v3821 = vsel %vm507, %v3813, %v2806
        %v3822 = vsel %vm507, %v3814, %v2811
        %v3823 = vsel %vm507, %v3815, %v2816
        %v3824 = vsel %vm507, %v3816, %v2821
        %v3825 = vsel %vm507, %v3817, %v2826
        %v3826 = vsel %vm507, %v3818, %v2831
        %v3827 = vsel %vm507, %v3819, %v2836
        %v3828 = vld [vmem:[#allocation13] sm:$0xff]
        %v3829 = vld [vmem:[#allocation13 + $0x8] sm:$0xff]
        %v3830 = vcombine.low %v3764, %v3766
        %v3831 = vcombine.high %v3764, %v3766
        %v3833 = vunpack.c.l.s4 1983009808
        %v3834 = vunpack.c.0.s8 %v3833
        %v3835 = vlaneseq
        %v3836 = vshrl.u32 %v3835, 7
        %v3837 = vsub.s32 %v3834, %v3836
        %v3838 = vrot.slane %v3830, %v3837
        %v3840 = vunpack.c.l.s4 1983009808
        %v3841 = vunpack.c.0.s8 %v3840
        %v3842 = vlaneseq
        %v3843 = vshrl.u32 %v3842, 7
        %v3844 = vsub.s32 %v3841, %v3843
        %v3845 = vrot.slane %v3831, %v3844
        %v3846 = vcombine.low %v3765, %v3767
        %v3847 = vcombine.high %v3765, %v3767
        %v3849 = vunpack.c.l.s4 1983009808
        %v3850 = vunpack.c.0.s8 %v3849
        %v3851 = vlaneseq
        %v3852 = vshrl.u32 %v3851, 7
        %v3853 = vsub.s32 %v3850, %v3852
        %v3854 = vrot.slane %v3846, %v3853
        %v3856 = vunpack.c.l.s4 1983009808
        %v3857 = vunpack.c.0.s8 %v3856
        %v3858 = vlaneseq
        %v3859 = vshrl.u32 %v3858, 7
        %v3860 = vsub.s32 %v3857, %v3859
        %v3861 = vrot.slane %v3847, %v3860
        %v3862 = vcombine.low %v3768, %v3770
        %v3863 = vcombine.high %v3768, %v3770
        %v3865 = vunpack.c.l.s4 1983009808
        %v3866 = vunpack.c.0.s8 %v3865
        %v3867 = vlaneseq
        %v3868 = vshrl.u32 %v3867, 7
        %v3869 = vsub.s32 %v3866, %v3868
        %v3870 = vrot.slane %v3862, %v3869
        %v3872 = vunpack.c.l.s4 1983009808
        %v3873 = vunpack.c.0.s8 %v3872
        %v3874 = vlaneseq
        %v3875 = vshrl.u32 %v3874, 7
        %v3876 = vsub.s32 %v3873, %v3875
        %v3877 = vrot.slane %v3863, %v3876
        %v3878 = vcombine.low %v3769, %v3771
        %v3879 = vcombine.high %v3769, %v3771
        %v3881 = vunpack.c.l.s4 1983009808
        %v3882 = vunpack.c.0.s8 %v3881
        %v3883 = vlaneseq
        %v3884 = vshrl.u32 %v3883, 7
        %v3885 = vsub.s32 %v3882, %v3884
        %v3886 = vrot.slane %v3878, %v3885
        %v3888 = vunpack.c.l.s4 1983009808
        %v3889 = vunpack.c.0.s8 %v3888
        %v3890 = vlaneseq
        %v3891 = vshrl.u32 %v3890, 7
        %v3892 = vsub.s32 %v3889, %v3891
        %v3893 = vrot.slane %v3879, %v3892
        %v3894 = vcombine.low %v3838, %v3854
        %v3895 = vcombine.high %v3838, %v3854
        %v3897 = vunpack.c.l.s4 1934713408
        %v3898 = vunpack.c.0.s8 %v3897
        %v3899 = vlaneseq
        %v3900 = vshrl.u32 %v3899, 7
        %v3901 = vsub.s32 %v3898, %v3900
        %v3902 = vrot.slane %v3894, %v3901
        %v3904 = vunpack.c.l.s4 1934713408
        %v3905 = vunpack.c.0.s8 %v3904
        %v3906 = vlaneseq
        %v3907 = vshrl.u32 %v3906, 7
        %v3908 = vsub.s32 %v3905, %v3907
        %v3909 = vrot.slane %v3895, %v3908
        %v3910 = vcombine.low %v3845, %v3861
        %v3911 = vcombine.high %v3845, %v3861
        %v3913 = vunpack.c.l.s4 1934713408
        %v3914 = vunpack.c.0.s8 %v3913
        %v3915 = vlaneseq
        %v3916 = vshrl.u32 %v3915, 7
        %v3917 = vsub.s32 %v3914, %v3916
        %v3918 = vrot.slane %v3910, %v3917
        %v3920 = vunpack.c.l.s4 1934713408
        %v3921 = vunpack.c.0.s8 %v3920
        %v3922 = vlaneseq
        %v3923 = vshrl.u32 %v3922, 7
        %v3924 = vsub.s32 %v3921, %v3923
        %v3925 = vrot.slane %v3911, %v3924
        %v3926 = vcombine.low %v3870, %v3886
        %v3927 = vcombine.high %v3870, %v3886
        %v3929 = vunpack.c.l.s4 1934713408
        %v3930 = vunpack.c.0.s8 %v3929
        %v3931 = vlaneseq
        %v3932 = vshrl.u32 %v3931, 7
        %v3933 = vsub.s32 %v3930, %v3932
        %v3934 = vrot.slane %v3926, %v3933
        %v3936 = vunpack.c.l.s4 1934713408
        %v3937 = vunpack.c.0.s8 %v3936
        %v3938 = vlaneseq
        %v3939 = vshrl.u32 %v3938, 7
        %v3940 = vsub.s32 %v3937, %v3939
        %v3941 = vrot.slane %v3927, %v3940
        %v3942 = vcombine.low %v3877, %v3893
        %v3943 = vcombine.high %v3877, %v3893
        %v3945 = vunpack.c.l.s4 1934713408
        %v3946 = vunpack.c.0.s8 %v3945
        %v3947 = vlaneseq
        %v3948 = vshrl.u32 %v3947, 7
        %v3949 = vsub.s32 %v3946, %v3948
        %v3950 = vrot.slane %v3942, %v3949
        %v3952 = vunpack.c.l.s4 1934713408
        %v3953 = vunpack.c.0.s8 %v3952
        %v3954 = vlaneseq
        %v3955 = vshrl.u32 %v3954, 7
        %v3956 = vsub.s32 %v3953, %v3955
        %v3957 = vrot.slane %v3943, %v3956
        %v3958 = vcombine.low %v3902, %v3934
        %v3959 = vcombine.high %v3902, %v3934
        %v3960 = vcombine.low %v3909, %v3941
        %v3961 = vcombine.high %v3909, %v3941
        %v3962 = vcombine.low %v3918, %v3950
        %v3963 = vcombine.high %v3918, %v3950
        %v3964 = vcombine.low %v3925, %v3957
        %v3965 = vcombine.high %v3925, %v3957
        %v3966 = vcombine.low %v3820, %v3822
        %v3967 = vcombine.high %v3820, %v3822
        %v3969 = vunpack.c.l.s4 1983009808
        %v3970 = vunpack.c.0.s8 %v3969
        %v3971 = vlaneseq
        %v3972 = vshrl.u32 %v3971, 7
        %v3973 = vsub.s32 %v3970, %v3972
        %v3974 = vrot.slane %v3966, %v3973
        %v3976 = vunpack.c.l.s4 1983009808
        %v3977 = vunpack.c.0.s8 %v3976
        %v3978 = vlaneseq
        %v3979 = vshrl.u32 %v3978, 7
        %v3980 = vsub.s32 %v3977, %v3979
        %v3981 = vrot.slane %v3967, %v3980
        %v3982 = vcombine.low %v3821, %v3823
        %v3983 = vcombine.high %v3821, %v3823
        %v3985 = vunpack.c.l.s4 1983009808
        %v3986 = vunpack.c.0.s8 %v3985
        %v3987 = vlaneseq
        %v3988 = vshrl.u32 %v3987, 7
        %v3989 = vsub.s32 %v3986, %v3988
        %v3990 = vrot.slane %v3982, %v3989
        %v3992 = vunpack.c.l.s4 1983009808
        %v3993 = vunpack.c.0.s8 %v3992
        %v3994 = vlaneseq
        %v3995 = vshrl.u32 %v3994, 7
        %v3996 = vsub.s32 %v3993, %v3995
        %v3997 = vrot.slane %v3983, %v3996
        %v3998 = vcombine.low %v3824, %v3826
        %v3999 = vcombine.high %v3824, %v3826
        %v4001 = vunpack.c.l.s4 1983009808
        %v4002 = vunpack.c.0.s8 %v4001
        %v4003 = vlaneseq
        %v4004 = vshrl.u32 %v4003, 7
        %v4005 = vsub.s32 %v4002, %v4004
        %v4006 = vrot.slane %v3998, %v4005
        %v4008 = vunpack.c.l.s4 1983009808
        %v4009 = vunpack.c.0.s8 %v4008
        %v4010 = vlaneseq
        %v4011 = vshrl.u32 %v4010, 7
        %v4012 = vsub.s32 %v4009, %v4011
        %v4013 = vrot.slane %v3999, %v4012
        %v4014 = vcombine.low %v3825, %v3827
        %v4015 = vcombine.high %v3825, %v3827
        %v4017 = vunpack.c.l.s4 1983009808
        %v4018 = vunpack.c.0.s8 %v4017
        %v4019 = vlaneseq
        %v4020 = vshrl.u32 %v4019, 7
        %v4021 = vsub.s32 %v4018, %v4020
        %v4022 = vrot.slane %v4014, %v4021
        %v4024 = vunpack.c.l.s4 1983009808
        %v4025 = vunpack.c.0.s8 %v4024
        %v4026 = vlaneseq
        %v4027 = vshrl.u32 %v4026, 7
        %v4028 = vsub.s32 %v4025, %v4027
        %v4029 = vrot.slane %v4015, %v4028
        %v4030 = vcombine.low %v3974, %v3990
        %v4031 = vcombine.high %v3974, %v3990
        %v4033 = vunpack.c.l.s4 1934713408
        %v4034 = vunpack.c.0.s8 %v4033
        %v4035 = vlaneseq
        %v4036 = vshrl.u32 %v4035, 7
        %v4037 = vsub.s32 %v4034, %v4036
        %v4038 = vrot.slane %v4030, %v4037
        %v4040 = vunpack.c.l.s4 1934713408
        %v4041 = vunpack.c.0.s8 %v4040
        %v4042 = vlaneseq
        %v4043 = vshrl.u32 %v4042, 7
        %v4044 = vsub.s32 %v4041, %v4043
        %v4045 = vrot.slane %v4031, %v4044
        %v4046 = vcombine.low %v3981, %v3997
        %v4047 = vcombine.high %v3981, %v3997
        %v4049 = vunpack.c.l.s4 1934713408
        %v4050 = vunpack.c.0.s8 %v4049
        %v4051 = vlaneseq
        %v4052 = vshrl.u32 %v4051, 7
        %v4053 = vsub.s32 %v4050, %v4052
        %v4054 = vrot.slane %v4046, %v4053
        %v4056 = vunpack.c.l.s4 1934713408
        %v4057 = vunpack.c.0.s8 %v4056
        %v4058 = vlaneseq
        %v4059 = vshrl.u32 %v4058, 7
        %v4060 = vsub.s32 %v4057, %v4059
        %v4061 = vrot.slane %v4047, %v4060
        %v4062 = vcombine.low %v4006, %v4022
        %v4063 = vcombine.high %v4006, %v4022
        %v4065 = vunpack.c.l.s4 1934713408
        %v4066 = vunpack.c.0.s8 %v4065
        %v4067 = vlaneseq
        %v4068 = vshrl.u32 %v4067, 7
        %v4069 = vsub.s32 %v4066, %v4068
        %v4070 = vrot.slane %v4062, %v4069
        %v4072 = vunpack.c.l.s4 1934713408
        %v4073 = vunpack.c.0.s8 %v4072
        %v4074 = vlaneseq
        %v4075 = vshrl.u32 %v4074, 7
        %v4076 = vsub.s32 %v4073, %v4075
        %v4077 = vrot.slane %v4063, %v4076
        %v4078 = vcombine.low %v4013, %v4029
        %v4079 = vcombine.high %v4013, %v4029
        %v4081 = vunpack.c.l.s4 1934713408
        %v4082 = vunpack.c.0.s8 %v4081
        %v4083 = vlaneseq
        %v4084 = vshrl.u32 %v4083, 7
        %v4085 = vsub.s32 %v4082, %v4084
        %v4086 = vrot.slane %v4078, %v4085
        %v4088 = vunpack.c.l.s4 1934713408
        %v4089 = vunpack.c.0.s8 %v4088
        %v4090 = vlaneseq
        %v4091 = vshrl.u32 %v4090, 7
        %v4092 = vsub.s32 %v4089, %v4091
        %v4093 = vrot.slane %v4079, %v4092
        %v4094 = vcombine.low %v4038, %v4070
        %v4095 = vcombine.high %v4038, %v4070
        %v4096 = vcombine.low %v4045, %v4077
        %v4097 = vcombine.high %v4045, %v4077
        %v4098 = vcombine.low %v4054, %v4086
        %v4099 = vcombine.high %v4054, %v4086
        %v4100 = vcombine.low %v4061, %v4093
        %v4101 = vcombine.high %v4061, %v4093
        %v4102 = vcombine.low 0.0, 0.0
        %v4103 = vcombine.high 0.0, 0.0
        %v4105 = vunpack.c.l.s4 1983009808
        %v4106 = vunpack.c.0.s8 %v4105
        %v4107 = vlaneseq
        %v4108 = vshrl.u32 %v4107, 7
        %v4109 = vsub.s32 %v4106, %v4108
        %v4110 = vrot.slane %v4102, %v4109
        %v4112 = vunpack.c.l.s4 1983009808
        %v4113 = vunpack.c.0.s8 %v4112
        %v4114 = vlaneseq
        %v4115 = vshrl.u32 %v4114, 7
        %v4116 = vsub.s32 %v4113, %v4115
        %v4117 = vrot.slane %v4103, %v4116
        %v4118 = vcombine.low %v4110, %v4110
        %v4119 = vcombine.high %v4110, %v4110
        %v4121 = vunpack.c.l.s4 1934713408
        %v4122 = vunpack.c.0.s8 %v4121
        %v4123 = vlaneseq
        %v4124 = vshrl.u32 %v4123, 7
        %v4125 = vsub.s32 %v4122, %v4124
        %v4126 = vrot.slane %v4118, %v4125
        %v4128 = vunpack.c.l.s4 1934713408
        %v4129 = vunpack.c.0.s8 %v4128
        %v4130 = vlaneseq
        %v4131 = vshrl.u32 %v4130, 7
        %v4132 = vsub.s32 %v4129, %v4131
        %v4133 = vrot.slane %v4119, %v4132
        %v4134 = vcombine.low %v4117, %v4117
        %v4135 = vcombine.high %v4117, %v4117
        %v4137 = vunpack.c.l.s4 1934713408
        %v4138 = vunpack.c.0.s8 %v4137
        %v4139 = vlaneseq
        %v4140 = vshrl.u32 %v4139, 7
        %v4141 = vsub.s32 %v4138, %v4140
        %v4142 = vrot.slane %v4134, %v4141
        %v4144 = vunpack.c.l.s4 1934713408
        %v4145 = vunpack.c.0.s8 %v4144
        %v4146 = vlaneseq
        %v4147 = vshrl.u32 %v4146, 7
        %v4148 = vsub.s32 %v4145, %v4147
        %v4149 = vrot.slane %v4135, %v4148
        %v4150 = vcombine.low %v4126, %v4126
        %v4151 = vcombine.high %v4126, %v4126
        %v4152 = vcombine.low %v4133, %v4133
        %v4153 = vcombine.high %v4133, %v4133
        %v4154 = vcombine.low %v4142, %v4142
        %v4155 = vcombine.high %v4142, %v4142
        %v4156 = vcombine.low %v4149, %v4149
        %v4157 = vcombine.high %v4149, %v4149
        %vm4158 = vcmask 64512
        %v4160 = vsel %vm4158, %v3828, 0
        %v4163 = vsel %vm4158, %v3829, 0
        %4165 = vmatprep.subr.mxu0 %v3959
        %4166 = vmatpush1.msra.mxu0 %v3958
        %4167 = vmatprep.subr.mxu0 0.0
        %4168 = vmatpush1.msra.mxu0 0.0
        %4169 = vmatprep.subr.mxu0 0.0
        %4170 = vmatpush1.msra.mxu0 0.0
        %4171 = vmatprep.subr.mxu0 0.0
        %4172 = vmatpush1.msra.mxu0 0.0
        %4173 = vmatprep.subr.mxu0 0.0
        %4174 = vmatpush1.msra.mxu0 0.0
        %4175 = vmatprep.subr.mxu0 0.0
        %4176 = vmatpush1.msra.mxu0 0.0
        %4177 = vmatprep.subr.mxu0 0.0
        %4178 = vmatpush1.msra.mxu0 0.0
        %4179 = vmatprep.subr.mxu0 0.0
        %4180 = vmatpush1.msra.mxu0 0.0
        %4181 = vmatprep.subr.mxu0 0.0
        %4182 = vmatpush1.msra.mxu0 0.0
        %4183 = vmatprep.subr.mxu0 0.0
        %4184 = vmatpush1.msra.mxu0 0.0
        %4185 = vmatprep.subr.mxu0 0.0
        %4186 = vmatpush1.msra.mxu0 0.0
        %4187 = vmatprep.subr.mxu0 0.0
        %4188 = vmatpush1.msra.mxu0 0.0
        %4189 = vmatprep.subr.mxu0 0.0
        %4190 = vmatpush1.msra.mxu0 0.0
        %4191 = vmatprep.subr.mxu0 0.0
        %4192 = vmatpush1.msra.mxu0 0.0
        %4193 = vmatprep.subr.mxu0 0.0
        %4194 = vmatpush1.msra.mxu0 0.0
        %4195 = vmatprep.subr.mxu0 0.0
        %4196 = vmatpush1.msra.mxu0 0.0
        %4197 = vmatprep.subr.mxu0 0.0
        %4198 = vmatpush1.msra.mxu0 0.0
        %4199 = vmatprep.subr.mxu0 0.0
        %4200 = vmatpush1.msra.mxu0 0.0
        %4201 = vmatprep.subr.mxu0 0.0
        %4202 = vmatpush1.msra.mxu0 0.0
        %4203 = vmatprep.subr.mxu0 0.0
        %4204 = vmatpush1.msra.mxu0 0.0
        %4205 = vmatprep.subr.mxu0 0.0
        %4206 = vmatpush1.msra.mxu0 0.0
        %4207 = vmatprep.subr.mxu0 0.0
        %4208 = vmatpush1.msra.mxu0 0.0
        %4209 = vmatprep.subr.mxu0 0.0
        %4210 = vmatpush1.msra.mxu0 0.0
        %4211 = vmatprep.subr.mxu0 0.0
        %4212 = vmatpush1.msra.mxu0 0.0
        %4213 = vmatprep.subr.mxu0 0.0
        %4214 = vmatpush1.msra.mxu0 0.0
        %4215 = vmatprep.subr.mxu0 0.0
        %4216 = vmatpush1.msra.mxu0 0.0
        %4217 = vmatprep.subr.mxu0 0.0
        %4218 = vmatpush1.msra.mxu0 0.0
        %4219 = vmatprep.subr.mxu0 0.0
        %4220 = vmatpush1.msra.mxu0 0.0
        %4221 = vmatprep.subr.mxu0 0.0
        %4222 = vmatpush1.msra.mxu0 0.0
        %4223 = vmatprep.subr.mxu0 0.0
        %4224 = vmatpush1.msra.mxu0 0.0
        %4225 = vmatprep.subr.mxu0 0.0
        %4226 = vmatpush1.msra.mxu0 0.0
        %4227 = vmatprep.subr.mxu0 0.0
        %4228 = vmatpush1.msra.mxu0 0.0
        %4229 = vmatprep.mubr.f32.mxu0 0.0
        %4230 = vmatmul.mubr.f32.gmra.mrb[0].mxu0 %v4160
        %v4231 = vpop.f32.mrb[0].mxu0
        %v4232 = vadd.f32 %v4150, %v4231
        %v4233 = vpop.f32.mrb[0].mxu0
        %v4234 = vadd.f32 %v4151, %v4233
        %4235 = vmatprep.mubr.f32.mxu0 0.0
        %4236 = vmatmul.mubr.f32.gmra.mrb[0].mxu0 %v4163
        %v4237 = vpop.f32.mrb[0].mxu0
        %v4238 = vadd.f32 %v4150, %v4237
        %v4239 = vpop.f32.mrb[0].mxu0
        %v4240 = vadd.f32 %v4151, %v4239
        %4241 = vdwg.mxu0
        %4242 = vmatprep.subr.mxu0 %v3961
        %4243 = vmatpush1.msra.mxu0 %v3960
        %4244 = vmatprep.subr.mxu0 0.0
        %4245 = vmatpush1.msra.mxu0 0.0
        %4246 = vmatprep.subr.mxu0 0.0
        %4247 = vmatpush1.msra.mxu0 0.0
        %4248 = vmatprep.subr.mxu0 0.0
        %4249 = vmatpush1.msra.mxu0 0.0
        %4250 = vmatprep.subr.mxu0 0.0
        %4251 = vmatpush1.msra.mxu0 0.0
        %4252 = vmatprep.subr.mxu0 0.0
        %4253 = vmatpush1.msra.mxu0 0.0
        %4254 = vmatprep.subr.mxu0 0.0
        %4255 = vmatpush1.msra.mxu0 0.0
        %4256 = vmatprep.subr.mxu0 0.0
        %4257 = vmatpush1.msra.mxu0 0.0
        %4258 = vmatprep.subr.mxu0 0.0
        %4259 = vmatpush1.msra.mxu0 0.0
        %4260 = vmatprep.subr.mxu0 0.0
        %4261 = vmatpush1.msra.mxu0 0.0
        %4262 = vmatprep.subr.mxu0 0.0
        %4263 = vmatpush1.msra.mxu0 0.0
        %4264 = vmatprep.subr.mxu0 0.0
        %4265 = vmatpush1.msra.mxu0 0.0
        %4266 = vmatprep.subr.mxu0 0.0
        %4267 = vmatpush1.msra.mxu0 0.0
        %4268 = vmatprep.subr.mxu0 0.0
        %4269 = vmatpush1.msra.mxu0 0.0
        %4270 = vmatprep.subr.mxu0 0.0
        %4271 = vmatpush1.msra.mxu0 0.0
        %4272 = vmatprep.subr.mxu0 0.0
        %4273 = vmatpush1.msra.mxu0 0.0
        %4274 = vmatprep.subr.mxu0 0.0
        %4275 = vmatpush1.msra.mxu0 0.0
        %4276 = vmatprep.subr.mxu0 0.0
        %4277 = vmatpush1.msra.mxu0 0.0
        %4278 = vmatprep.subr.mxu0 0.0
        %4279 = vmatpush1.msra.mxu0 0.0
        %4280 = vmatprep.subr.mxu0 0.0
        %4281 = vmatpush1.msra.mxu0 0.0
        %4282 = vmatprep.subr.mxu0 0.0
        %4283 = vmatpush1.msra.mxu0 0.0
        %4284 = vmatprep.subr.mxu0 0.0
        %4285 = vmatpush1.msra.mxu0 0.0
        %4286 = vmatprep.subr.mxu0 0.0
        %4287 = vmatpush1.msra.mxu0 0.0
        %4288 = vmatprep.subr.mxu0 0.0
        %4289 = vmatpush1.msra.mxu0 0.0
        %4290 = vmatprep.subr.mxu0 0.0
        %4291 = vmatpush1.msra.mxu0 0.0
        %4292 = vmatprep.subr.mxu0 0.0
        %4293 = vmatpush1.msra.mxu0 0.0
        %4294 = vmatprep.subr.mxu0 0.0
        %4295 = vmatpush1.msra.mxu0 0.0
        %4296 = vmatprep.subr.mxu0 0.0
        %4297 = vmatpush1.msra.mxu0 0.0
        %4298 = vmatprep.subr.mxu0 0.0
        %4299 = vmatpush1.msra.mxu0 0.0
        %4300 = vmatprep.subr.mxu0 0.0
        %4301 = vmatpush1.msra.mxu0 0.0
        %4302 = vmatprep.subr.mxu0 0.0
        %4303 = vmatpush1.msra.mxu0 0.0
        %4304 = vmatprep.subr.mxu0 0.0
        %4305 = vmatpush1.msra.mxu0 0.0
        %4306 = vmatprep.mubr.f32.mxu0 0.0
        %4307 = vmatmul.mubr.f32.gmra.mrb[0].mxu0 %v4160
        %v4308 = vpop.f32.mrb[0].mxu0
        %v4309 = vadd.f32 %v4152, %v4308
        %v4310 = vpop.f32.mrb[0].mxu0
        %v4311 = vadd.f32 %v4153, %v4310
        %4312 = vmatprep.mubr.f32.mxu0 0.0
        %4313 = vmatmul.mubr.f32.gmra.mrb[0].mxu0 %v4163
        %v4314 = vpop.f32.mrb[0].mxu0
        %v4315 = vadd.f32 %v4152, %v4314
        %v4316 = vpop.f32.mrb[0].mxu0
        %v4317 = vadd.f32 %v4153, %v4316
        %4318 = vdwg.mxu0
        %4319 = vmatprep.subr.mxu0 %v3963
        %4320 = vmatpush1.msra.mxu0 %v3962
        %4321 = vmatprep.subr.mxu0 0.0
        %4322 = vmatpush1.msra.mxu0 0.0
        %4323 = vmatprep.subr.mxu0 0.0
        %4324 = vmatpush1.msra.mxu0 0.0
        %4325 = vmatprep.subr.mxu0 0.0
        %4326 = vmatpush1.msra.mxu0 0.0
        %4327 = vmatprep.subr.mxu0 0.0
        %4328 = vmatpush1.msra.mxu0 0.0
        %4329 = vmatprep.subr.mxu0 0.0
        %4330 = vmatpush1.msra.mxu0 0.0
        %4331 = vmatprep.subr.mxu0 0.0
        %4332 = vmatpush1.msra.mxu0 0.0
        %4333 = vmatprep.subr.mxu0 0.0
        %4334 = vmatpush1.msra.mxu0 0.0
        %4335 = vmatprep.subr.mxu0 0.0
        %4336 = vmatpush1.msra.mxu0 0.0
        %4337 = vmatprep.subr.mxu0 0.0
        %4338 = vmatpush1.msra.mxu0 0.0
        %4339 = vmatprep.subr.mxu0 0.0
        %4340 = vmatpush1.msra.mxu0 0.0
        %4341 = vmatprep.subr.mxu0 0.0
        %4342 = vmatpush1.msra.mxu0 0.0
        %4343 = vmatprep.subr.mxu0 0.0
        %4344 = vmatpush1.msra.mxu0 0.0
        %4345 = vmatprep.subr.mxu0 0.0
        %4346 = vmatpush1.msra.mxu0 0.0
        %4347 = vmatprep.subr.mxu0 0.0
        %4348 = vmatpush1.msra.mxu0 0.0
        %4349 = vmatprep.subr.mxu0 0.0
        %4350 = vmatpush1.msra.mxu0 0.0
        %4351 = vmatprep.subr.mxu0 0.0
        %4352 = vmatpush1.msra.mxu0 0.0
        %4353 = vmatprep.subr.mxu0 0.0
        %4354 = vmatpush1.msra.mxu0 0.0
        %4355 = vmatprep.subr.mxu0 0.0
        %4356 = vmatpush1.msra.mxu0 0.0
        %4357 = vmatprep.subr.mxu0 0.0
        %4358 = vmatpush1.msra.mxu0 0.0
        %4359 = vmatprep.subr.mxu0 0.0
        %4360 = vmatpush1.msra.mxu0 0.0
        %4361 = vmatprep.subr.mxu0 0.0
        %4362 = vmatpush1.msra.mxu0 0.0
        %4363 = vmatprep.subr.mxu0 0.0
        %4364 = vmatpush1.msra.mxu0 0.0
        %4365 = vmatprep.subr.mxu0 0.0
        %4366 = vmatpush1.msra.mxu0 0.0
        %4367 = vmatprep.subr.mxu0 0.0
        %4368 = vmatpush1.msra.mxu0 0.0
        %4369 = vmatprep.subr.mxu0 0.0
        %4370 = vmatpush1.msra.mxu0 0.0
        %4371 = vmatprep.subr.mxu0 0.0
        %4372 = vmatpush1.msra.mxu0 0.0
        %4373 = vmatprep.subr.mxu0 0.0
        %4374 = vmatpush1.msra.mxu0 0.0
        %4375 = vmatprep.subr.mxu0 0.0
        %4376 = vmatpush1.msra.mxu0 0.0
        %4377 = vmatprep.subr.mxu0 0.0
        %4378 = vmatpush1.msra.mxu0 0.0
        %4379 = vmatprep.subr.mxu0 0.0
        %4380 = vmatpush1.msra.mxu0 0.0
        %4381 = vmatprep.subr.mxu0 0.0
        %4382 = vmatpush1.msra.mxu0 0.0
        %4383 = vmatprep.mubr.f32.mxu0 0.0
        %4384 = vmatmul.mubr.f32.gmra.mrb[0].mxu0 %v4160
        %v4385 = vpop.f32.mrb[0].mxu0
        %v4386 = vadd.f32 %v4154, %v4385
        %v4387 = vpop.f32.mrb[0].mxu0
        %v4388 = vadd.f32 %v4155, %v4387
        %4389 = vmatprep.mubr.f32.mxu0 0.0
        %4390 = vmatmul.mubr.f32.gmra.mrb[0].mxu0 %v4163
        %v4391 = vpop.f32.mrb[0].mxu0
        %v4392 = vadd.f32 %v4154, %v4391
        %v4393 = vpop.f32.mrb[0].mxu0
        %v4394 = vadd.f32 %v4155, %v4393
        %4395 = vdwg.mxu0
        %4396 = vmatprep.subr.mxu0 %v3965
        %4397 = vmatpush1.msra.mxu0 %v3964
        %4398 = vmatprep.subr.mxu0 0.0
        %4399 = vmatpush1.msra.mxu0 0.0
        %4400 = vmatprep.subr.mxu0 0.0
        %4401 = vmatpush1.msra.mxu0 0.0
        %4402 = vmatprep.subr.mxu0 0.0
        %4403 = vmatpush1.msra.mxu0 0.0
        %4404 = vmatprep.subr.mxu0 0.0
        %4405 = vmatpush1.msra.mxu0 0.0
        %4406 = vmatprep.subr.mxu0 0.0
        %4407 = vmatpush1.msra.mxu0 0.0
        %4408 = vmatprep.subr.mxu0 0.0
        %4409 = vmatpush1.msra.mxu0 0.0
        %4410 = vmatprep.subr.mxu0 0.0
        %4411 = vmatpush1.msra.mxu0 0.0
        %4412 = vmatprep.subr.mxu0 0.0
        %4413 = vmatpush1.msra.mxu0 0.0
        %4414 = vmatprep.subr.mxu0 0.0
        %4415 = vmatpush1.msra.mxu0 0.0
        %4416 = vmatprep.subr.mxu0 0.0
        %4417 = vmatpush1.msra.mxu0 0.0
        %4418 = vmatprep.subr.mxu0 0.0
        %4419 = vmatpush1.msra.mxu0 0.0
        %4420 = vmatprep.subr.mxu0 0.0
        %4421 = vmatpush1.msra.mxu0 0.0
        %4422 = vmatprep.subr.mxu0 0.0
        %4423 = vmatpush1.msra.mxu0 0.0
        %4424 = vmatprep.subr.mxu0 0.0
        %4425 = vmatpush1.msra.mxu0 0.0
        %4426 = vmatprep.subr.mxu0 0.0
        %4427 = vmatpush1.msra.mxu0 0.0
        %4428 = vmatprep.subr.mxu0 0.0
        %4429 = vmatpush1.msra.mxu0 0.0
        %4430 = vmatprep.subr.mxu0 0.0
        %4431 = vmatpush1.msra.mxu0 0.0
        %4432 = vmatprep.subr.mxu0 0.0
        %4433 = vmatpush1.msra.mxu0 0.0
        %4434 = vmatprep.subr.mxu0 0.0
        %4435 = vmatpush1.msra.mxu0 0.0
        %4436 = vmatprep.subr.mxu0 0.0
        %4437 = vmatpush1.msra.mxu0 0.0
        %4438 = vmatprep.subr.mxu0 0.0
        %4439 = vmatpush1.msra.mxu0 0.0
        %4440 = vmatprep.subr.mxu0 0.0
        %4441 = vmatpush1.msra.mxu0 0.0
        %4442 = vmatprep.subr.mxu0 0.0
        %4443 = vmatpush1.msra.mxu0 0.0
        %4444 = vmatprep.subr.mxu0 0.0
        %4445 = vmatpush1.msra.mxu0 0.0
        %4446 = vmatprep.subr.mxu0 0.0
        %4447 = vmatpush1.msra.mxu0 0.0
        %4448 = vmatprep.subr.mxu0 0.0
        %4449 = vmatpush1.msra.mxu0 0.0
        %4450 = vmatprep.subr.mxu0 0.0
        %4451 = vmatpush1.msra.mxu0 0.0
        %4452 = vmatprep.subr.mxu0 0.0
        %4453 = vmatpush1.msra.mxu0 0.0
        %4454 = vmatprep.subr.mxu0 0.0
        %4455 = vmatpush1.msra.mxu0 0.0
        %4456 = vmatprep.subr.mxu0 0.0
        %4457 = vmatpush1.msra.mxu0 0.0
        %4458 = vmatprep.subr.mxu0 0.0
        %4459 = vmatpush1.msra.mxu0 0.0
        %4460 = vmatprep.mubr.f32.mxu0 0.0
        %4461 = vmatmul.mubr.f32.gmra.mrb[0].mxu0 %v4160
        %v4462 = vpop.f32.mrb[0].mxu0
        %v4463 = vadd.f32 %v4156, %v4462
        %v4464 = vpop.f32.mrb[0].mxu0
        %v4465 = vadd.f32 %v4157, %v4464
        %4466 = vmatprep.mubr.f32.mxu0 0.0
        %4467 = vmatmul.mubr.f32.gmra.mrb[0].mxu0 %v4163
        %v4468 = vpop.f32.mrb[0].mxu0
        %v4469 = vadd.f32 %v4156, %v4468
        %v4470 = vpop.f32.mrb[0].mxu0
        %v4471 = vadd.f32 %v4157, %v4470
        %4472 = vdwg.mxu0
        %4473 = vmatprep.subr.mxu0 %v4095
        %4474 = vmatpush1.msra.mxu0 %v4094
        %4475 = vmatprep.subr.mxu0 0.0
        %4476 = vmatpush1.msra.mxu0 0.0
        %4477 = vmatprep.subr.mxu0 0.0
        %4478 = vmatpush1.msra.mxu0 0.0
        %4479 = vmatprep.subr.mxu0 0.0
        %4480 = vmatpush1.msra.mxu0 0.0
        %4481 = vmatprep.subr.mxu0 0.0
        %4482 = vmatpush1.msra.mxu0 0.0
        %4483 = vmatprep.subr.mxu0 0.0
        %4484 = vmatpush1.msra.mxu0 0.0
        %4485 = vmatprep.subr.mxu0 0.0
        %4486 = vmatpush1.msra.mxu0 0.0
        %4487 = vmatprep.subr.mxu0 0.0
        %4488 = vmatpush1.msra.mxu0 0.0
        %4489 = vmatprep.subr.mxu0 0.0
        %4490 = vmatpush1.msra.mxu0 0.0
        %4491 = vmatprep.subr.mxu0 0.0
        %4492 = vmatpush1.msra.mxu0 0.0
        %4493 = vmatprep.subr.mxu0 0.0
        %4494 = vmatpush1.msra.mxu0 0.0
        %4495 = vmatprep.subr.mxu0 0.0
        %4496 = vmatpush1.msra.mxu0 0.0
        %4497 = vmatprep.subr.mxu0 0.0
        %4498 = vmatpush1.msra.mxu0 0.0
        %4499 = vmatprep.subr.mxu0 0.0
        %4500 = vmatpush1.msra.mxu0 0.0
        %4501 = vmatprep.subr.mxu0 0.0
        %4502 = vmatpush1.msra.mxu0 0.0
        %4503 = vmatprep.subr.mxu0 0.0
        %4504 = vmatpush1.msra.mxu0 0.0
        %4505 = vmatprep.subr.mxu0 0.0
        %4506 = vmatpush1.msra.mxu0 0.0
        %4507 = vmatprep.subr.mxu0 0.0
        %4508 = vmatpush1.msra.mxu0 0.0
        %4509 = vmatprep.subr.mxu0 0.0
        %4510 = vmatpush1.msra.mxu0 0.0
        %4511 = vmatprep.subr.mxu0 0.0
        %4512 = vmatpush1.msra.mxu0 0.0
        %4513 = vmatprep.subr.mxu0 0.0
        %4514 = vmatpush1.msra.mxu0 0.0
        %4515 = vmatprep.subr.mxu0 0.0
        %4516 = vmatpush1.msra.mxu0 0.0
        %4517 = vmatprep.subr.mxu0 0.0
        %4518 = vmatpush1.msra.mxu0 0.0
        %4519 = vmatprep.subr.mxu0 0.0
        %4520 = vmatpush1.msra.mxu0 0.0
        %4521 = vmatprep.subr.mxu0 0.0
        %4522 = vmatpush1.msra.mxu0 0.0
        %4523 = vmatprep.subr.mxu0 0.0
        %4524 = vmatpush1.msra.mxu0 0.0
        %4525 = vmatprep.subr.mxu0 0.0
        %4526 = vmatpush1.msra.mxu0 0.0
        %4527 = vmatprep.subr.mxu0 0.0
        %4528 = vmatpush1.msra.mxu0 0.0
        %4529 = vmatprep.subr.mxu0 0.0
        %4530 = vmatpush1.msra.mxu0 0.0
        %4531 = vmatprep.subr.mxu0 0.0
        %4532 = vmatpush1.msra.mxu0 0.0
        %4533 = vmatprep.subr.mxu0 0.0
        %4534 = vmatpush1.msra.mxu0 0.0
        %4535 = vmatprep.subr.mxu0 0.0
        %4536 = vmatpush1.msra.mxu0 0.0
        %4537 = vmatprep.mubr.f32.mxu0 0.0
        %4538 = vmatmul.mubr.f32.gmra.mrb[0].mxu0 %v4160
        %v4539 = vpop.f32.mrb[0].mxu0
        %v4540 = vadd.f32 %v4150, %v4539
        %v4541 = vpop.f32.mrb[0].mxu0
        %v4542 = vadd.f32 %v4151, %v4541
        %4543 = vmatprep.mubr.f32.mxu0 0.0
        %4544 = vmatmul.mubr.f32.gmra.mrb[0].mxu0 %v4163
        %v4545 = vpop.f32.mrb[0].mxu0
        %v4546 = vadd.f32 %v4150, %v4545
        %v4547 = vpop.f32.mrb[0].mxu0
        %v4548 = vadd.f32 %v4151, %v4547
        %4549 = vdwg.mxu0
        %4550 = vmatprep.subr.mxu0 %v4097
        %4551 = vmatpush1.msra.mxu0 %v4096
        %4552 = vmatprep.subr.mxu0 0.0
        %4553 = vmatpush1.msra.mxu0 0.0
        %4554 = vmatprep.subr.mxu0 0.0
        %4555 = vmatpush1.msra.mxu0 0.0
        %4556 = vmatprep.subr.mxu0 0.0
        %4557 = vmatpush1.msra.mxu0 0.0
        %4558 = vmatprep.subr.mxu0 0.0
        %4559 = vmatpush1.msra.mxu0 0.0
        %4560 = vmatprep.subr.mxu0 0.0
        %4561 = vmatpush1.msra.mxu0 0.0
        %4562 = vmatprep.subr.mxu0 0.0
        %4563 = vmatpush1.msra.mxu0 0.0
        %4564 = vmatprep.subr.mxu0 0.0
        %4565 = vmatpush1.msra.mxu0 0.0
        %4566 = vmatprep.subr.mxu0 0.0
        %4567 = vmatpush1.msra.mxu0 0.0
        %4568 = vmatprep.subr.mxu0 0.0
        %4569 = vmatpush1.msra.mxu0 0.0
        %4570 = vmatprep.subr.mxu0 0.0
        %4571 = vmatpush1.msra.mxu0 0.0
        %4572 = vmatprep.subr.mxu0 0.0
        %4573 = vmatpush1.msra.mxu0 0.0
        %4574 = vmatprep.subr.mxu0 0.0
        %4575 = vmatpush1.msra.mxu0 0.0
        %4576 = vmatprep.subr.mxu0 0.0
        %4577 = vmatpush1.msra.mxu0 0.0
        %4578 = vmatprep.subr.mxu0 0.0
        %4579 = vmatpush1.msra.mxu0 0.0
        %4580 = vmatprep.subr.mxu0 0.0
        %4581 = vmatpush1.msra.mxu0 0.0
        %4582 = vmatprep.subr.mxu0 0.0
        %4583 = vmatpush1.msra.mxu0 0.0
        %4584 = vmatprep.subr.mxu0 0.0
        %4585 = vmatpush1.msra.mxu0 0.0
        %4586 = vmatprep.subr.mxu0 0.0
        %4587 = vmatpush1.msra.mxu0 0.0
        %4588 = vmatprep.subr.mxu0 0.0
        %4589 = vmatpush1.msra.mxu0 0.0
        %4590 = vmatprep.subr.mxu0 0.0
        %4591 = vmatpush1.msra.mxu0 0.0
        %4592 = vmatprep.subr.mxu0 0.0
        %4593 = vmatpush1.msra.mxu0 0.0
        %4594 = vmatprep.subr.mxu0 0.0
        %4595 = vmatpush1.msra.mxu0 0.0
        %4596 = vmatprep.subr.mxu0 0.0
        %4597 = vmatpush1.msra.mxu0 0.0
        %4598 = vmatprep.subr.mxu0 0.0
        %4599 = vmatpush1.msra.mxu0 0.0
        %4600 = vmatprep.subr.mxu0 0.0
        %4601 = vmatpush1.msra.mxu0 0.0
        %4602 = vmatprep.subr.mxu0 0.0
        %4603 = vmatpush1.msra.mxu0 0.0
        %4604 = vmatprep.subr.mxu0 0.0
        %4605 = vmatpush1.msra.mxu0 0.0
        %4606 = vmatprep.subr.mxu0 0.0
        %4607 = vmatpush1.msra.mxu0 0.0
        %4608 = vmatprep.subr.mxu0 0.0
        %4609 = vmatpush1.msra.mxu0 0.0
        %4610 = vmatprep.subr.mxu0 0.0
        %4611 = vmatpush1.msra.mxu0 0.0
        %4612 = vmatprep.subr.mxu0 0.0
        %4613 = vmatpush1.msra.mxu0 0.0
        %4614 = vmatprep.mubr.f32.mxu0 0.0
        %4615 = vmatmul.mubr.f32.gmra.mrb[0].mxu0 %v4160
        %v4616 = vpop.f32.mrb[0].mxu0
        %v4617 = vadd.f32 %v4152, %v4616
        %v4618 = vpop.f32.mrb[0].mxu0
        %v4619 = vadd.f32 %v4153, %v4618
        %4620 = vmatprep.mubr.f32.mxu0 0.0
        %4621 = vmatmul.mubr.f32.gmra.mrb[0].mxu0 %v4163
        %v4622 = vpop.f32.mrb[0].mxu0
        %v4623 = vadd.f32 %v4152, %v4622
        %v4624 = vpop.f32.mrb[0].mxu0
        %v4625 = vadd.f32 %v4153, %v4624
        %4626 = vdwg.mxu0
        %4627 = vmatprep.subr.mxu0 %v4099
        %4628 = vmatpush1.msra.mxu0 %v4098
        %4629 = vmatprep.subr.mxu0 0.0
        %4630 = vmatpush1.msra.mxu0 0.0
        %4631 = vmatprep.subr.mxu0 0.0
        %4632 = vmatpush1.msra.mxu0 0.0
        %4633 = vmatprep.subr.mxu0 0.0
        %4634 = vmatpush1.msra.mxu0 0.0
        %4635 = vmatprep.subr.mxu0 0.0
        %4636 = vmatpush1.msra.mxu0 0.0
        %4637 = vmatprep.subr.mxu0 0.0
        %4638 = vmatpush1.msra.mxu0 0.0
        %4639 = vmatprep.subr.mxu0 0.0
        %4640 = vmatpush1.msra.mxu0 0.0
        %4641 = vmatprep.subr.mxu0 0.0
        %4642 = vmatpush1.msra.mxu0 0.0
        %4643 = vmatprep.subr.mxu0 0.0
        %4644 = vmatpush1.msra.mxu0 0.0
        %4645 = vmatprep.subr.mxu0 0.0
        %4646 = vmatpush1.msra.mxu0 0.0
        %4647 = vmatprep.subr.mxu0 0.0
        %4648 = vmatpush1.msra.mxu0 0.0
        %4649 = vmatprep.subr.mxu0 0.0
        %4650 = vmatpush1.msra.mxu0 0.0
        %4651 = vmatprep.subr.mxu0 0.0
        %4652 = vmatpush1.msra.mxu0 0.0
        %4653 = vmatprep.subr.mxu0 0.0
        %4654 = vmatpush1.msra.mxu0 0.0
        %4655 = vmatprep.subr.mxu0 0.0
        %4656 = vmatpush1.msra.mxu0 0.0
        %4657 = vmatprep.subr.mxu0 0.0
        %4658 = vmatpush1.msra.mxu0 0.0
        %4659 = vmatprep.subr.mxu0 0.0
        %4660 = vmatpush1.msra.mxu0 0.0
        %4661 = vmatprep.subr.mxu0 0.0
        %4662 = vmatpush1.msra.mxu0 0.0
        %4663 = vmatprep.subr.mxu0 0.0
        %4664 = vmatpush1.msra.mxu0 0.0
        %4665 = vmatprep.subr.mxu0 0.0
        %4666 = vmatpush1.msra.mxu0 0.0
        %4667 = vmatprep.subr.mxu0 0.0
        %4668 = vmatpush1.msra.mxu0 0.0
        %4669 = vmatprep.subr.mxu0 0.0
        %4670 = vmatpush1.msra.mxu0 0.0
        %4671 = vmatprep.subr.mxu0 0.0
        %4672 = vmatpush1.msra.mxu0 0.0
        %4673 = vmatprep.subr.mxu0 0.0
        %4674 = vmatpush1.msra.mxu0 0.0
        %4675 = vmatprep.subr.mxu0 0.0
        %4676 = vmatpush1.msra.mxu0 0.0
        %4677 = vmatprep.subr.mxu0 0.0
        %4678 = vmatpush1.msra.mxu0 0.0
        %4679 = vmatprep.subr.mxu0 0.0
        %4680 = vmatpush1.msra.mxu0 0.0
        %4681 = vmatprep.subr.mxu0 0.0
        %4682 = vmatpush1.msra.mxu0 0.0
        %4683 = vmatprep.subr.mxu0 0.0
        %4684 = vmatpush1.msra.mxu0 0.0
        %4685 = vmatprep.subr.mxu0 0.0
        %4686 = vmatpush1.msra.mxu0 0.0
        %4687 = vmatprep.subr.mxu0 0.0
        %4688 = vmatpush1.msra.mxu0 0.0
        %4689 = vmatprep.subr.mxu0 0.0
        %4690 = vmatpush1.msra.mxu0 0.0
        %4691 = vmatprep.mubr.f32.mxu0 0.0
        %4692 = vmatmul.mubr.f32.gmra.mrb[0].mxu0 %v4160
        %v4693 = vpop.f32.mrb[0].mxu0
        %v4694 = vadd.f32 %v4154, %v4693
        %v4695 = vpop.f32.mrb[0].mxu0
        %v4696 = vadd.f32 %v4155, %v4695
        %4697 = vmatprep.mubr.f32.mxu0 0.0
        %4698 = vmatmul.mubr.f32.gmra.mrb[0].mxu0 %v4163
        %v4699 = vpop.f32.mrb[0].mxu0
        %v4700 = vadd.f32 %v4154, %v4699
        %v4701 = vpop.f32.mrb[0].mxu0
        %v4702 = vadd.f32 %v4155, %v4701
        %4703 = vdwg.mxu0
        %4704 = vmatprep.subr.mxu0 %v4101
        %4705 = vmatpush1.msra.mxu0 %v4100
        %4706 = vmatprep.subr.mxu0 0.0
        %4707 = vmatpush1.msra.mxu0 0.0
        %4708 = vmatprep.subr.mxu0 0.0
        %4709 = vmatpush1.msra.mxu0 0.0
        %4710 = vmatprep.subr.mxu0 0.0
        %4711 = vmatpush1.msra.mxu0 0.0
        %4712 = vmatprep.subr.mxu0 0.0
        %4713 = vmatpush1.msra.mxu0 0.0
        %4714 = vmatprep.subr.mxu0 0.0
        %4715 = vmatpush1.msra.mxu0 0.0
        %4716 = vmatprep.subr.mxu0 0.0
        %4717 = vmatpush1.msra.mxu0 0.0
        %4718 = vmatprep.subr.mxu0 0.0
        %4719 = vmatpush1.msra.mxu0 0.0
        %4720 = vmatprep.subr.mxu0 0.0
        %4721 = vmatpush1.msra.mxu0 0.0
        %4722 = vmatprep.subr.mxu0 0.0
        %4723 = vmatpush1.msra.mxu0 0.0
        %4724 = vmatprep.subr.mxu0 0.0
        %4725 = vmatpush1.msra.mxu0 0.0
        %4726 = vmatprep.subr.mxu0 0.0
        %4727 = vmatpush1.msra.mxu0 0.0
        %4728 = vmatprep.subr.mxu0 0.0
        %4729 = vmatpush1.msra.mxu0 0.0
        %4730 = vmatprep.subr.mxu0 0.0
        %4731 = vmatpush1.msra.mxu0 0.0
        %4732 = vmatprep.subr.mxu0 0.0
        %4733 = vmatpush1.msra.mxu0 0.0
        %4734 = vmatprep.subr.mxu0 0.0
        %4735 = vmatpush1.msra.mxu0 0.0
        %4736 = vmatprep.subr.mxu0 0.0
        %4737 = vmatpush1.msra.mxu0 0.0
        %4738 = vmatprep.subr.mxu0 0.0
        %4739 = vmatpush1.msra.mxu0 0.0
        %4740 = vmatprep.subr.mxu0 0.0
        %4741 = vmatpush1.msra.mxu0 0.0
        %4742 = vmatprep.subr.mxu0 0.0
        %4743 = vmatpush1.msra.mxu0 0.0
        %4744 = vmatprep.subr.mxu0 0.0
        %4745 = vmatpush1.msra.mxu0 0.0
        %4746 = vmatprep.subr.mxu0 0.0
        %4747 = vmatpush1.msra.mxu0 0.0
        %4748 = vmatprep.subr.mxu0 0.0
        %4749 = vmatpush1.msra.mxu0 0.0
        %4750 = vmatprep.subr.mxu0 0.0
        %4751 = vmatpush1.msra.mxu0 0.0
        %4752 = vmatprep.subr.mxu0 0.0
        %4753 = vmatpush1.msra.mxu0 0.0
        %4754 = vmatprep.subr.mxu0 0.0
        %4755 = vmatpush1.msra.mxu0 0.0
        %4756 = vmatprep.subr.mxu0 0.0
        %4757 = vmatpush1.msra.mxu0 0.0
        %4758 = vmatprep.subr.mxu0 0.0
        %4759 = vmatpush1.msra.mxu0 0.0
        %4760 = vmatprep.subr.mxu0 0.0
        %4761 = vmatpush1.msra.mxu0 0.0
        %4762 = vmatprep.subr.mxu0 0.0
        %4763 = vmatpush1.msra.mxu0 0.0
        %4764 = vmatprep.subr.mxu0 0.0
        %4765 = vmatpush1.msra.mxu0 0.0
        %4766 = vmatprep.subr.mxu0 0.0
        %4767 = vmatpush1.msra.mxu0 0.0
        %4768 = vmatprep.mubr.f32.mxu0 0.0
        %4769 = vmatmul.mubr.f32.gmra.mrb[0].mxu0 %v4160
        %v4770 = vpop.f32.mrb[0].mxu0
        %v4771 = vadd.f32 %v4156, %v4770
        %v4772 = vpop.f32.mrb[0].mxu0
        %v4773 = vadd.f32 %v4157, %v4772
        %4774 = vmatprep.mubr.f32.mxu0 0.0
        %4775 = vmatmul.mubr.f32.gmra.mrb[0].mxu0 %v4163
        %v4776 = vpop.f32.mrb[0].mxu0
        %v4777 = vadd.f32 %v4156, %v4776
        %v4778 = vpop.f32.mrb[0].mxu0
        %v4779 = vadd.f32 %v4157, %v4778
        %4780 = vdwg.mxu0
        %v4781 = vcombine.low %v4232, %v4309
        %v4782 = vcombine.high %v4232, %v4309
        %v4784 = vunpack.c.l.s4 1983009808
        %v4785 = vunpack.c.0.s8 %v4784
        %v4786 = vlaneseq
        %v4787 = vshrl.u32 %v4786, 7
        %v4788 = vsub.s32 %v4785, %v4787
        %v4789 = vrot.slane %v4781, %v4788
        %v4791 = vunpack.c.l.s4 1983009808
        %v4792 = vunpack.c.0.s8 %v4791
        %v4793 = vlaneseq
        %v4794 = vshrl.u32 %v4793, 7
        %v4795 = vsub.s32 %v4792, %v4794
        %v4796 = vrot.slane %v4782, %v4795
        %v4797 = vcombine.low %v4234, %v4311
        %v4798 = vcombine.high %v4234, %v4311
        %v4800 = vunpack.c.l.s4 1983009808
        %v4801 = vunpack.c.0.s8 %v4800
        %v4802 = vlaneseq
        %v4803 = vshrl.u32 %v4802, 7
        %v4804 = vsub.s32 %v4801, %v4803
        %v4805 = vrot.slane %v4797, %v4804
        %v4807 = vunpack.c.l.s4 1983009808
        %v4808 = vunpack.c.0.s8 %v4807
        %v4809 = vlaneseq
        %v4810 = vshrl.u32 %v4809, 7
        %v4811 = vsub.s32 %v4808, %v4810
        %v4812 = vrot.slane %v4798, %v4811
        %v4813 = vcombine.low %v4386, %v4463
        %v4814 = vcombine.high %v4386, %v4463
        %v4816 = vunpack.c.l.s4 1983009808
        %v4817 = vunpack.c.0.s8 %v4816
        %v4818 = vlaneseq
        %v4819 = vshrl.u32 %v4818, 7
        %v4820 = vsub.s32 %v4817, %v4819
        %v4821 = vrot.slane %v4813, %v4820
        %v4823 = vunpack.c.l.s4 1983009808
        %v4824 = vunpack.c.0.s8 %v4823
        %v4825 = vlaneseq
        %v4826 = vshrl.u32 %v4825, 7
        %v4827 = vsub.s32 %v4824, %v4826
        %v4828 = vrot.slane %v4814, %v4827
        %v4829 = vcombine.low %v4388, %v4465
        %v4830 = vcombine.high %v4388, %v4465
        %v4832 = vunpack.c.l.s4 1983009808
        %v4833 = vunpack.c.0.s8 %v4832
        %v4834 = vlaneseq
        %v4835 = vshrl.u32 %v4834, 7
        %v4836 = vsub.s32 %v4833, %v4835
        %v4837 = vrot.slane %v4829, %v4836
        %v4839 = vunpack.c.l.s4 1983009808
        %v4840 = vunpack.c.0.s8 %v4839
        %v4841 = vlaneseq
        %v4842 = vshrl.u32 %v4841, 7
        %v4843 = vsub.s32 %v4840, %v4842
        %v4844 = vrot.slane %v4830, %v4843
        %v4845 = vcombine.low %v4789, %v4805
        %v4846 = vcombine.high %v4789, %v4805
        %v4848 = vunpack.c.l.s4 1934713408
        %v4849 = vunpack.c.0.s8 %v4848
        %v4850 = vlaneseq
        %v4851 = vshrl.u32 %v4850, 7
        %v4852 = vsub.s32 %v4849, %v4851
        %v4853 = vrot.slane %v4845, %v4852
        %v4855 = vunpack.c.l.s4 1934713408
        %v4856 = vunpack.c.0.s8 %v4855
        %v4857 = vlaneseq
        %v4858 = vshrl.u32 %v4857, 7
        %v4859 = vsub.s32 %v4856, %v4858
        %v4860 = vrot.slane %v4846, %v4859
        %v4861 = vcombine.low %v4796, %v4812
        %v4862 = vcombine.high %v4796, %v4812
        %v4864 = vunpack.c.l.s4 1934713408
        %v4865 = vunpack.c.0.s8 %v4864
        %v4866 = vlaneseq
        %v4867 = vshrl.u32 %v4866, 7
        %v4868 = vsub.s32 %v4865, %v4867
        %v4869 = vrot.slane %v4861, %v4868
        %v4871 = vunpack.c.l.s4 1934713408
        %v4872 = vunpack.c.0.s8 %v4871
        %v4873 = vlaneseq
        %v4874 = vshrl.u32 %v4873, 7
        %v4875 = vsub.s32 %v4872, %v4874
        %v4876 = vrot.slane %v4862, %v4875
        %v4877 = vcombine.low %v4821, %v4837
        %v4878 = vcombine.high %v4821, %v4837
        %v4880 = vunpack.c.l.s4 1934713408
        %v4881 = vunpack.c.0.s8 %v4880
        %v4882 = vlaneseq
        %v4883 = vshrl.u32 %v4882, 7
        %v4884 = vsub.s32 %v4881, %v4883
        %v4885 = vrot.slane %v4877, %v4884
        %v4887 = vunpack.c.l.s4 1934713408
        %v4888 = vunpack.c.0.s8 %v4887
        %v4889 = vlaneseq
        %v4890 = vshrl.u32 %v4889, 7
        %v4891 = vsub.s32 %v4888, %v4890
        %v4892 = vrot.slane %v4878, %v4891
        %v4893 = vcombine.low %v4828, %v4844
        %v4894 = vcombine.high %v4828, %v4844
        %v4896 = vunpack.c.l.s4 1934713408
        %v4897 = vunpack.c.0.s8 %v4896
        %v4898 = vlaneseq
        %v4899 = vshrl.u32 %v4898, 7
        %v4900 = vsub.s32 %v4897, %v4899
        %v4901 = vrot.slane %v4893, %v4900
        %v4903 = vunpack.c.l.s4 1934713408
        %v4904 = vunpack.c.0.s8 %v4903
        %v4905 = vlaneseq
        %v4906 = vshrl.u32 %v4905, 7
        %v4907 = vsub.s32 %v4904, %v4906
        %v4908 = vrot.slane %v4894, %v4907
        %v4909 = vcombine.low %v4853, %v4885
        %v4910 = vcombine.high %v4853, %v4885
        %v4911 = vcombine.low %v4860, %v4892
        %v4912 = vcombine.high %v4860, %v4892
        %v4913 = vcombine.low %v4869, %v4901
        %v4914 = vcombine.high %v4869, %v4901
        %v4915 = vcombine.low %v4876, %v4908
        %v4916 = vcombine.high %v4876, %v4908
        %v4917 = vcombine.low %v4540, %v4617
        %v4918 = vcombine.high %v4540, %v4617
        %v4920 = vunpack.c.l.s4 1983009808
        %v4921 = vunpack.c.0.s8 %v4920
        %v4922 = vlaneseq
        %v4923 = vshrl.u32 %v4922, 7
        %v4924 = vsub.s32 %v4921, %v4923
        %v4925 = vrot.slane %v4917, %v4924
        %v4927 = vunpack.c.l.s4 1983009808
        %v4928 = vunpack.c.0.s8 %v4927
        %v4929 = vlaneseq
        %v4930 = vshrl.u32 %v4929, 7
        %v4931 = vsub.s32 %v4928, %v4930
        %v4932 = vrot.slane %v4918, %v4931
        %v4933 = vcombine.low %v4542, %v4619
        %v4934 = vcombine.high %v4542, %v4619
        %v4936 = vunpack.c.l.s4 1983009808
        %v4937 = vunpack.c.0.s8 %v4936
        %v4938 = vlaneseq
        %v4939 = vshrl.u32 %v4938, 7
        %v4940 = vsub.s32 %v4937, %v4939
        %v4941 = vrot.slane %v4933, %v4940
        %v4943 = vunpack.c.l.s4 1983009808
        %v4944 = vunpack.c.0.s8 %v4943
        %v4945 = vlaneseq
        %v4946 = vshrl.u32 %v4945, 7
        %v4947 = vsub.s32 %v4944, %v4946
        %v4948 = vrot.slane %v4934, %v4947
        %v4949 = vcombine.low %v4694, %v4771
        %v4950 = vcombine.high %v4694, %v4771
        %v4952 = vunpack.c.l.s4 1983009808
        %v4953 = vunpack.c.0.s8 %v4952
        %v4954 = vlaneseq
        %v4955 = vshrl.u32 %v4954, 7
        %v4956 = vsub.s32 %v4953, %v4955
        %v4957 = vrot.slane %v4949, %v4956
        %v4959 = vunpack.c.l.s4 1983009808
        %v4960 = vunpack.c.0.s8 %v4959
        %v4961 = vlaneseq
        %v4962 = vshrl.u32 %v4961, 7
        %v4963 = vsub.s32 %v4960, %v4962
        %v4964 = vrot.slane %v4950, %v4963
        %v4965 = vcombine.low %v4696, %v4773
        %v4966 = vcombine.high %v4696, %v4773
        %v4968 = vunpack.c.l.s4 1983009808
        %v4969 = vunpack.c.0.s8 %v4968
        %v4970 = vlaneseq
        %v4971 = vshrl.u32 %v4970, 7
        %v4972 = vsub.s32 %v4969, %v4971
        %v4973 = vrot.slane %v4965, %v4972
        %v4975 = vunpack.c.l.s4 1983009808
        %v4976 = vunpack.c.0.s8 %v4975
        %v4977 = vlaneseq
        %v4978 = vshrl.u32 %v4977, 7
        %v4979 = vsub.s32 %v4976, %v4978
        %v4980 = vrot.slane %v4966, %v4979
        %v4981 = vcombine.low %v4925, %v4941
        %v4982 = vcombine.high %v4925, %v4941
        %v4984 = vunpack.c.l.s4 1934713408
        %v4985 = vunpack.c.0.s8 %v4984
        %v4986 = vlaneseq
        %v4987 = vshrl.u32 %v4986, 7
        %v4988 = vsub.s32 %v4985, %v4987
        %v4989 = vrot.slane %v4981, %v4988
        %v4991 = vunpack.c.l.s4 1934713408
        %v4992 = vunpack.c.0.s8 %v4991
        %v4993 = vlaneseq
        %v4994 = vshrl.u32 %v4993, 7
        %v4995 = vsub.s32 %v4992, %v4994
        %v4996 = vrot.slane %v4982, %v4995
        %v4997 = vcombine.low %v4932, %v4948
        %v4998 = vcombine.high %v4932, %v4948
        %v5000 = vunpack.c.l.s4 1934713408
        %v5001 = vunpack.c.0.s8 %v5000
        %v5002 = vlaneseq
        %v5003 = vshrl.u32 %v5002, 7
        %v5004 = vsub.s32 %v5001, %v5003
        %v5005 = vrot.slane %v4997, %v5004
        %v5007 = vunpack.c.l.s4 1934713408
        %v5008 = vunpack.c.0.s8 %v5007
        %v5009 = vlaneseq
        %v5010 = vshrl.u32 %v5009, 7
        %v5011 = vsub.s32 %v5008, %v5010
        %v5012 = vrot.slane %v4998, %v5011
        %v5013 = vcombine.low %v4957, %v4973
        %v5014 = vcombine.high %v4957, %v4973
        %v5016 = vunpack.c.l.s4 1934713408
        %v5017 = vunpack.c.0.s8 %v5016
        %v5018 = vlaneseq
        %v5019 = vshrl.u32 %v5018, 7
        %v5020 = vsub.s32 %v5017, %v5019
        %v5021 = vrot.slane %v5013, %v5020
        %v5023 = vunpack.c.l.s4 1934713408
        %v5024 = vunpack.c.0.s8 %v5023
        %v5025 = vlaneseq
        %v5026 = vshrl.u32 %v5025, 7
        %v5027 = vsub.s32 %v5024, %v5026
        %v5028 = vrot.slane %v5014, %v5027
        %v5029 = vcombine.low %v4964, %v4980
        %v5030 = vcombine.high %v4964, %v4980
        %v5032 = vunpack.c.l.s4 1934713408
        %v5033 = vunpack.c.0.s8 %v5032
        %v5034 = vlaneseq
        %v5035 = vshrl.u32 %v5034, 7
        %v5036 = vsub.s32 %v5033, %v5035
        %v5037 = vrot.slane %v5029, %v5036
        %v5039 = vunpack.c.l.s4 1934713408
        %v5040 = vunpack.c.0.s8 %v5039
        %v5041 = vlaneseq
        %v5042 = vshrl.u32 %v5041, 7
        %v5043 = vsub.s32 %v5040, %v5042
        %v5044 = vrot.slane %v5030, %v5043
        %v5045 = vcombine.low %v4989, %v5021
        %v5046 = vcombine.high %v4989, %v5021
        %v5047 = vcombine.low %v4996, %v5028
        %v5048 = vcombine.high %v4996, %v5028
        %v5049 = vcombine.low %v5005, %v5037
        %v5050 = vcombine.high %v5005, %v5037
        %v5051 = vcombine.low %v5012, %v5044
        %v5052 = vcombine.high %v5012, %v5044
        %v5053 = vcombine.low %v4238, %v4315
        %v5054 = vcombine.high %v4238, %v4315
        %v5056 = vunpack.c.l.s4 1983009808
        %v5057 = vunpack.c.0.s8 %v5056
        %v5058 = vlaneseq
        %v5059 = vshrl.u32 %v5058, 7
        %v5060 = vsub.s32 %v5057, %v5059
        %v5061 = vrot.slane %v5053, %v5060
        %v5063 = vunpack.c.l.s4 1983009808
        %v5064 = vunpack.c.0.s8 %v5063
        %v5065 = vlaneseq
        %v5066 = vshrl.u32 %v5065, 7
        %v5067 = vsub.s32 %v5064, %v5066
        %v5068 = vrot.slane %v5054, %v5067
        %v5069 = vcombine.low %v4240, %v4317
        %v5070 = vcombine.high %v4240, %v4317
        %v5072 = vunpack.c.l.s4 1983009808
        %v5073 = vunpack.c.0.s8 %v5072
        %v5074 = vlaneseq
        %v5075 = vshrl.u32 %v5074, 7
        %v5076 = vsub.s32 %v5073, %v5075
        %v5077 = vrot.slane %v5069, %v5076
        %v5079 = vunpack.c.l.s4 1983009808
        %v5080 = vunpack.c.0.s8 %v5079
        %v5081 = vlaneseq
        %v5082 = vshrl.u32 %v5081, 7
        %v5083 = vsub.s32 %v5080, %v5082
        %v5084 = vrot.slane %v5070, %v5083
        %v5085 = vcombine.low %v4392, %v4469
        %v5086 = vcombine.high %v4392, %v4469
        %v5088 = vunpack.c.l.s4 1983009808
        %v5089 = vunpack.c.0.s8 %v5088
        %v5090 = vlaneseq
        %v5091 = vshrl.u32 %v5090, 7
        %v5092 = vsub.s32 %v5089, %v5091
        %v5093 = vrot.slane %v5085, %v5092
        %v5095 = vunpack.c.l.s4 1983009808
        %v5096 = vunpack.c.0.s8 %v5095
        %v5097 = vlaneseq
        %v5098 = vshrl.u32 %v5097, 7
        %v5099 = vsub.s32 %v5096, %v5098
        %v5100 = vrot.slane %v5086, %v5099
        %v5101 = vcombine.low %v4394, %v4471
        %v5102 = vcombine.high %v4394, %v4471
        %v5104 = vunpack.c.l.s4 1983009808
        %v5105 = vunpack.c.0.s8 %v5104
        %v5106 = vlaneseq
        %v5107 = vshrl.u32 %v5106, 7
        %v5108 = vsub.s32 %v5105, %v5107
        %v5109 = vrot.slane %v5101, %v5108
        %v5111 = vunpack.c.l.s4 1983009808
        %v5112 = vunpack.c.0.s8 %v5111
        %v5113 = vlaneseq
        %v5114 = vshrl.u32 %v5113, 7
        %v5115 = vsub.s32 %v5112, %v5114
        %v5116 = vrot.slane %v5102, %v5115
        %v5117 = vcombine.low %v5061, %v5077
        %v5118 = vcombine.high %v5061, %v5077
        %v5120 = vunpack.c.l.s4 1934713408
        %v5121 = vunpack.c.0.s8 %v5120
        %v5122 = vlaneseq
        %v5123 = vshrl.u32 %v5122, 7
        %v5124 = vsub.s32 %v5121, %v5123
        %v5125 = vrot.slane %v5117, %v5124
        %v5127 = vunpack.c.l.s4 1934713408
        %v5128 = vunpack.c.0.s8 %v5127
        %v5129 = vlaneseq
        %v5130 = vshrl.u32 %v5129, 7
        %v5131 = vsub.s32 %v5128, %v5130
        %v5132 = vrot.slane %v5118, %v5131
        %v5133 = vcombine.low %v5068, %v5084
        %v5134 = vcombine.high %v5068, %v5084
        %v5136 = vunpack.c.l.s4 1934713408
        %v5137 = vunpack.c.0.s8 %v5136
        %v5138 = vlaneseq
        %v5139 = vshrl.u32 %v5138, 7
        %v5140 = vsub.s32 %v5137, %v5139
        %v5141 = vrot.slane %v5133, %v5140
        %v5143 = vunpack.c.l.s4 1934713408
        %v5144 = vunpack.c.0.s8 %v5143
        %v5145 = vlaneseq
        %v5146 = vshrl.u32 %v5145, 7
        %v5147 = vsub.s32 %v5144, %v5146
        %v5148 = vrot.slane %v5134, %v5147
        %v5149 = vcombine.low %v5093, %v5109
        %v5150 = vcombine.high %v5093, %v5109
        %v5152 = vunpack.c.l.s4 1934713408
        %v5153 = vunpack.c.0.s8 %v5152
        %v5154 = vlaneseq
        %v5155 = vshrl.u32 %v5154, 7
        %v5156 = vsub.s32 %v5153, %v5155
        %v5157 = vrot.slane %v5149, %v5156
        %v5159 = vunpack.c.l.s4 1934713408
        %v5160 = vunpack.c.0.s8 %v5159
        %v5161 = vlaneseq
        %v5162 = vshrl.u32 %v5161, 7
        %v5163 = vsub.s32 %v5160, %v5162
        %v5164 = vrot.slane %v5150, %v5163
        %v5165 = vcombine.low %v5100, %v5116
        %v5166 = vcombine.high %v5100, %v5116
        %v5168 = vunpack.c.l.s4 1934713408
        %v5169 = vunpack.c.0.s8 %v5168
        %v5170 = vlaneseq
        %v5171 = vshrl.u32 %v5170, 7
        %v5172 = vsub.s32 %v5169, %v5171
        %v5173 = vrot.slane %v5165, %v5172
        %v5175 = vunpack.c.l.s4 1934713408
        %v5176 = vunpack.c.0.s8 %v5175
        %v5177 = vlaneseq
        %v5178 = vshrl.u32 %v5177, 7
        %v5179 = vsub.s32 %v5176, %v5178
        %v5180 = vrot.slane %v5166, %v5179
        %v5181 = vcombine.low %v5125, %v5157
        %v5182 = vcombine.high %v5125, %v5157
        %v5183 = vcombine.low %v5132, %v5164
        %v5184 = vcombine.high %v5132, %v5164
        %v5185 = vcombine.low %v5141, %v5173
        %v5186 = vcombine.high %v5141, %v5173
        %v5187 = vcombine.low %v5148, %v5180
        %v5188 = vcombine.high %v5148, %v5180
        %v5189 = vcombine.low %v4546, %v4623
        %v5190 = vcombine.high %v4546, %v4623
        %v5192 = vunpack.c.l.s4 1983009808
        %v5193 = vunpack.c.0.s8 %v5192
        %v5194 = vlaneseq
        %v5195 = vshrl.u32 %v5194, 7
        %v5196 = vsub.s32 %v5193, %v5195
        %v5197 = vrot.slane %v5189, %v5196
        %v5199 = vunpack.c.l.s4 1983009808
        %v5200 = vunpack.c.0.s8 %v5199
        %v5201 = vlaneseq
        %v5202 = vshrl.u32 %v5201, 7
        %v5203 = vsub.s32 %v5200, %v5202
        %v5204 = vrot.slane %v5190, %v5203
        %v5205 = vcombine.low %v4548, %v4625
        %v5206 = vcombine.high %v4548, %v4625
        %v5208 = vunpack.c.l.s4 1983009808
        %v5209 = vunpack.c.0.s8 %v5208
        %v5210 = vlaneseq
        %v5211 = vshrl.u32 %v5210, 7
        %v5212 = vsub.s32 %v5209, %v5211
        %v5213 = vrot.slane %v5205, %v5212
        %v5215 = vunpack.c.l.s4 1983009808
        %v5216 = vunpack.c.0.s8 %v5215
        %v5217 = vlaneseq
        %v5218 = vshrl.u32 %v5217, 7
        %v5219 = vsub.s32 %v5216, %v5218
        %v5220 = vrot.slane %v5206, %v5219
        %v5221 = vcombine.low %v4700, %v4777
        %v5222 = vcombine.high %v4700, %v4777
        %v5224 = vunpack.c.l.s4 1983009808
        %v5225 = vunpack.c.0.s8 %v5224
        %v5226 = vlaneseq
        %v5227 = vshrl.u32 %v5226, 7
        %v5228 = vsub.s32 %v5225, %v5227
        %v5229 = vrot.slane %v5221, %v5228
        %v5231 = vunpack.c.l.s4 1983009808
        %v5232 = vunpack.c.0.s8 %v5231
        %v5233 = vlaneseq
        %v5234 = vshrl.u32 %v5233, 7
        %v5235 = vsub.s32 %v5232, %v5234
        %v5236 = vrot.slane %v5222, %v5235
        %v5237 = vcombine.low %v4702, %v4779
        %v5238 = vcombine.high %v4702, %v4779
        %v5240 = vunpack.c.l.s4 1983009808
        %v5241 = vunpack.c.0.s8 %v5240
        %v5242 = vlaneseq
        %v5243 = vshrl.u32 %v5242, 7
        %v5244 = vsub.s32 %v5241, %v5243
        %v5245 = vrot.slane %v5237, %v5244
        %v5247 = vunpack.c.l.s4 1983009808
        %v5248 = vunpack.c.0.s8 %v5247
        %v5249 = vlaneseq
        %v5250 = vshrl.u32 %v5249, 7
        %v5251 = vsub.s32 %v5248, %v5250
        %v5252 = vrot.slane %v5238, %v5251
        %v5253 = vcombine.low %v5197, %v5213
        %v5254 = vcombine.high %v5197, %v5213
        %v5256 = vunpack.c.l.s4 1934713408
        %v5257 = vunpack.c.0.s8 %v5256
        %v5258 = vlaneseq
        %v5259 = vshrl.u32 %v5258, 7
        %v5260 = vsub.s32 %v5257, %v5259
        %v5261 = vrot.slane %v5253, %v5260
        %v5263 = vunpack.c.l.s4 1934713408
        %v5264 = vunpack.c.0.s8 %v5263
        %v5265 = vlaneseq
        %v5266 = vshrl.u32 %v5265, 7
        %v5267 = vsub.s32 %v5264, %v5266
        %v5268 = vrot.slane %v5254, %v5267
        %v5269 = vcombine.low %v5204, %v5220
        %v5270 = vcombine.high %v5204, %v5220
        %v5272 = vunpack.c.l.s4 1934713408
        %v5273 = vunpack.c.0.s8 %v5272
        %v5274 = vlaneseq
        %v5275 = vshrl.u32 %v5274, 7
        %v5276 = vsub.s32 %v5273, %v5275
        %v5277 = vrot.slane %v5269, %v5276
        %v5279 = vunpack.c.l.s4 1934713408
        %v5280 = vunpack.c.0.s8 %v5279
        %v5281 = vlaneseq
        %v5282 = vshrl.u32 %v5281, 7
        %v5283 = vsub.s32 %v5280, %v5282
        %v5284 = vrot.slane %v5270, %v5283
        %v5285 = vcombine.low %v5229, %v5245
        %v5286 = vcombine.high %v5229, %v5245
        %v5288 = vunpack.c.l.s4 1934713408
        %v5289 = vunpack.c.0.s8 %v5288
        %v5290 = vlaneseq
        %v5291 = vshrl.u32 %v5290, 7
        %v5292 = vsub.s32 %v5289, %v5291
        %v5293 = vrot.slane %v5285, %v5292
        %v5295 = vunpack.c.l.s4 1934713408
        %v5296 = vunpack.c.0.s8 %v5295
        %v5297 = vlaneseq
        %v5298 = vshrl.u32 %v5297, 7
        %v5299 = vsub.s32 %v5296, %v5298
        %v5300 = vrot.slane %v5286, %v5299
        %v5301 = vcombine.low %v5236, %v5252
        %v5302 = vcombine.high %v5236, %v5252
        %v5304 = vunpack.c.l.s4 1934713408
        %v5305 = vunpack.c.0.s8 %v5304
        %v5306 = vlaneseq
        %v5307 = vshrl.u32 %v5306, 7
        %v5308 = vsub.s32 %v5305, %v5307
        %v5309 = vrot.slane %v5301, %v5308
        %v5311 = vunpack.c.l.s4 1934713408
        %v5312 = vunpack.c.0.s8 %v5311
        %v5313 = vlaneseq
        %v5314 = vshrl.u32 %v5313, 7
        %v5315 = vsub.s32 %v5312, %v5314
        %v5316 = vrot.slane %v5302, %v5315
        %v5317 = vcombine.low %v5261, %v5293
        %v5318 = vcombine.high %v5261, %v5293
        %v5319 = vcombine.low %v5268, %v5300
        %v5320 = vcombine.high %v5268, %v5300
        %v5321 = vcombine.low %v5277, %v5309
        %v5322 = vcombine.high %v5277, %v5309
        %v5323 = vcombine.low %v5284, %v5316
        %v5324 = vcombine.high %v5284, %v5316
        %v5325 = vadd.f32 %v1885, %v4909
        %v5326 = vadd.f32 %v1890, %v5045
        %v5327 = vadd.f32 %v1895, %v4910
        %v5328 = vadd.f32 %v1900, %v5046
        %v5329 = vadd.f32 %v1905, %v4911
        %v5330 = vadd.f32 %v1910, %v5047
        %v5331 = vadd.f32 %v1915, %v4912
        %v5332 = vadd.f32 %v1920, %v5048
        %v5333 = vadd.f32 %v1925, %v4913
        %v5334 = vadd.f32 %v1930, %v5049
        %v5335 = vadd.f32 %v1935, %v4914
        %v5336 = vadd.f32 %v1940, %v5050
        %v5337 = vadd.f32 %v1945, %v4915
        %v5338 = vadd.f32 %v1950, %v5051
        %v5339 = vadd.f32 %v1955, %v4916
        %v5340 = vadd.f32 %v1960, %v5052
        %v5341 = vadd.f32 %v1965, %v5181
        %v5342 = vadd.f32 %v1970, %v5317
        %v5343 = vadd.f32 %v1975, %v5182
        %v5344 = vadd.f32 %v1980, %v5318
        %v5345 = vadd.f32 %v1985, %v5183
        %v5346 = vadd.f32 %v1990, %v5319
        %v5347 = vadd.f32 %v1995, %v5184
        %v5348 = vadd.f32 %v2000, %v5320
        %v5349 = vadd.f32 %v2005, %v5185
        %v5350 = vadd.f32 %v2010, %v5321
        %v5351 = vadd.f32 %v2015, %v5186
        %v5352 = vadd.f32 %v2020, %v5322
        %v5353 = vadd.f32 %v2025, %v5187
        %v5354 = vadd.f32 %v2030, %v5323
        %v5355 = vadd.f32 %v2035, %v5188
        %v5356 = vadd.f32 %v2040, %v5324
        %v5357 = vmax.f32 %v5325, 0.0
        %v5358 = vmax.f32 %v5326, 0.0
        %v5359 = vmax.f32 %v5327, 0.0
        %v5360 = vmax.f32 %v5328, 0.0
        %v5361 = vmax.f32 %v5329, 0.0
        %v5362 = vmax.f32 %v5330, 0.0
        %v5363 = vmax.f32 %v5331, 0.0
        %v5364 = vmax.f32 %v5332, 0.0
        %v5365 = vmax.f32 %v5333, 0.0
        %v5366 = vmax.f32 %v5334, 0.0
        %v5367 = vmax.f32 %v5335, 0.0
        %v5368 = vmax.f32 %v5336, 0.0
        %v5369 = vmax.f32 %v5337, 0.0
        %v5370 = vmax.f32 %v5338, 0.0
        %v5371 = vmax.f32 %v5339, 0.0
        %v5372 = vmax.f32 %v5340, 0.0
        %v5373 = vmax.f32 %v5341, 0.0
        %v5374 = vmax.f32 %v5342, 0.0
        %v5375 = vmax.f32 %v5343, 0.0
        %v5376 = vmax.f32 %v5344, 0.0
        %v5377 = vmax.f32 %v5345, 0.0
        %v5378 = vmax.f32 %v5346, 0.0
        %v5379 = vmax.f32 %v5347, 0.0
        %v5380 = vmax.f32 %v5348, 0.0
        %v5381 = vmax.f32 %v5349, 0.0
        %v5382 = vmax.f32 %v5350, 0.0
        %v5383 = vmax.f32 %v5351, 0.0
        %v5384 = vmax.f32 %v5352, 0.0
        %v5385 = vmax.f32 %v5353, 0.0
        %v5386 = vmax.f32 %v5354, 0.0
        %v5387 = vmax.f32 %v5355, 0.0
        %v5388 = vmax.f32 %v5356, 0.0
        %5389 = vst [vmem:[%s404] sm:$0xff] %v5357
        %5390 = vst [vmem:[%s404 + $0x8] sm:$0xff] %v5358
        %5391 = vst [vmem:[%s404 + $0x10] sm:$0xff] %v5359
        %5392 = vst [vmem:[%s404 + $0x18] sm:$0xff] %v5360
        %5393 = vst [vmem:[%s404 + $0x20] sm:$0xff] %v5361
        %5394 = vst [vmem:[%s404 + $0x28] sm:$0xff] %v5362
        %5395 = vst [vmem:[%s404 + $0x30] sm:$0xff] %v5363
        %5396 = vst [vmem:[%s404 + $0x38] sm:$0xff] %v5364
        %5397 = vst [vmem:[%s404 + $0x40] sm:$0xff] %v5365
        %5398 = vst [vmem:[%s404 + $0x48] sm:$0xff] %v5366
        %5399 = vst [vmem:[%s404 + $0x50] sm:$0xff] %v5367
        %5400 = vst [vmem:[%s404 + $0x58] sm:$0xff] %v5368
        %5401 = vst [vmem:[%s404 + $0x60] sm:$0xff] %v5369
        %5402 = vst [vmem:[%s404 + $0x68] sm:$0xff] %v5370
        %5403 = vst [vmem:[%s404 + $0x70] sm:$0xff] %v5371
        %5404 = vst [vmem:[%s404 + $0x78] sm:$0xff] %v5372
        %5405 = vst [vmem:[%s404 + $0x80] sm:$0xff] %v5373
        %5406 = vst [vmem:[%s404 + $0x88] sm:$0xff] %v5374
        %5407 = vst [vmem:[%s404 + $0x90] sm:$0xff] %v5375
        %5408 = vst [vmem:[%s404 + $0x98] sm:$0xff] %v5376
        %5409 = vst [vmem:[%s404 + $0xa0] sm:$0xff] %v5377
        %5410 = vst [vmem:[%s404 + $0xa8] sm:$0xff] %v5378
        %5411 = vst [vmem:[%s404 + $0xb0] sm:$0xff] %v5379
        %5412 = vst [vmem:[%s404 + $0xb8] sm:$0xff] %v5380
        %5413 = vst [vmem:[%s404 + $0xc0] sm:$0xff] %v5381
        %5414 = vst [vmem:[%s404 + $0xc8] sm:$0xff] %v5382
        %5415 = vst [vmem:[%s404 + $0xd0] sm:$0xff] %v5383
        %5416 = vst [vmem:[%s404 + $0xd8] sm:$0xff] %v5384
        %5417 = vst [vmem:[%s404 + $0xe0] sm:$0xff] %v5385
        %5418 = vst [vmem:[%s404 + $0xe8] sm:$0xff] %v5386
        %5419 = vst [vmem:[%s404 + $0xf0] sm:$0xff] %v5387
        %5420 = vst [vmem:[%s404 + $0xf8] sm:$0xff] %v5388
        %s5421 = sand.u32 %s194, 1
        %s5422 = scalar_lea.sflag [#allocation4], %s5421
        %s5423 = sand.u32 %s194, 1
        %s5424 = smul.addr %s5423, 256
        %s5425 = scalar_lea.vmem [#allocation14], %s5424
        // Predicated region
        $region77: #{tpu_custom_call.1} parent=47 // pred_check
          %p5426 = pneg %p204
        $region78: #{tpu_custom_call.1} parent=47 // pred_check_branch
          %5428 = sbr.rel (%p5426) target = $region80
        $region79: #{tpu_custom_call.1} parent=47 // pred_region
          %s5430 = ssub.s32 4096, 4096
          %5431 = vsyncadd %s5422, %s5430
          %s5432 = smul.addr %s29, 32
          %s5433 = smul.addr %s5432, 128
          %s5434 = scalar_lea.hbm %s7, %s5433
          %s5435 = sshll.u32 %s5425, 4
          %s5436 = int_to_ptr.vmem [resolvable:$true] %s5435
          %5441 = dma.vmem_to_hbm [thread:$0]  %s5436, 4096, %s5434, %s5422, 128, 128, 8
        $region80: #{tpu_custom_call.1} parent=47 // pred_fallthru
          _
      $region48: #{tpu_custom_call.1} parent=5 // pred_fallthru
        _
      %p5442 = scmp.le.s32.totalorder 2, %s24
      // Predicated region
      $region81: #{tpu_custom_call.1} parent=5 // pred_check
        %p5443 = pneg %p5442
      $region82: #{tpu_custom_call.1} parent=5 // pred_check_branch
        %5445 = sbr.rel (%p5443) target = $region84
      $region83: #{tpu_custom_call.1} parent=5 // pred_region
        %s5446 = ssub.s32 %s24, 2
        // Predicated region
        $region85: #{tpu_custom_call.1} parent=83 // pred_check
          %p5447 = pneg %p210
        $region86: #{tpu_custom_call.1} parent=83 // pred_check_branch
          %5449 = sbr.rel (%p5447) target = $region88
        $region87: #{tpu_custom_call.1} parent=83 // pred_region
          %s5450 = sand.u32 %s195, 1
          %s5451 = scalar_lea.sflag [#allocation4], %s5450
          %s5452 = sand.u32 %s195, 1
          %s5453 = smul.addr %s5452, 256
          %s5454 = scalar_lea.vmem [#allocation14], %s5453
          %5455 = dma.done %s5451, 4096
        $region88: #{tpu_custom_call.1} parent=83 // pred_fallthru
          _
      $region84: #{tpu_custom_call.1} parent=5 // pred_fallthru
        _
    $region6: #{tpu_custom_call.1} parent=1 // loop_footer
      %s28 = sadd.s32 1, %s24
    $region7: #{tpu_custom_call.1} parent=1 // loop_footer_branch
      %23 = sbr.rel target = $region3
    $region8: #{tpu_custom_call.1} parent=1 // loop_exit
      _
    %5456 = vsyncpa [#allocation3], 1
    %s5457 = scalar_lea.sflag [#allocation3], 1
    %5458 = vsyncpa %s5457, 1
    %5459 = vsyncpa [#allocation6], 1
    %5460 = vsyncpa [#allocation9], 1
    %s5461 = scalar_lea.sflag [#allocation9], 1
    %5462 = vsyncpa %s5461, 1
    %5463 = vsyncpa [#allocation12], 1
    %5464 = vsyncpa [#allocation4], 1
    %s5465 = scalar_lea.sflag [#allocation4], 1
    %5466 = vsyncpa %s5465, 1

</llo_original>
